<compile_context>
chip_gen: v7x
topology: tpu7x:2x2x1
jax: 0.10.0
libtpu: 0.0.40
codegen_flags: <defaults>
</compile_context>

<pallas_src>
import functools

import jax
import jax.numpy as jnp
import numpy as np
from jax.experimental import pallas as pl
from jax.experimental.pallas import tpu as pltpu

_LANES = 128


# ---------------------------------------------------------------------------
# Fused Pallas kernel
# ---------------------------------------------------------------------------
def _basic_block_kernel(xp_ref, w1_ref, b1_ref, w2_ref, b2_ref, out_ref, mid_ref):
    """One (batch item, H-tile) step of the fused BasicBlock.

    xp_ref : (H+4, W+2, Cin_p) bf16  input padded by 2 rows / 1 col, channel-padded
    w1_ref : (9, Cin_p, C_p)   bf16  conv1 weights (kh*3+kw taps), BN1 scale folded
    b1_ref : (1, C_p)          f32   folded BN1 bias
    w2_ref : (9, C_p, C_p)     bf16  conv2 weights, BN2 scale folded
    b2_ref : (1, C_p)          f32   folded BN2 bias
    out_ref: (TH, W, C_p)      bf16  output rows [h*TH, (h+1)*TH)
    mid_ref: (TH+2, W+2, C_p)  bf16  VMEM scratch: W-padded conv1 output band
    """
    cin_p = xp_ref.shape[2]
    TH, W, cp = out_ref.shape
    Rm = TH + 2                                      # intermediate rows incl. conv2 halo
    Wp2 = W + 2

    h = pl.program_id(1)
    r0 = pl.multiple_of(h * TH, TH)                  # first output row of this tile

    # ---- conv1 (+ folded BN1 bias, ReLU) over the TH+2 halo band ------------------
    # 9 accumulating dots; no concatenated im2col slab; acc starts from the first tap.
    acc1 = None
    for kh in range(3):
        band = xp_ref[pl.ds(r0 + kh, Rm), :, :]                  # (Rm, W+2, Cin_p) bf16
        for kw in range(3):
            tap = band[:, kw:kw + W, :].reshape(Rm * W, cin_p)
            part = jnp.dot(tap, w1_ref[kh * 3 + kw],
                           preferred_element_type=jnp.float32)
            acc1 = part if acc1 is None else acc1 + part

    mid = jnp.maximum(acc1 + b1_ref[...], 0.0)                   # (Rm*W, C_p) f32
    mid = mid.astype(jnp.bfloat16).reshape(Rm, W, cp)            # bf16 intermediate

    # Intermediate stays in VMEM scratch: write the middle columns, zero the two
    # edge columns (conv2's zero padding in W).  No concat-rebuilt band.
    mid_ref[:, pl.ds(1, W), :] = mid
    zcol = jnp.zeros((Rm, 1, cp), jnp.bfloat16)
    mid_ref[:, pl.ds(0, 1), :] = zcol
    mid_ref[:, pl.ds(Wp2 - 1, 1), :] = zcol

    # Halo rows outside the image act as conv2's zero padding in H — only the first
    # and last H-tiles actually contain such rows.
    zrow = jnp.zeros((1, Wp2, cp), jnp.bfloat16)

    @pl.when(h == 0)
    def _():
        mid_ref[pl.ds(0, 1), :, :] = zrow

    @pl.when(h == pl.num_programs(1) - 1)
    def _():
        mid_ref[pl.ds(Rm - 1, 1), :, :] = zrow

    # ---- conv2 (+ folded BN2 bias) + residual + ReLU -------------------------------
    acc2 = None
    for kh in range(3):
        band2 = mid_ref[pl.ds(kh, TH), :, :]                     # (TH, W+2, C_p) bf16
        for kw in range(3):
            tap2 = band2[:, kw:kw + W, :].reshape(TH * W, cp)
            part = jnp.dot(tap2, w2_ref[kh * 3 + kw],
                           preferred_element_type=jnp.float32)
            acc2 = part if acc2 is None else acc2 + part

    y = (acc2 + b2_ref[...]).reshape(TH, W, cp)

    # Residual = this tile's rows of the (already VMEM-resident) input image.
    res = xp_ref[pl.ds(r0 + 2, TH), :, :][:, 1:1 + W, :].astype(jnp.float32)
    out_ref[...] = jnp.maximum(y + res, 0.0).astype(out_ref.dtype)


# ---------------------------------------------------------------------------
# pallas_call wrapper (NHWC)
# ---------------------------------------------------------------------------
def _pick_tile_h(H, target):
    # TODO(synk): prime H falls back to TH=1 (3x halo recompute) — pad H upstream.
    th = max(1, min(target, H))
    while H % th:
        th -= 1
    return th


def basic_block_nhwc(x, bp, *, tile_h=32):
    """x: (N, H, W, C) f32/bf16 NHWC.

    Returns (N, H, W, C_p) *bf16, channel-padded* NHWC — ready to feed the next block
    without any HBM-level slicing/casting.
    """
    N, H, W, C = x.shape
    cin_p = bp["w1"].shape[1]
    cout_p = bp["w1"].shape[2]
    assert cin_p == cout_p, "residual path requires inplanes == planes (downsample=None)"

    TH = _pick_tile_h(H, tile_h)
    nH = H // TH

    # bf16 I/O (halves DMA bytes), pad H by 2 / W by 1 (conv halo), channels to lanes.
    xp = jnp.pad(x.astype(jnp.bfloat16), ((0, 0), (2, 2), (1, 1), (0, cin_p - C)))

    out = pl.pallas_call(
        _basic_block_kernel,
        out_shape=jax.ShapeDtypeStruct((N, H, W, cout_p), jnp.bfloat16),
        grid_spec=pltpu.PrefetchScalarGridSpec(
            num_scalar_prefetch=0,
            grid=(N, nH),
            in_specs=[
                # whole padded image resident per batch item (block index ignores h)
                pl.BlockSpec((None, H + 4, W + 2, cin_p), lambda n, h: (n, 0, 0, 0)),
                pl.BlockSpec((9, cin_p, cout_p), lambda n, h: (0, 0, 0)),
                pl.BlockSpec((1, cout_p), lambda n, h: (0, 0)),
                pl.BlockSpec((9, cout_p, cout_p), lambda n, h: (0, 0, 0)),
                pl.BlockSpec((1, cout_p), lambda n, h: (0, 0)),
            ],
            out_specs=pl.BlockSpec((None, TH, W, cout_p), lambda n, h: (n, h, 0, 0)),
            scratch_shapes=[pltpu.VMEM((TH + 2, W + 2, cout_p), jnp.bfloat16)],
        ),
        compiler_params=pltpu.CompilerParams(
            # h-tiles are independent -> both axes parallel (v7x megacore even at N=1)
            dimension_semantics=("parallel", "parallel"),
            vmem_limit_bytes=40 * 1024 * 1024,   # fits v7x's 64 MiB physical VMEM
        ),
    )(xp, bp["w1"], bp["b1"], bp["w2"], bp["b2"])

    return out


def basic_block_forward(x_nchw, bp, *, tile_h=32):
    """NCHW<->NHWC + channel un-pad + f32 cast only at the module boundary.

    A full network should stay in channel-padded bf16 NHWC and chain basic_block_nhwc.
    """
    N, C, H, W = x_nchw.shape
    x = jnp.transpose(x_nchw, (0, 2, 3, 1))
    y = basic_block_nhwc(x, bp, tile_h=tile_h)
    y = y[..., :C].astype(jnp.float32)
    return jnp.transpose(y, (0, 3, 1, 2))


# ---------------------------------------------------------------------------
# Parameter preparation (fold BN, pad channels, pack weights, cast bf16)
# ---------------------------------------------------------------------------
def fold_bn(gamma, beta, mean, var, eps=1e-5):
    scale = gamma * jax.lax.rsqrt(var + eps)
    bias = beta - mean * scale
    return scale, bias


def _round_up(x, m):
    return ((x + m - 1) // m) * m


def _pack_conv_w(w, cin_p, cout_p):
    # w: (3, 3, Cin, Cout) f32 (BN scale already folded into Cout)
    _, _, cin, cout = w.shape
    wp = jnp.pad(w, ((0, 0), (0, 0), (0, cin_p - cin), (0, cout_p - cout)))
    # -> (9, Cin_p, Cout_p): tap index = kh*3 + kw
    return wp.reshape(9, cin_p, cout_p).astype(jnp.bfloat16)


def _pad_bias(b, cout_p):
    return jnp.pad(b, (0, cout_p - b.shape[0])).reshape(1, cout_p).astype(jnp.float32)


def prepare_params(raw, eps=1e-5, lanes=_LANES):
    s1, b1 = fold_bn(raw["gamma1"], raw["beta1"], raw["mean1"], raw["var1"], eps)
    s2, b2 = fold_bn(raw["gamma2"], raw["beta2"], raw["mean2"], raw["var2"], eps)
    w1f = raw["w1"] * s1          # fold BN scale into conv weights (per Cout)
    w2f = raw["w2"] * s2
    cin, cout = raw["w1"].shape[2], raw["w1"].shape[3]
    cin_p, cout_p = _round_up(cin, lanes), _round_up(cout, lanes)
    return {
        "w1": _pack_conv_w(w1f, cin_p, cout_p),
        "b1": _pad_bias(b1, cout_p),
        "w2": _pack_conv_w(w2f, cout_p, cout_p),
        "b2": _pad_bias(b2, cout_p),
    }


def init_raw_params(key, inplanes, planes):
    ks = jax.random.split(key, 10)
    return {
        "w1": jax.random.normal(ks[0], (3, 3, inplanes, planes), jnp.float32) * 0.1,
        "w2": jax.random.normal(ks[1], (3, 3, planes, planes), jnp.float32) * 0.1,
        "gamma1": 1.0 + 0.05 * jax.random.normal(ks[2], (planes,), jnp.float32),
        "beta1": 0.05 * jax.random.normal(ks[3], (planes,), jnp.float32),
        "mean1": 0.05 * jax.random.normal(ks[4], (planes,), jnp.float32),
        "var1": 1.0 + 0.1 * jax.random.uniform(ks[5], (planes,), jnp.float32),
        "gamma2": 1.0 + 0.05 * jax.random.normal(ks[6], (planes,), jnp.float32),
        "beta2": 0.05 * jax.random.normal(ks[7], (planes,), jnp.float32),
        "mean2": 0.05 * jax.random.normal(ks[8], (planes,), jnp.float32),
        "var2": 1.0 + 0.1 * jax.random.uniform(ks[9], (planes,), jnp.float32),
    }


# ---------------------------------------------------------------------------
# Pure-JAX reference.  Quantization points mirror the kernel exactly:
# bf16 input, bf16 folded weights, f32 math, bf16 intermediate, bf16 output.
# ---------------------------------------------------------------------------
def _ref_conv(x, w):
    return jax.lax.conv_general_dilated(
        x, w, window_strides=(1, 1), padding="SAME",
        dimension_numbers=("NHWC", "HWIO", "NHWC"),
        precision=jax.lax.Precision.HIGHEST)


def basic_block_ref(x_nchw, raw, eps=1e-5):
    f32 = jnp.float32
    x = jnp.transpose(x_nchw, (0, 2, 3, 1)).astype(jnp.bfloat16).astype(f32)
    s1, b1 = fold_bn(raw["gamma1"], raw["beta1"], raw["mean1"], raw["var1"], eps)
    s2, b2 = fold_bn(raw["gamma2"], raw["beta2"], raw["mean2"], raw["var2"], eps)
    w1f = (raw["w1"] * s1).astype(jnp.bfloat16).astype(f32)
    w2f = (raw["w2"] * s2).astype(jnp.bfloat16).astype(f32)
    o = jnp.maximum(_ref_conv(x, w1f) + b1, 0.0)
    o = o.astype(jnp.bfloat16).astype(f32)            # kernel keeps mid in bf16
    o = _ref_conv(o, w2f) + b2
    o = jnp.maximum(o + x, 0.0)
    o = o.astype(jnp.bfloat16).astype(f32)            # kernel output is bf16
    return jnp.transpose(o, (0, 3, 1, 2))


# ---------------------------------------------------------------------------
if __name__ == "__main__":
    key = jax.random.PRNGKey(0)
    kx, kp = jax.random.split(key)

    N, C, H, W = 2, 4, 16, 16              # inplanes = planes = 4, stride = 1
    x = jax.random.normal(kx, (N, C, H, W), jnp.float32)
    raw = init_raw_params(kp, C, C)
    bp = prepare_params(raw)

    fwd = jax.jit(functools.partial(basic_block_forward, tile_h=8))  # 2 H-tiles/image
    out = jax.block_until_ready(fwd(x, bp))
    ref = jax.block_until_ready(basic_block_ref(x, raw))

    assert out.shape == (N, C, H, W)
    np.testing.assert_allclose(np.asarray(out), np.asarray(ref), rtol=2e-2, atol=2e-2)
    print("KERNEL_OK")
</pallas_src>

<mosaic_0001>
module attributes {stable_mosaic.version = 11 : i64} {
  func.func @_basic_block_kernel(%arg0: i32, %arg1: i32, %arg2: memref<1x20x18x128xbf16, #tpu.memory_space<vmem>>, %arg3: memref<9x128x128xbf16, #tpu.memory_space<vmem>>, %arg4: memref<1x128xf32, #tpu.memory_space<vmem>>, %arg5: memref<9x128x128xbf16, #tpu.memory_space<vmem>>, %arg6: memref<1x128xf32, #tpu.memory_space<vmem>>, %arg7: memref<1x8x16x128xbf16, #tpu.memory_space<vmem>>, %arg8: memref<10x18x128xbf16, #tpu.memory_space<vmem>>) attributes {dimension_semantics = [#tpu.dimension_semantics<parallel>, #tpu.dimension_semantics<parallel>], iteration_bounds = array<i64: 2, 2>, scalar_prefetch = 0 : i64, scratch_operands = 1 : i64, tpu.core_type = #tpu.core_type<tc>, window_params = [{transform_indices = @transform_0, window_bounds = array<i64: 1, 20, 18, 128>}, {pipeline_mode = #tpu.pipeline_mode<synchronous>, transform_indices = @transform_1, window_bounds = array<i64: 9, 128, 128>}, {pipeline_mode = #tpu.pipeline_mode<synchronous>, transform_indices = @transform_2, window_bounds = array<i64: 1, 128>}, {pipeline_mode = #tpu.pipeline_mode<synchronous>, transform_indices = @transform_3, window_bounds = array<i64: 9, 128, 128>}, {pipeline_mode = #tpu.pipeline_mode<synchronous>, transform_indices = @transform_4, window_bounds = array<i64: 1, 128>}, {transform_indices = @transform_5, window_bounds = array<i64: 1, 8, 16, 128>}]} {
    %c8_i32 = arith.constant 8 : i32
    %0 = arith.muli %arg1, %c8_i32 : i32
    %1 = tpu.assume_multiple %0, 8 : i32
    %c0_i32 = arith.constant 0 : i32
    %2 = arith.addi %1, %c0_i32 : i32
    %c0 = arith.constant 0 : index
    %3 = arith.index_cast %2 : i32 to index
    %c0_0 = arith.constant 0 : index
    %c0_1 = arith.constant 0 : index
    %4 = vector.load %arg2[%c0, %3, %c0_0, %c0_1] : memref<1x20x18x128xbf16, #tpu.memory_space<vmem>>, vector<1x10x18x128xbf16>
    %5 = vector.shape_cast %4 : vector<1x10x18x128xbf16> to vector<10x18x128xbf16>
    %6 = vector.extract_strided_slice %5 {offsets = [0, 0, 0], sizes = [10, 16, 128], strides = [1, 1, 1]} : vector<10x18x128xbf16> to vector<10x16x128xbf16>
    %7 = vector.shape_cast %6 : vector<10x16x128xbf16> to vector<160x128xbf16>
    %c0_2 = arith.constant 0 : index
    %c0_3 = arith.constant 0 : index
    %c0_4 = arith.constant 0 : index
    %8 = vector.load %arg3[%c0_2, %c0_3, %c0_4] : memref<9x128x128xbf16, #tpu.memory_space<vmem>>, vector<1x128x128xbf16>
    %9 = vector.shape_cast %8 : vector<1x128x128xbf16> to vector<128x128xbf16>
    %cst = arith.constant dense<0.000000e+00> : vector<160x128xf32>
    %10 = tpu.matmul %7, %9, %cst {dimension_numbers = #tpu.dot_dimension_numbers<[1], [0], [0], [1], [0, 0, 1, 1], [], []>} : vector<160x128xbf16>, vector<128x128xbf16>, vector<160x128xf32> -> vector<160x128xf32>
    %11 = vector.extract_strided_slice %5 {offsets = [0, 1, 0], sizes = [10, 16, 128], strides = [1, 1, 1]} : vector<10x18x128xbf16> to vector<10x16x128xbf16>
    %12 = vector.shape_cast %11 : vector<10x16x128xbf16> to vector<160x128xbf16>
    %c1 = arith.constant 1 : index
    %c0_5 = arith.constant 0 : index
    %c0_6 = arith.constant 0 : index
    %13 = vector.load %arg3[%c1, %c0_5, %c0_6] : memref<9x128x128xbf16, #tpu.memory_space<vmem>>, vector<1x128x128xbf16>
    %14 = vector.shape_cast %13 : vector<1x128x128xbf16> to vector<128x128xbf16>
    %cst_7 = arith.constant dense<0.000000e+00> : vector<160x128xf32>
    %15 = tpu.matmul %12, %14, %cst_7 {dimension_numbers = #tpu.dot_dimension_numbers<[1], [0], [0], [1], [0, 0, 1, 1], [], []>} : vector<160x128xbf16>, vector<128x128xbf16>, vector<160x128xf32> -> vector<160x128xf32>
    %16 = arith.addf %10, %15 : vector<160x128xf32>
    %17 = vector.extract_strided_slice %5 {offsets = [0, 2, 0], sizes = [10, 16, 128], strides = [1, 1, 1]} : vector<10x18x128xbf16> to vector<10x16x128xbf16>
    %18 = vector.shape_cast %17 : vector<10x16x128xbf16> to vector<160x128xbf16>
    %c2 = arith.constant 2 : index
    %c0_8 = arith.constant 0 : index
    %c0_9 = arith.constant 0 : index
    %19 = vector.load %arg3[%c2, %c0_8, %c0_9] : memref<9x128x128xbf16, #tpu.memory_space<vmem>>, vector<1x128x128xbf16>
    %20 = vector.shape_cast %19 : vector<1x128x128xbf16> to vector<128x128xbf16>
    %cst_10 = arith.constant dense<0.000000e+00> : vector<160x128xf32>
    %21 = tpu.matmul %18, %20, %cst_10 {dimension_numbers = #tpu.dot_dimension_numbers<[1], [0], [0], [1], [0, 0, 1, 1], [], []>} : vector<160x128xbf16>, vector<128x128xbf16>, vector<160x128xf32> -> vector<160x128xf32>
    %22 = arith.addf %16, %21 : vector<160x128xf32>
    %c1_i32 = arith.constant 1 : i32
    %23 = arith.addi %1, %c1_i32 : i32
    %c0_11 = arith.constant 0 : index
    %24 = arith.index_cast %23 : i32 to index
    %c0_12 = arith.constant 0 : index
    %c0_13 = arith.constant 0 : index
    %25 = vector.load %arg2[%c0_11, %24, %c0_12, %c0_13] : memref<1x20x18x128xbf16, #tpu.memory_space<vmem>>, vector<1x10x18x128xbf16>
    %26 = vector.shape_cast %25 : vector<1x10x18x128xbf16> to vector<10x18x128xbf16>
    %27 = vector.extract_strided_slice %26 {offsets = [0, 0, 0], sizes = [10, 16, 128], strides = [1, 1, 1]} : vector<10x18x128xbf16> to vector<10x16x128xbf16>
    %28 = vector.shape_cast %27 : vector<10x16x128xbf16> to vector<160x128xbf16>
    %c3 = arith.constant 3 : index
    %c0_14 = arith.constant 0 : index
    %c0_15 = arith.constant 0 : index
    %29 = vector.load %arg3[%c3, %c0_14, %c0_15] : memref<9x128x128xbf16, #tpu.memory_space<vmem>>, vector<1x128x128xbf16>
    %30 = vector.shape_cast %29 : vector<1x128x128xbf16> to vector<128x128xbf16>
    %cst_16 = arith.constant dense<0.000000e+00> : vector<160x128xf32>
    %31 = tpu.matmul %28, %30, %cst_16 {dimension_numbers = #tpu.dot_dimension_numbers<[1], [0], [0], [1], [0, 0, 1, 1], [], []>} : vector<160x128xbf16>, vector<128x128xbf16>, vector<160x128xf32> -> vector<160x128xf32>
    %32 = arith.addf %22, %31 : vector<160x128xf32>
    %33 = vector.extract_strided_slice %26 {offsets = [0, 1, 0], sizes = [10, 16, 128], strides = [1, 1, 1]} : vector<10x18x128xbf16> to vector<10x16x128xbf16>
    %34 = vector.shape_cast %33 : vector<10x16x128xbf16> to vector<160x128xbf16>
    %c4 = arith.constant 4 : index
    %c0_17 = arith.constant 0 : index
    %c0_18 = arith.constant 0 : index
    %35 = vector.load %arg3[%c4, %c0_17, %c0_18] : memref<9x128x128xbf16, #tpu.memory_space<vmem>>, vector<1x128x128xbf16>
    %36 = vector.shape_cast %35 : vector<1x128x128xbf16> to vector<128x128xbf16>
    %cst_19 = arith.constant dense<0.000000e+00> : vector<160x128xf32>
    %37 = tpu.matmul %34, %36, %cst_19 {dimension_numbers = #tpu.dot_dimension_numbers<[1], [0], [0], [1], [0, 0, 1, 1], [], []>} : vector<160x128xbf16>, vector<128x128xbf16>, vector<160x128xf32> -> vector<160x128xf32>
    %38 = arith.addf %32, %37 : vector<160x128xf32>
    %39 = vector.extract_strided_slice %26 {offsets = [0, 2, 0], sizes = [10, 16, 128], strides = [1, 1, 1]} : vector<10x18x128xbf16> to vector<10x16x128xbf16>
    %40 = vector.shape_cast %39 : vector<10x16x128xbf16> to vector<160x128xbf16>
    %c5 = arith.constant 5 : index
    %c0_20 = arith.constant 0 : index
    %c0_21 = arith.constant 0 : index
    %41 = vector.load %arg3[%c5, %c0_20, %c0_21] : memref<9x128x128xbf16, #tpu.memory_space<vmem>>, vector<1x128x128xbf16>
    %42 = vector.shape_cast %41 : vector<1x128x128xbf16> to vector<128x128xbf16>
    %cst_22 = arith.constant dense<0.000000e+00> : vector<160x128xf32>
    %43 = tpu.matmul %40, %42, %cst_22 {dimension_numbers = #tpu.dot_dimension_numbers<[1], [0], [0], [1], [0, 0, 1, 1], [], []>} : vector<160x128xbf16>, vector<128x128xbf16>, vector<160x128xf32> -> vector<160x128xf32>
    %44 = arith.addf %38, %43 : vector<160x128xf32>
    %c2_i32 = arith.constant 2 : i32
    %45 = arith.addi %1, %c2_i32 : i32
    %c0_23 = arith.constant 0 : index
    %46 = arith.index_cast %45 : i32 to index
    %c0_24 = arith.constant 0 : index
    %c0_25 = arith.constant 0 : index
    %47 = vector.load %arg2[%c0_23, %46, %c0_24, %c0_25] : memref<1x20x18x128xbf16, #tpu.memory_space<vmem>>, vector<1x10x18x128xbf16>
    %48 = vector.shape_cast %47 : vector<1x10x18x128xbf16> to vector<10x18x128xbf16>
    %49 = vector.extract_strided_slice %48 {offsets = [0, 0, 0], sizes = [10, 16, 128], strides = [1, 1, 1]} : vector<10x18x128xbf16> to vector<10x16x128xbf16>
    %50 = vector.shape_cast %49 : vector<10x16x128xbf16> to vector<160x128xbf16>
    %c6 = arith.constant 6 : index
    %c0_26 = arith.constant 0 : index
    %c0_27 = arith.constant 0 : index
    %51 = vector.load %arg3[%c6, %c0_26, %c0_27] : memref<9x128x128xbf16, #tpu.memory_space<vmem>>, vector<1x128x128xbf16>
    %52 = vector.shape_cast %51 : vector<1x128x128xbf16> to vector<128x128xbf16>
    %cst_28 = arith.constant dense<0.000000e+00> : vector<160x128xf32>
    %53 = tpu.matmul %50, %52, %cst_28 {dimension_numbers = #tpu.dot_dimension_numbers<[1], [0], [0], [1], [0, 0, 1, 1], [], []>} : vector<160x128xbf16>, vector<128x128xbf16>, vector<160x128xf32> -> vector<160x128xf32>
    %54 = arith.addf %44, %53 : vector<160x128xf32>
    %55 = vector.extract_strided_slice %48 {offsets = [0, 1, 0], sizes = [10, 16, 128], strides = [1, 1, 1]} : vector<10x18x128xbf16> to vector<10x16x128xbf16>
    %56 = vector.shape_cast %55 : vector<10x16x128xbf16> to vector<160x128xbf16>
    %c7 = arith.constant 7 : index
    %c0_29 = arith.constant 0 : index
    %c0_30 = arith.constant 0 : index
    %57 = vector.load %arg3[%c7, %c0_29, %c0_30] : memref<9x128x128xbf16, #tpu.memory_space<vmem>>, vector<1x128x128xbf16>
    %58 = vector.shape_cast %57 : vector<1x128x128xbf16> to vector<128x128xbf16>
    %cst_31 = arith.constant dense<0.000000e+00> : vector<160x128xf32>
    %59 = tpu.matmul %56, %58, %cst_31 {dimension_numbers = #tpu.dot_dimension_numbers<[1], [0], [0], [1], [0, 0, 1, 1], [], []>} : vector<160x128xbf16>, vector<128x128xbf16>, vector<160x128xf32> -> vector<160x128xf32>
    %60 = arith.addf %54, %59 : vector<160x128xf32>
    %61 = vector.extract_strided_slice %48 {offsets = [0, 2, 0], sizes = [10, 16, 128], strides = [1, 1, 1]} : vector<10x18x128xbf16> to vector<10x16x128xbf16>
    %62 = vector.shape_cast %61 : vector<10x16x128xbf16> to vector<160x128xbf16>
    %c8 = arith.constant 8 : index
    %c0_32 = arith.constant 0 : index
    %c0_33 = arith.constant 0 : index
    %63 = vector.load %arg3[%c8, %c0_32, %c0_33] : memref<9x128x128xbf16, #tpu.memory_space<vmem>>, vector<1x128x128xbf16>
    %64 = vector.shape_cast %63 : vector<1x128x128xbf16> to vector<128x128xbf16>
    %cst_34 = arith.constant dense<0.000000e+00> : vector<160x128xf32>
    %65 = tpu.matmul %62, %64, %cst_34 {dimension_numbers = #tpu.dot_dimension_numbers<[1], [0], [0], [1], [0, 0, 1, 1], [], []>} : vector<160x128xbf16>, vector<128x128xbf16>, vector<160x128xf32> -> vector<160x128xf32>
    %66 = arith.addf %60, %65 : vector<160x128xf32>
    %c0_35 = arith.constant 0 : index
    %c0_36 = arith.constant 0 : index
    %67 = vector.load %arg4[%c0_35, %c0_36] : memref<1x128xf32, #tpu.memory_space<vmem>>, vector<1x128xf32>
    %68 = vector.broadcast %67 : vector<1x128xf32> to vector<160x128xf32>
    %69 = arith.addf %66, %68 : vector<160x128xf32>
    %cst_37 = arith.constant 0.000000e+00 : f32
    %70 = vector.broadcast %cst_37 : f32 to vector<160x128xf32>
    %71 = arith.maximumf %69, %70 : vector<160x128xf32>
    %72 = arith.truncf %71 : vector<160x128xf32> to vector<160x128xbf16>
    %73 = vector.shape_cast %72 : vector<160x128xbf16> to vector<10x16x128xbf16>
    %c0_38 = arith.constant 0 : index
    %c1_39 = arith.constant 1 : index
    %c0_40 = arith.constant 0 : index
    %74 = vector.load %arg8[%c0_38, %c1_39, %c0_40] : memref<10x18x128xbf16, #tpu.memory_space<vmem>>, vector<10x16x128xbf16>
    tpu.vector_store %arg8[%c0_38, %c1_39, %c0_40], %73 {strides = array<i32>} : memref<10x18x128xbf16, #tpu.memory_space<vmem>>, vector<10x16x128xbf16>,
    %cst_41 = arith.constant 0.000000e+00 : bf16
    %75 = vector.broadcast %cst_41 : bf16 to vector<10x1x128xbf16>
    %c0_42 = arith.constant 0 : index
    %c0_43 = arith.constant 0 : index
    %c0_44 = arith.constant 0 : index
    %76 = vector.load %arg8[%c0_42, %c0_43, %c0_44] : memref<10x18x128xbf16, #tpu.memory_space<vmem>>, vector<10x1x128xbf16>
    tpu.vector_store %arg8[%c0_42, %c0_43, %c0_44], %75 {strides = array<i32>} : memref<10x18x128xbf16, #tpu.memory_space<vmem>>, vector<10x1x128xbf16>,
    %c0_45 = arith.constant 0 : index
    %c17 = arith.constant 17 : index
    %c0_46 = arith.constant 0 : index
    %77 = vector.load %arg8[%c0_45, %c17, %c0_46] : memref<10x18x128xbf16, #tpu.memory_space<vmem>>, vector<10x1x128xbf16>
    tpu.vector_store %arg8[%c0_45, %c17, %c0_46], %75 {strides = array<i32>} : memref<10x18x128xbf16, #tpu.memory_space<vmem>>, vector<10x1x128xbf16>,
    %cst_47 = arith.constant 0.000000e+00 : bf16
    %78 = vector.broadcast %cst_47 : bf16 to vector<1x18x128xbf16>
    %c0_i32_48 = arith.constant 0 : i32
    %79 = arith.cmpi eq, %arg1, %c0_i32_48 : i32
    %80 = arith.extui %79 : i1 to i32
    %c0_i32_49 = arith.constant 0 : i32
    %81 = arith.cmpi ne, %80, %c0_i32_49 : i32
    scf.if %81 {
      %c0_108 = arith.constant 0 : index
      %c0_109 = arith.constant 0 : index
      %c0_110 = arith.constant 0 : index
      %158 = vector.load %arg8[%c0_108, %c0_109, %c0_110] : memref<10x18x128xbf16, #tpu.memory_space<vmem>>, vector<1x18x128xbf16>
      tpu.vector_store %arg8[%c0_108, %c0_109, %c0_110], %78 {strides = array<i32>} : memref<10x18x128xbf16, #tpu.memory_space<vmem>>, vector<1x18x128xbf16>,
    } else {
    }
    %c1_i32_50 = arith.constant 1 : i32
    %82 = arith.cmpi eq, %arg1, %c1_i32_50 : i32
    %83 = arith.extui %82 : i1 to i32
    %c0_i32_51 = arith.constant 0 : i32
    %84 = arith.cmpi ne, %83, %c0_i32_51 : i32
    scf.if %84 {
      %c9 = arith.constant 9 : index
      %c0_108 = arith.constant 0 : index
      %c0_109 = arith.constant 0 : index
      %158 = vector.load %arg8[%c9, %c0_108, %c0_109] : memref<10x18x128xbf16, #tpu.memory_space<vmem>>, vector<1x18x128xbf16>
      tpu.vector_store %arg8[%c9, %c0_108, %c0_109], %78 {strides = array<i32>} : memref<10x18x128xbf16, #tpu.memory_space<vmem>>, vector<1x18x128xbf16>,
    } else {
    }
    %c0_52 = arith.constant 0 : index
    %c0_53 = arith.constant 0 : index
    %c0_54 = arith.constant 0 : index
    %85 = vector.load %arg8[%c0_52, %c0_53, %c0_54] : memref<10x18x128xbf16, #tpu.memory_space<vmem>>, vector<8x18x128xbf16>
    %86 = vector.extract_strided_slice %85 {offsets = [0, 0, 0], sizes = [8, 16, 128], strides = [1, 1, 1]} : vector<8x18x128xbf16> to vector<8x16x128xbf16>
    %87 = vector.shape_cast %86 : vector<8x16x128xbf16> to vector<128x128xbf16>
    %c0_55 = arith.constant 0 : index
    %c0_56 = arith.constant 0 : index
    %c0_57 = arith.constant 0 : index
    %88 = vector.load %arg5[%c0_55, %c0_56, %c0_57] : memref<9x128x128xbf16, #tpu.memory_space<vmem>>, vector<1x128x128xbf16>
    %89 = vector.shape_cast %88 : vector<1x128x128xbf16> to vector<128x128xbf16>
    %cst_58 = arith.constant dense<0.000000e+00> : vector<128x128xf32>
    %90 = tpu.matmul %87, %89, %cst_58 {dimension_numbers = #tpu.dot_dimension_numbers<[1], [0], [0], [1], [0, 0, 1, 1], [], []>} : vector<128x128xbf16>, vector<128x128xbf16>, vector<128x128xf32> -> vector<128x128xf32>
    %91 = vector.extract_strided_slice %85 {offsets = [0, 1, 0], sizes = [8, 16, 128], strides = [1, 1, 1]} : vector<8x18x128xbf16> to vector<8x16x128xbf16>
    %92 = vector.shape_cast %91 : vector<8x16x128xbf16> to vector<128x128xbf16>
    %c1_59 = arith.constant 1 : index
    %c0_60 = arith.constant 0 : index
    %c0_61 = arith.constant 0 : index
    %93 = vector.load %arg5[%c1_59, %c0_60, %c0_61] : memref<9x128x128xbf16, #tpu.memory_space<vmem>>, vector<1x128x128xbf16>
    %94 = vector.shape_cast %93 : vector<1x128x128xbf16> to vector<128x128xbf16>
    %cst_62 = arith.constant dense<0.000000e+00> : vector<128x128xf32>
    %95 = tpu.matmul %92, %94, %cst_62 {dimension_numbers = #tpu.dot_dimension_numbers<[1], [0], [0], [1], [0, 0, 1, 1], [], []>} : vector<128x128xbf16>, vector<128x128xbf16>, vector<128x128xf32> -> vector<128x128xf32>
    %96 = arith.addf %90, %95 : vector<128x128xf32>
    %97 = vector.extract_strided_slice %85 {offsets = [0, 2, 0], sizes = [8, 16, 128], strides = [1, 1, 1]} : vector<8x18x128xbf16> to vector<8x16x128xbf16>
    %98 = vector.shape_cast %97 : vector<8x16x128xbf16> to vector<128x128xbf16>
    %c2_63 = arith.constant 2 : index
    %c0_64 = arith.constant 0 : index
    %c0_65 = arith.constant 0 : index
    %99 = vector.load %arg5[%c2_63, %c0_64, %c0_65] : memref<9x128x128xbf16, #tpu.memory_space<vmem>>, vector<1x128x128xbf16>
    %100 = vector.shape_cast %99 : vector<1x128x128xbf16> to vector<128x128xbf16>
    %cst_66 = arith.constant dense<0.000000e+00> : vector<128x128xf32>
    %101 = tpu.matmul %98, %100, %cst_66 {dimension_numbers = #tpu.dot_dimension_numbers<[1], [0], [0], [1], [0, 0, 1, 1], [], []>} : vector<128x128xbf16>, vector<128x128xbf16>, vector<128x128xf32> -> vector<128x128xf32>
    %102 = arith.addf %96, %101 : vector<128x128xf32>
    %c1_67 = arith.constant 1 : index
    %c0_68 = arith.constant 0 : index
    %c0_69 = arith.constant 0 : index
    %103 = vector.load %arg8[%c1_67, %c0_68, %c0_69] : memref<10x18x128xbf16, #tpu.memory_space<vmem>>, vector<8x18x128xbf16>
    %104 = vector.extract_strided_slice %103 {offsets = [0, 0, 0], sizes = [8, 16, 128], strides = [1, 1, 1]} : vector<8x18x128xbf16> to vector<8x16x128xbf16>
    %105 = vector.shape_cast %104 : vector<8x16x128xbf16> to vector<128x128xbf16>
    %c3_70 = arith.constant 3 : index
    %c0_71 = arith.constant 0 : index
    %c0_72 = arith.constant 0 : index
    %106 = vector.load %arg5[%c3_70, %c0_71, %c0_72] : memref<9x128x128xbf16, #tpu.memory_space<vmem>>, vector<1x128x128xbf16>
    %107 = vector.shape_cast %106 : vector<1x128x128xbf16> to vector<128x128xbf16>
    %cst_73 = arith.constant dense<0.000000e+00> : vector<128x128xf32>
    %108 = tpu.matmul %105, %107, %cst_73 {dimension_numbers = #tpu.dot_dimension_numbers<[1], [0], [0], [1], [0, 0, 1, 1], [], []>} : vector<128x128xbf16>, vector<128x128xbf16>, vector<128x128xf32> -> vector<128x128xf32>
    %109 = arith.addf %102, %108 : vector<128x128xf32>
    %110 = vector.extract_strided_slice %103 {offsets = [0, 1, 0], sizes = [8, 16, 128], strides = [1, 1, 1]} : vector<8x18x128xbf16> to vector<8x16x128xbf16>
    %111 = vector.shape_cast %110 : vector<8x16x128xbf16> to vector<128x128xbf16>
    %c4_74 = arith.constant 4 : index
    %c0_75 = arith.constant 0 : index
    %c0_76 = arith.constant 0 : index
    %112 = vector.load %arg5[%c4_74, %c0_75, %c0_76] : memref<9x128x128xbf16, #tpu.memory_space<vmem>>, vector<1x128x128xbf16>
    %113 = vector.shape_cast %112 : vector<1x128x128xbf16> to vector<128x128xbf16>
    %cst_77 = arith.constant dense<0.000000e+00> : vector<128x128xf32>
    %114 = tpu.matmul %111, %113, %cst_77 {dimension_numbers = #tpu.dot_dimension_numbers<[1], [0], [0], [1], [0, 0, 1, 1], [], []>} : vector<128x128xbf16>, vector<128x128xbf16>, vector<128x128xf32> -> vector<128x128xf32>
    %115 = arith.addf %109, %114 : vector<128x128xf32>
    %116 = vector.extract_strided_slice %103 {offsets = [0, 2, 0], sizes = [8, 16, 128], strides = [1, 1, 1]} : vector<8x18x128xbf16> to vector<8x16x128xbf16>
    %117 = vector.shape_cast %116 : vector<8x16x128xbf16> to vector<128x128xbf16>
    %c5_78 = arith.constant 5 : index
    %c0_79 = arith.constant 0 : index
    %c0_80 = arith.constant 0 : index
    %118 = vector.load %arg5[%c5_78, %c0_79, %c0_80] : memref<9x128x128xbf16, #tpu.memory_space<vmem>>, vector<1x128x128xbf16>
    %119 = vector.shape_cast %118 : vector<1x128x128xbf16> to vector<128x128xbf16>
    %cst_81 = arith.constant dense<0.000000e+00> : vector<128x128xf32>
    %120 = tpu.matmul %117, %119, %cst_81 {dimension_numbers = #tpu.dot_dimension_numbers<[1], [0], [0], [1], [0, 0, 1, 1], [], []>} : vector<128x128xbf16>, vector<128x128xbf16>, vector<128x128xf32> -> vector<128x128xf32>
    %121 = arith.addf %115, %120 : vector<128x128xf32>
    %c2_82 = arith.constant 2 : index
    %c0_83 = arith.constant 0 : index
    %c0_84 = arith.constant 0 : index
    %122 = vector.load %arg8[%c2_82, %c0_83, %c0_84] : memref<10x18x128xbf16, #tpu.memory_space<vmem>>, vector<8x18x128xbf16>
    %123 = vector.extract_strided_slice %122 {offsets = [0, 0, 0], sizes = [8, 16, 128], strides = [1, 1, 1]} : vector<8x18x128xbf16> to vector<8x16x128xbf16>
    %124 = vector.shape_cast %123 : vector<8x16x128xbf16> to vector<128x128xbf16>
    %c6_85 = arith.constant 6 : index
    %c0_86 = arith.constant 0 : index
    %c0_87 = arith.constant 0 : index
    %125 = vector.load %arg5[%c6_85, %c0_86, %c0_87] : memref<9x128x128xbf16, #tpu.memory_space<vmem>>, vector<1x128x128xbf16>
    %126 = vector.shape_cast %125 : vector<1x128x128xbf16> to vector<128x128xbf16>
    %cst_88 = arith.constant dense<0.000000e+00> : vector<128x128xf32>
    %127 = tpu.matmul %124, %126, %cst_88 {dimension_numbers = #tpu.dot_dimension_numbers<[1], [0], [0], [1], [0, 0, 1, 1], [], []>} : vector<128x128xbf16>, vector<128x128xbf16>, vector<128x128xf32> -> vector<128x128xf32>
    %128 = arith.addf %121, %127 : vector<128x128xf32>
    %129 = vector.extract_strided_slice %122 {offsets = [0, 1, 0], sizes = [8, 16, 128], strides = [1, 1, 1]} : vector<8x18x128xbf16> to vector<8x16x128xbf16>
    %130 = vector.shape_cast %129 : vector<8x16x128xbf16> to vector<128x128xbf16>
    %c7_89 = arith.constant 7 : index
    %c0_90 = arith.constant 0 : index
    %c0_91 = arith.constant 0 : index
    %131 = vector.load %arg5[%c7_89, %c0_90, %c0_91] : memref<9x128x128xbf16, #tpu.memory_space<vmem>>, vector<1x128x128xbf16>
    %132 = vector.shape_cast %131 : vector<1x128x128xbf16> to vector<128x128xbf16>
    %cst_92 = arith.constant dense<0.000000e+00> : vector<128x128xf32>
    %133 = tpu.matmul %130, %132, %cst_92 {dimension_numbers = #tpu.dot_dimension_numbers<[1], [0], [0], [1], [0, 0, 1, 1], [], []>} : vector<128x128xbf16>, vector<128x128xbf16>, vector<128x128xf32> -> vector<128x128xf32>
    %134 = arith.addf %128, %133 : vector<128x128xf32>
    %135 = vector.extract_strided_slice %122 {offsets = [0, 2, 0], sizes = [8, 16, 128], strides = [1, 1, 1]} : vector<8x18x128xbf16> to vector<8x16x128xbf16>
    %136 = vector.shape_cast %135 : vector<8x16x128xbf16> to vector<128x128xbf16>
    %c8_93 = arith.constant 8 : index
    %c0_94 = arith.constant 0 : index
    %c0_95 = arith.constant 0 : index
    %137 = vector.load %arg5[%c8_93, %c0_94, %c0_95] : memref<9x128x128xbf16, #tpu.memory_space<vmem>>, vector<1x128x128xbf16>
    %138 = vector.shape_cast %137 : vector<1x128x128xbf16> to vector<128x128xbf16>
    %cst_96 = arith.constant dense<0.000000e+00> : vector<128x128xf32>
    %139 = tpu.matmul %136, %138, %cst_96 {dimension_numbers = #tpu.dot_dimension_numbers<[1], [0], [0], [1], [0, 0, 1, 1], [], []>} : vector<128x128xbf16>, vector<128x128xbf16>, vector<128x128xf32> -> vector<128x128xf32>
    %140 = arith.addf %134, %139 : vector<128x128xf32>
    %c0_97 = arith.constant 0 : index
    %c0_98 = arith.constant 0 : index
    %141 = vector.load %arg6[%c0_97, %c0_98] : memref<1x128xf32, #tpu.memory_space<vmem>>, vector<1x128xf32>
    %142 = vector.broadcast %141 : vector<1x128xf32> to vector<128x128xf32>
    %143 = arith.addf %140, %142 : vector<128x128xf32>
    %144 = vector.shape_cast %143 : vector<128x128xf32> to vector<8x16x128xf32>
    %c2_i32_99 = arith.constant 2 : i32
    %145 = arith.addi %1, %c2_i32_99 : i32
    %c0_100 = arith.constant 0 : index
    %146 = arith.index_cast %145 : i32 to index
    %c0_101 = arith.constant 0 : index
    %c0_102 = arith.constant 0 : index
    %147 = vector.load %arg2[%c0_100, %146, %c0_101, %c0_102] : memref<1x20x18x128xbf16, #tpu.memory_space<vmem>>, vector<1x8x18x128xbf16>
    %148 = vector.shape_cast %147 : vector<1x8x18x128xbf16> to vector<8x18x128xbf16>
    %149 = vector.extract_strided_slice %148 {offsets = [0, 1, 0], sizes = [8, 16, 128], strides = [1, 1, 1]} : vector<8x18x128xbf16> to vector<8x16x128xbf16>
    %150 = arith.extf %149 : vector<8x16x128xbf16> to vector<8x16x128xf32>
    %151 = arith.addf %144, %150 : vector<8x16x128xf32>
    %cst_103 = arith.constant 0.000000e+00 : f32
    %152 = vector.broadcast %cst_103 : f32 to vector<8x16x128xf32>
    %153 = arith.maximumf %151, %152 : vector<8x16x128xf32>
    %154 = arith.truncf %153 : vector<8x16x128xf32> to vector<8x16x128xbf16>
    %c0_104 = arith.constant 0 : index
    %c0_105 = arith.constant 0 : index
    %c0_106 = arith.constant 0 : index
    %c0_107 = arith.constant 0 : index
    %155 = vector.load %arg7[%c0_104, %c0_105, %c0_106, %c0_107] : memref<1x8x16x128xbf16, #tpu.memory_space<vmem>>, vector<1x8x16x128xbf16>
    %156 = vector.shape_cast %155 : vector<1x8x16x128xbf16> to vector<8x16x128xbf16>
    %157 = vector.shape_cast %154 : vector<8x16x128xbf16> to vector<1x8x16x128xbf16>
    tpu.vector_store %arg7[%c0_104, %c0_105, %c0_106, %c0_107], %157 {strides = array<i32>} : memref<1x8x16x128xbf16, #tpu.memory_space<vmem>>, vector<1x8x16x128xbf16>,
    return
  }
  func.func @transform_0(%arg0: i32, %arg1: i32) -> (i32, i32, i32, i32) {
    %c0_i32 = arith.constant 0 : i32
    %c0_i32_0 = arith.constant 0 : i32
    %c0_i32_1 = arith.constant 0 : i32
    %c0_i32_2 = arith.constant 0 : i32
    return %arg0, %c0_i32, %c0_i32_0, %c0_i32_1 : i32, i32, i32, i32
  }
  func.func @transform_1(%arg0: i32, %arg1: i32) -> (i32, i32, i32) {
    %c0_i32 = arith.constant 0 : i32
    %c0_i32_0 = arith.constant 0 : i32
    %c0_i32_1 = arith.constant 0 : i32
    %c0_i32_2 = arith.constant 0 : i32
    return %c0_i32, %c0_i32_0, %c0_i32_1 : i32, i32, i32
  }
  func.func @transform_2(%arg0: i32, %arg1: i32) -> (i32, i32) {
    %c0_i32 = arith.constant 0 : i32
    %c0_i32_0 = arith.constant 0 : i32
    %c0_i32_1 = arith.constant 0 : i32
    return %c0_i32, %c0_i32_0 : i32, i32
  }
  func.func @transform_3(%arg0: i32, %arg1: i32) -> (i32, i32, i32) {
    %c0_i32 = arith.constant 0 : i32
    %c0_i32_0 = arith.constant 0 : i32
    %c0_i32_1 = arith.constant 0 : i32
    %c0_i32_2 = arith.constant 0 : i32
    return %c0_i32, %c0_i32_0, %c0_i32_1 : i32, i32, i32
  }
  func.func @transform_4(%arg0: i32, %arg1: i32) -> (i32, i32) {
    %c0_i32 = arith.constant 0 : i32
    %c0_i32_0 = arith.constant 0 : i32
    %c0_i32_1 = arith.constant 0 : i32
    return %c0_i32, %c0_i32_0 : i32, i32
  }
  func.func @transform_5(%arg0: i32, %arg1: i32) -> (i32, i32, i32, i32) {
    %c0_i32 = arith.constant 0 : i32
    %c0_i32_0 = arith.constant 0 : i32
    %c0_i32_1 = arith.constant 0 : i32
    return %arg0, %arg1, %c0_i32, %c0_i32_0 : i32, i32, i32, i32
  }
}

</mosaic_0001>

<llo_original>
// kernel: basic_block_forward.1
$region0: #{basic_block_forward.1}
  #allocation0 [shape = 'u32[]', space=smem, size = 0x4, offset = 0x4, fixed_abs, tag = 'smem constant byte address 0x4 - core index']
  #allocation1 [shape = 'u32[144,128]{1,0:T(1,128)}', space=vmem, size = 0x12000, scoped, tag = 'internal scratch']
  #allocation2 [shape = 'bf16[10,18,128]{2,1,0:T(8,128)(2,1)}', space=vmem, size = 0xf000, scoped, tag = 'scratch operand']
  %s0 = inlined_call_operand.vmem [shape: bf16[2,20,18,128], index: 0, kind: input, shape index: {}]
  %s1 = inlined_call_operand.vmem [shape: bf16[9,128,128], index: 1, kind: input, shape index: {}]
  %s2 = inlined_call_operand.vmem [shape: f32[1,128], index: 2, kind: input, shape index: {}]
  %s3 = inlined_call_operand.vmem [shape: bf16[9,128,128], index: 3, kind: input, shape index: {}]
  %s4 = inlined_call_operand.vmem [shape: f32[1,128], index: 4, kind: input, shape index: {}]
  %s5 = inlined_call_operand.vmem [shape: bf16[2,16,16,128], index: 5, kind: output, shape index: {}]
  %s6 = sld [smem:[#allocation0]]
  $region61: #{basic_block_forward.1} parent=0
    _
  %s8 = ssub.s32 1, %s6
  %s9 = scalar_select 0, %s8, %s6
  loop: start=0, step=1, limit=6
  $region2: #{basic_block_forward.1} parent=0 // loop_pre_header
    _
  $region3: #{basic_block_forward.1} parent=0 // loop_header
    %s11 = sphi 0, %s15
    %p12 = scmp.ge.s32.totalorder %s11, 6
    %s18 = sphi 0, %s30
    %s19 = sphi 0, %s26
    %s20 = sphi 0, %s18
    %s21 = sphi 0, %s19
    %s22 = sphi 0, %s20
    %s23 = sphi 0, %s21
    %s33 = sphi 0, %s35
    %s36 = sphi 0, %s33
    %s37 = sphi 0, %s36
    %s53 = sphi 0, %s37
    %s57 = sphi 0, %s57
    %s59 = sphi 0, %s57
    %s60 = sphi 0, %s59
    %s74 = sphi 0, %s60
    %s78 = sphi 0, %s78
    %s80 = sphi 0, %s78
    %s81 = sphi 0, %s80
    %s95 = sphi 0, %s81
    %s99 = sphi 0, %s99
    %s101 = sphi 0, %s99
    %s102 = sphi 0, %s101
    %s116 = sphi 0, %s102
    %s120 = sphi 0, %s120
    %s122 = sphi 0, %s120
    %s123 = sphi 0, %s122
    %s137 = sphi 0, %s123
    %s145 = sphi 0, %s147
    %s148 = sphi 0, %s145
    %s149 = sphi 0, %s148
    %s165 = sphi 0, %s149
  $region4: #{basic_block_forward.1} parent=0 // loop_header_branch
    %14 = sbr.rel (%p12) target = $region8
  $region5: #{basic_block_forward.1} parent=0 // loop_body
    %s16 = ssub.s32 %s11, 1
    %s17 = ssub.s32 %s11, 2
    %s24 = sadd.s32 1, %s19
    %p25 = scmp.ge.s32.totalorder %s24, 2
    %s26 = scalar_select %p25, 0, %s24
    %s27 = sadd.s32 1, %s18
    %s28 = scalar_select %p25, %s27, %s18
    %p29 = scmp.ge.s32.totalorder %s28, 2
    %s30 = scalar_select %p29, 0, %s28
    %s31 = ssub.s32 %s18, %s30
    %p32 = scmp.eq.s32.totalorder %s31, 0
    %s34 = sadd.s32 %s33, 1
    %s35 = scalar_select %p32, %s33, %s34
    %p38 = pneg %p32
    %p39 = scmp.eq.s32.totalorder %s11, 3
    %p40 = por %p38, %p39
    %p41 = scmp.ne.s32.totalorder %s33, %s36
    %p42 = scmp.eq.s32.totalorder %s11, 0
    %p43 = por %p41, %p42
    %p44 = scmp.ne.s32.totalorder %s33, %s36
    %p45 = scmp.eq.s32.totalorder %s16, 3
    %p46 = por %p44, %p45
    %p47 = scmp.ne.s32.totalorder %s36, %s37
    %p48 = scmp.eq.s32.totalorder %s16, 0
    %p49 = por %p47, %p48
    %p50 = scmp.ne.s32.totalorder %s36, %s37
    %p51 = scmp.eq.s32.totalorder %s17, 3
    %p52 = por %p50, %p51
    %p54 = scmp.ne.s32.totalorder %s37, %s53
    %p55 = scmp.eq.s32.totalorder %s17, 0
    %p56 = por %p54, %p55
    %s58 = sadd.s32 %s57, 1
    %p61 = scmp.eq.s32.totalorder %s11, 3
    %p62 = scmp.ne.s32.totalorder %s57, %s59
    %p63 = scmp.eq.s32.totalorder %s11, 0
    %p64 = por %p62, %p63
    %p65 = scmp.ne.s32.totalorder %s57, %s59
    %p66 = scmp.eq.s32.totalorder %s16, 3
    %p67 = por %p65, %p66
    %p68 = scmp.ne.s32.totalorder %s59, %s60
    %p69 = scmp.eq.s32.totalorder %s16, 0
    %p70 = por %p68, %p69
    %p71 = scmp.ne.s32.totalorder %s59, %s60
    %p72 = scmp.eq.s32.totalorder %s17, 3
    %p73 = por %p71, %p72
    %p75 = scmp.ne.s32.totalorder %s60, %s74
    %p76 = scmp.eq.s32.totalorder %s17, 0
    %p77 = por %p75, %p76
    %s79 = sadd.s32 %s78, 1
    %p82 = scmp.eq.s32.totalorder %s11, 3
    %p83 = scmp.ne.s32.totalorder %s78, %s80
    %p84 = scmp.eq.s32.totalorder %s11, 0
    %p85 = por %p83, %p84
    %p86 = scmp.ne.s32.totalorder %s78, %s80
    %p87 = scmp.eq.s32.totalorder %s16, 3
    %p88 = por %p86, %p87
    %p89 = scmp.ne.s32.totalorder %s80, %s81
    %p90 = scmp.eq.s32.totalorder %s16, 0
    %p91 = por %p89, %p90
    %p92 = scmp.ne.s32.totalorder %s80, %s81
    %p93 = scmp.eq.s32.totalorder %s17, 3
    %p94 = por %p92, %p93
    %p96 = scmp.ne.s32.totalorder %s81, %s95
    %p97 = scmp.eq.s32.totalorder %s17, 0
    %p98 = por %p96, %p97
    %s100 = sadd.s32 %s99, 1
    %p103 = scmp.eq.s32.totalorder %s11, 3
    %p104 = scmp.ne.s32.totalorder %s99, %s101
    %p105 = scmp.eq.s32.totalorder %s11, 0
    %p106 = por %p104, %p105
    %p107 = scmp.ne.s32.totalorder %s99, %s101
    %p108 = scmp.eq.s32.totalorder %s16, 3
    %p109 = por %p107, %p108
    %p110 = scmp.ne.s32.totalorder %s101, %s102
    %p111 = scmp.eq.s32.totalorder %s16, 0
    %p112 = por %p110, %p111
    %p113 = scmp.ne.s32.totalorder %s101, %s102
    %p114 = scmp.eq.s32.totalorder %s17, 3
    %p115 = por %p113, %p114
    %p117 = scmp.ne.s32.totalorder %s102, %s116
    %p118 = scmp.eq.s32.totalorder %s17, 0
    %p119 = por %p117, %p118
    %s121 = sadd.s32 %s120, 1
    %p124 = scmp.eq.s32.totalorder %s11, 3
    %p125 = scmp.ne.s32.totalorder %s120, %s122
    %p126 = scmp.eq.s32.totalorder %s11, 0
    %p127 = por %p125, %p126
    %p128 = scmp.ne.s32.totalorder %s120, %s122
    %p129 = scmp.eq.s32.totalorder %s16, 3
    %p130 = por %p128, %p129
    %p131 = scmp.ne.s32.totalorder %s122, %s123
    %p132 = scmp.eq.s32.totalorder %s16, 0
    %p133 = por %p131, %p132
    %p134 = scmp.ne.s32.totalorder %s122, %s123
    %p135 = scmp.eq.s32.totalorder %s17, 3
    %p136 = por %p134, %p135
    %p138 = scmp.ne.s32.totalorder %s123, %s137
    %p139 = scmp.eq.s32.totalorder %s17, 0
    %p140 = por %p138, %p139
    %s141 = ssub.s32 %s18, %s30
    %s142 = ssub.s32 %s19, %s26
    %s143 = sor.u32 %s141, %s142
    %p144 = scmp.eq.s32.totalorder %s143, 0
    %s146 = sadd.s32 %s145, 1
    %s147 = scalar_select %p144, %s145, %s146
    %p150 = pneg %p144
    %p151 = scmp.eq.s32.totalorder %s11, 3
    %p152 = por %p150, %p151
    %p153 = scmp.ne.s32.totalorder %s145, %s148
    %p154 = scmp.eq.s32.totalorder %s11, 0
    %p155 = por %p153, %p154
    %p156 = scmp.ne.s32.totalorder %s145, %s148
    %p157 = scmp.eq.s32.totalorder %s16, 3
    %p158 = por %p156, %p157
    %p159 = scmp.ne.s32.totalorder %s148, %s149
    %p160 = scmp.eq.s32.totalorder %s16, 0
    %p161 = por %p159, %p160
    %p162 = scmp.ne.s32.totalorder %s148, %s149
    %p163 = scmp.eq.s32.totalorder %s17, 3
    %p164 = por %p162, %p163
    %p166 = scmp.ne.s32.totalorder %s149, %s165
    %p167 = scmp.eq.s32.totalorder %s17, 0
    %p168 = por %p166, %p167
    %p169 = scmp.le.s32.totalorder 1, %s11
    %p170 = scmp.lt.s32.totalorder %s11, 5
    %p171 = pnand %p169, %p170
    %p172 = pneg %p171
    // Predicated region
    $region9: #{basic_block_forward.1} parent=5 // pred_check
      _
    $region10: #{basic_block_forward.1} parent=5 // pred_check_branch
      %174 = sbr.rel (%p171) target = $region12
    $region11: #{basic_block_forward.1} parent=5 // pred_region
      %s175 = ssub.s32 %s11, 1
      // Predicated region
      $region13: #{basic_block_forward.1} parent=11 // pred_check
        %p176 = pneg %p70
      $region14: #{basic_block_forward.1} parent=11 // pred_check_branch
        %178 = sbr.rel (%p176) target = $region16
      $region15: #{basic_block_forward.1} parent=11 // pred_region
        _
      $region16: #{basic_block_forward.1} parent=11 // pred_fallthru
        _
      // Predicated region
      $region17: #{basic_block_forward.1} parent=11 // pred_check
        %p179 = pneg %p91
      $region18: #{basic_block_forward.1} parent=11 // pred_check_branch
        %181 = sbr.rel (%p179) target = $region20
      $region19: #{basic_block_forward.1} parent=11 // pred_region
        _
      $region20: #{basic_block_forward.1} parent=11 // pred_fallthru
        _
      // Predicated region
      $region21: #{basic_block_forward.1} parent=11 // pred_check
        %p182 = pneg %p112
      $region22: #{basic_block_forward.1} parent=11 // pred_check_branch
        %184 = sbr.rel (%p182) target = $region24
      $region23: #{basic_block_forward.1} parent=11 // pred_region
        _
      $region24: #{basic_block_forward.1} parent=11 // pred_fallthru
        _
      // Predicated region
      $region25: #{basic_block_forward.1} parent=11 // pred_check
        %p185 = pneg %p133
      $region26: #{basic_block_forward.1} parent=11 // pred_check_branch
        %187 = sbr.rel (%p185) target = $region28
      $region27: #{basic_block_forward.1} parent=11 // pred_region
        _
      $region28: #{basic_block_forward.1} parent=11 // pred_fallthru
        _
    $region12: #{basic_block_forward.1} parent=5 // pred_fallthru
      _
    %p188 = scmp.lt.s32.totalorder %s11, 4
    // Predicated region
    $region29: #{basic_block_forward.1} parent=5 // pred_check
      %p189 = pneg %p188
    $region30: #{basic_block_forward.1} parent=5 // pred_check_branch
      %191 = sbr.rel (%p189) target = $region32
    $region31: #{basic_block_forward.1} parent=5 // pred_region
      // Predicated region
      $region33: #{basic_block_forward.1} parent=31 // pred_check
        %p192 = pneg %p43
      $region34: #{basic_block_forward.1} parent=31 // pred_check_branch
        %194 = sbr.rel (%p192) target = $region36
      $region35: #{basic_block_forward.1} parent=31 // pred_region
        %p195 = scmp.lt.s32.totalorder %s18, 1
        %s196 = scalar_select %p195, %s18, 1
        %s197 = smul.addr %s196, 60
        %s198 = smul.addr %s197, 4
        %s199 = scalar_lea.vmem %s0, %s198
      $region36: #{basic_block_forward.1} parent=31 // pred_fallthru
        _
    $region32: #{basic_block_forward.1} parent=5 // pred_fallthru
      _
    %p200 = scmp.le.s32.totalorder 1, %s11
    %p201 = scmp.lt.s32.totalorder %s11, 5
    %p202 = pnand %p200, %p201
    %p203 = pneg %p202
    // Predicated region
    $region37: #{basic_block_forward.1} parent=5 // pred_check
      _
    $region38: #{basic_block_forward.1} parent=5 // pred_check_branch
      %205 = sbr.rel (%p202) target = $region40
    $region39: #{basic_block_forward.1} parent=5 // pred_region
      %s206 = ssub.s32 %s11, 1
      %p207 = scmp.lt.s32.totalorder %s20, 1
      %s208 = scalar_select %p207, %s20, 1
      %s209 = smul.addr %s208, 60
      %s210 = smul.addr %s209, 4
      %s211 = scalar_lea.vmem %s0, %s210
      %p212 = pneg %p49
      %p213 = pneg %p46
      %p214 = pneg %p70
      %p215 = pneg %p67
      %p216 = pneg %p91
      %p217 = pneg %p88
      %p218 = pneg %p112
      %p219 = pneg %p109
      %p220 = pneg %p133
      %p221 = pneg %p130
      %p222 = pneg %p161
      %p223 = pneg %p158
      %s224 = smul.u32 8, %s21
      %p225 = scmp.lt.s32.totalorder %s20, 1
      %s226 = scalar_select %p225, %s20, 1
      %p227 = scmp.lt.s32.totalorder %s224, 15
      %s228 = scalar_select %p227, %s224, 15
      %s229 = smul.addr %s228, 2
      %s230 = smul.addr %s226, 32
      %s231 = sadd.s32 %s229, %s230
      %s232 = smul.addr %s231, 4
      %s233 = scalar_lea.vmem %s5, %s232
      %p234 = scmp.lt.s32.totalorder %s20, 1
      %s235 = scalar_select %p234, %s20, 1
      %s236 = smul.addr %s235, 60
      %s237 = smul.addr %s236, 4
      %s238 = scalar_lea.vmem %s0, %s237
      %s239 = smul.u32 8, %s21
      %p240 = scmp.lt.s32.totalorder %s20, 1
      %s241 = scalar_select %p240, %s20, 1
      %p242 = scmp.lt.s32.totalorder %s239, 15
      %s243 = scalar_select %p242, %s239, 15
      %s244 = smul.addr %s243, 2
      %s245 = smul.addr %s241, 32
      %s246 = sadd.s32 %s244, %s245
      %s247 = smul.addr %s246, 4
      %s248 = scalar_lea.vmem %s5, %s247
      %s249 = smul.u32 8, %s21
      %s251 = smul.u32 %s21, 8
      %s252 = smul.u32 %s251, 3
      %s253 = smul.addr %s252, 4
      %s254 = scalar_lea.vmem %s238, %s253
      %v255 = vld [vmem:[%s254] sm:$0xf]
      %v256 = vld [vmem:[%s254 + $0x4] sm:$0xf]
      %v257 = vld [vmem:[%s254 + $0x8] sm:$0x1]
      %v258 = vld [vmem:[%s254 + $0xc] sm:$0xf]
      %v259 = vld [vmem:[%s254 + $0x10] sm:$0xf]
      %v260 = vld [vmem:[%s254 + $0x14] sm:$0x1]
      %v261 = vld [vmem:[%s254 + $0x18] sm:$0xf]
      %v262 = vld [vmem:[%s254 + $0x1c] sm:$0xf]
      %v263 = vld [vmem:[%s254 + $0x20] sm:$0x1]
      %v264 = vld [vmem:[%s254 + $0x24] sm:$0xf]
      %v265 = vld [vmem:[%s254 + $0x28] sm:$0xf]
      %v266 = vld [vmem:[%s254 + $0x2c] sm:$0x1]
      %v267 = vld [vmem:[%s254 + $0x30] sm:$0xf]
      %v268 = vld [vmem:[%s254 + $0x34] sm:$0xf]
      %v269 = vld [vmem:[%s254 + $0x38] sm:$0x1]
      %v270 = vld [vmem:[%s254 + $0x3c] sm:$0xf]
      %v271 = vld [vmem:[%s254 + $0x40] sm:$0xf]
      %v272 = vld [vmem:[%s254 + $0x44] sm:$0x1]
      %v273 = vld [vmem:[%s254 + $0x48] sm:$0xf]
      %v274 = vld [vmem:[%s254 + $0x4c] sm:$0xf]
      %v275 = vld [vmem:[%s254 + $0x50] sm:$0x1]
      %v276 = vld [vmem:[%s254 + $0x54] sm:$0xf]
      %v277 = vld [vmem:[%s254 + $0x58] sm:$0xf]
      %v278 = vld [vmem:[%s254 + $0x5c] sm:$0x1]
      %v279 = vld [vmem:[%s254 + $0x60] sm:$0xf]
      %v280 = vld [vmem:[%s254 + $0x64] sm:$0xf]
      %v281 = vld [vmem:[%s254 + $0x68] sm:$0x1]
      %v282 = vld [vmem:[%s254 + $0x6c] sm:$0xf]
      %v283 = vld [vmem:[%s254 + $0x70] sm:$0xf]
      %v284 = vld [vmem:[%s254 + $0x74] sm:$0x1]
      %v285 = vld [vmem:[%s1] sm:$0xf]
      %v286 = vld [vmem:[%s1 + $0x4] sm:$0xf]
      %v287 = vld [vmem:[%s1 + $0x8] sm:$0xf]
      %v288 = vld [vmem:[%s1 + $0xc] sm:$0xf]
      %v289 = vld [vmem:[%s1 + $0x10] sm:$0xf]
      %v290 = vld [vmem:[%s1 + $0x14] sm:$0xf]
      %v291 = vld [vmem:[%s1 + $0x18] sm:$0xf]
      %v292 = vld [vmem:[%s1 + $0x1c] sm:$0xf]
      %v293 = vld [vmem:[%s1 + $0x20] sm:$0xf]
      %v294 = vld [vmem:[%s1 + $0x24] sm:$0xf]
      %v295 = vld [vmem:[%s1 + $0x28] sm:$0xf]
      %v296 = vld [vmem:[%s1 + $0x2c] sm:$0xf]
      %v297 = vld [vmem:[%s1 + $0x30] sm:$0xf]
      %v298 = vld [vmem:[%s1 + $0x34] sm:$0xf]
      %v299 = vld [vmem:[%s1 + $0x38] sm:$0xf]
      %v300 = vld [vmem:[%s1 + $0x3c] sm:$0xf]
      %vm301 = vsmask.f32 3328
      %vm302 = vsmask.f32 7440
      %vm303 = vmor %vm301, %vm302
      %v305 = vshrl.u32 %v255, 16
      %v307 = vrot.slane %v305, 4
      %v308 = vshll.u32 %v255, 16
      %v310 = vrot.slane %v308, 5
      %v311 = vor.u32 %v307, %v310
      %v312 = vrot.slane %v311, 4
      %v314 = vshll.u32 %v256, 16
      %v316 = vrot.slane %v314, 5
      %v317 = vsel %vm303, %v312, %v316
      %v318 = vshrl.u32 %v256, 16
      %v320 = vrot.slane %v318, 4
      %v321 = vor.u32 %v320, %v316
      %v322 = vrot.slane %v321, 4
      %v324 = vshll.u32 %v257, 16
      %v326 = vrot.slane %v324, 5
      %v327 = vsel %vm303, %v322, %v326
      %v329 = vshrl.u32 %v258, 16
      %v331 = vrot.slane %v329, 4
      %v332 = vshll.u32 %v258, 16
      %v334 = vrot.slane %v332, 5
      %v335 = vor.u32 %v331, %v334
      %v336 = vrot.slane %v335, 4
      %v338 = vshll.u32 %v259, 16
      %v340 = vrot.slane %v338, 5
      %v341 = vsel %vm303, %v336, %v340
      %v342 = vshrl.u32 %v259, 16
      %v344 = vrot.slane %v342, 4
      %v345 = vor.u32 %v344, %v340
      %v346 = vrot.slane %v345, 4
      %v348 = vshll.u32 %v260, 16
      %v350 = vrot.slane %v348, 5
      %v351 = vsel %vm303, %v346, %v350
      %v353 = vshrl.u32 %v261, 16
      %v355 = vrot.slane %v353, 4
      %v356 = vshll.u32 %v261, 16
      %v358 = vrot.slane %v356, 5
      %v359 = vor.u32 %v355, %v358
      %v360 = vrot.slane %v359, 4
      %v362 = vshll.u32 %v262, 16
      %v364 = vrot.slane %v362, 5
      %v365 = vsel %vm303, %v360, %v364
      %v366 = vshrl.u32 %v262, 16
      %v368 = vrot.slane %v366, 4
      %v369 = vor.u32 %v368, %v364
      %v370 = vrot.slane %v369, 4
      %v372 = vshll.u32 %v263, 16
      %v374 = vrot.slane %v372, 5
      %v375 = vsel %vm303, %v370, %v374
      %v377 = vshrl.u32 %v264, 16
      %v379 = vrot.slane %v377, 4
      %v380 = vshll.u32 %v264, 16
      %v382 = vrot.slane %v380, 5
      %v383 = vor.u32 %v379, %v382
      %v384 = vrot.slane %v383, 4
      %v386 = vshll.u32 %v265, 16
      %v388 = vrot.slane %v386, 5
      %v389 = vsel %vm303, %v384, %v388
      %v390 = vshrl.u32 %v265, 16
      %v392 = vrot.slane %v390, 4
      %v393 = vor.u32 %v392, %v388
      %v394 = vrot.slane %v393, 4
      %v396 = vshll.u32 %v266, 16
      %v398 = vrot.slane %v396, 5
      %v399 = vsel %vm303, %v394, %v398
      %v401 = vshrl.u32 %v267, 16
      %v403 = vrot.slane %v401, 4
      %v404 = vshll.u32 %v267, 16
      %v406 = vrot.slane %v404, 5
      %v407 = vor.u32 %v403, %v406
      %v408 = vrot.slane %v407, 4
      %v410 = vshll.u32 %v268, 16
      %v412 = vrot.slane %v410, 5
      %v413 = vsel %vm303, %v408, %v412
      %v414 = vshrl.u32 %v268, 16
      %v416 = vrot.slane %v414, 4
      %v417 = vor.u32 %v416, %v412
      %v418 = vrot.slane %v417, 4
      %v420 = vshll.u32 %v269, 16
      %v422 = vrot.slane %v420, 5
      %v423 = vsel %vm303, %v418, %v422
      %v425 = vshrl.u32 %v270, 16
      %v427 = vrot.slane %v425, 4
      %v428 = vshll.u32 %v270, 16
      %v430 = vrot.slane %v428, 5
      %v431 = vor.u32 %v427, %v430
      %v432 = vrot.slane %v431, 4
      %v434 = vshll.u32 %v271, 16
      %v436 = vrot.slane %v434, 5
      %v437 = vsel %vm303, %v432, %v436
      %v438 = vshrl.u32 %v271, 16
      %v440 = vrot.slane %v438, 4
      %v441 = vor.u32 %v440, %v436
      %v442 = vrot.slane %v441, 4
      %v444 = vshll.u32 %v272, 16
      %v446 = vrot.slane %v444, 5
      %v447 = vsel %vm303, %v442, %v446
      %v449 = vshrl.u32 %v273, 16
      %v451 = vrot.slane %v449, 4
      %v452 = vshll.u32 %v273, 16
      %v454 = vrot.slane %v452, 5
      %v455 = vor.u32 %v451, %v454
      %v456 = vrot.slane %v455, 4
      %v458 = vshll.u32 %v274, 16
      %v460 = vrot.slane %v458, 5
      %v461 = vsel %vm303, %v456, %v460
      %v462 = vshrl.u32 %v274, 16
      %v464 = vrot.slane %v462, 4
      %v465 = vor.u32 %v464, %v460
      %v466 = vrot.slane %v465, 4
      %v468 = vshll.u32 %v275, 16
      %v470 = vrot.slane %v468, 5
      %v471 = vsel %vm303, %v466, %v470
      %v473 = vshrl.u32 %v276, 16
      %v475 = vrot.slane %v473, 4
      %v476 = vshll.u32 %v276, 16
      %v478 = vrot.slane %v476, 5
      %v479 = vor.u32 %v475, %v478
      %v480 = vrot.slane %v479, 4
      %v482 = vshll.u32 %v277, 16
      %v484 = vrot.slane %v482, 5
      %v485 = vsel %vm303, %v480, %v484
      %v486 = vshrl.u32 %v277, 16
      %v488 = vrot.slane %v486, 4
      %v489 = vor.u32 %v488, %v484
      %v490 = vrot.slane %v489, 4
      %v492 = vshll.u32 %v278, 16
      %v494 = vrot.slane %v492, 5
      %v495 = vsel %vm303, %v490, %v494
      %v497 = vshrl.u32 %v279, 16
      %v499 = vrot.slane %v497, 4
      %v500 = vshll.u32 %v279, 16
      %v502 = vrot.slane %v500, 5
      %v503 = vor.u32 %v499, %v502
      %v504 = vrot.slane %v503, 4
      %v506 = vshll.u32 %v280, 16
      %v508 = vrot.slane %v506, 5
      %v509 = vsel %vm303, %v504, %v508
      %v510 = vshrl.u32 %v280, 16
      %v512 = vrot.slane %v510, 4
      %v513 = vor.u32 %v512, %v508
      %v514 = vrot.slane %v513, 4
      %v516 = vshll.u32 %v281, 16
      %v518 = vrot.slane %v516, 5
      %v519 = vsel %vm303, %v514, %v518
      %v521 = vshrl.u32 %v282, 16
      %v523 = vrot.slane %v521, 4
      %v524 = vshll.u32 %v282, 16
      %v526 = vrot.slane %v524, 5
      %v527 = vor.u32 %v523, %v526
      %v528 = vrot.slane %v527, 4
      %v530 = vshll.u32 %v283, 16
      %v532 = vrot.slane %v530, 5
      %v533 = vsel %vm303, %v528, %v532
      %v534 = vshrl.u32 %v283, 16
      %v536 = vrot.slane %v534, 4
      %v537 = vor.u32 %v536, %v532
      %v538 = vrot.slane %v537, 4
      %v540 = vshll.u32 %v284, 16
      %v542 = vrot.slane %v540, 5
      %v543 = vsel %vm303, %v538, %v542
      %s544 = scalar_lea.vmem %s1, 64
      %v545 = vld [vmem:[%s544] sm:$0xf]
      %v546 = vld [vmem:[%s544 + $0x4] sm:$0xf]
      %v547 = vld [vmem:[%s544 + $0x8] sm:$0xf]
      %v548 = vld [vmem:[%s544 + $0xc] sm:$0xf]
      %v549 = vld [vmem:[%s544 + $0x10] sm:$0xf]
      %v550 = vld [vmem:[%s544 + $0x14] sm:$0xf]
      %v551 = vld [vmem:[%s544 + $0x18] sm:$0xf]
      %v552 = vld [vmem:[%s544 + $0x1c] sm:$0xf]
      %v553 = vld [vmem:[%s544 + $0x20] sm:$0xf]
      %v554 = vld [vmem:[%s544 + $0x24] sm:$0xf]
      %v555 = vld [vmem:[%s544 + $0x28] sm:$0xf]
      %v556 = vld [vmem:[%s544 + $0x2c] sm:$0xf]
      %v557 = vld [vmem:[%s544 + $0x30] sm:$0xf]
      %v558 = vld [vmem:[%s544 + $0x34] sm:$0xf]
      %v559 = vld [vmem:[%s544 + $0x38] sm:$0xf]
      %v560 = vld [vmem:[%s544 + $0x3c] sm:$0xf]
      %v561 = vunpack.c.l.b16 %v317
      %v562 = vunpack.c.l.b16 %v327
      %v563 = vunpack.c.l.b16 %v341
      %v564 = vunpack.c.l.b16 %v351
      %v565 = vunpack.c.l.b16 %v365
      %v566 = vunpack.c.l.b16 %v375
      %v567 = vunpack.c.l.b16 %v389
      %v568 = vunpack.c.l.b16 %v399
      %v569 = vunpack.c.l.b16 %v413
      %v570 = vunpack.c.l.b16 %v423
      %v571 = vunpack.c.l.b16 %v437
      %v572 = vunpack.c.l.b16 %v447
      %v573 = vunpack.c.l.b16 %v461
      %v574 = vunpack.c.l.b16 %v471
      %v575 = vunpack.c.l.b16 %v485
      %v576 = vunpack.c.l.b16 %v495
      %v577 = vunpack.c.l.b16 %v509
      %v578 = vunpack.c.l.b16 %v519
      %v579 = vunpack.c.l.b16 %v533
      %v580 = vunpack.c.l.b16 %v543
      %v581 = vpack.c.b16 %v562, %v561
      %v582 = vpack.c.b16 %v564, %v563
      %v583 = vpack.c.b16 %v566, %v565
      %v584 = vpack.c.b16 %v568, %v567
      %v585 = vpack.c.b16 %v570, %v569
      %v586 = vpack.c.b16 %v572, %v571
      %v587 = vpack.c.b16 %v574, %v573
      %v588 = vpack.c.b16 %v576, %v575
      %v589 = vpack.c.b16 %v578, %v577
      %v590 = vpack.c.b16 %v580, %v579
      %v617 = vunpack.c.l.b16 %v545
      %v618 = vunpack.c.l.b16 %v546
      %v619 = vunpack.c.l.b16 %v547
      %v620 = vunpack.c.l.b16 %v548
      %v621 = vunpack.c.l.b16 %v549
      %v622 = vunpack.c.l.b16 %v550
      %v623 = vunpack.c.l.b16 %v551
      %v624 = vunpack.c.l.b16 %v552
      %v625 = vunpack.c.l.b16 %v553
      %v626 = vunpack.c.l.b16 %v554
      %v627 = vunpack.c.l.b16 %v555
      %v628 = vunpack.c.l.b16 %v556
      %v629 = vunpack.c.l.b16 %v557
      %v630 = vunpack.c.l.b16 %v558
      %v631 = vunpack.c.l.b16 %v559
      %v632 = vunpack.c.l.b16 %v560
      %v633 = vpack.c.b16 %v618, %v617
      %v634 = vpack.c.b16 %v620, %v619
      %v635 = vpack.c.b16 %v622, %v621
      %v636 = vpack.c.b16 %v624, %v623
      %v637 = vpack.c.b16 %v626, %v625
      %v638 = vpack.c.b16 %v628, %v627
      %v639 = vpack.c.b16 %v630, %v629
      %v640 = vpack.c.b16 %v632, %v631
      %649 = vmatprep.subr.bf16.mxu0 0
      %650 = vmatpush1.bf16.msra.mxu0 %v633
      %651 = vmatprep.subr.bf16.mxu0 0
      %652 = vmatpush1.bf16.msra.mxu0 %v634
      %653 = vmatprep.subr.bf16.mxu0 0
      %654 = vmatpush1.bf16.msra.mxu0 %v635
      %655 = vmatprep.subr.bf16.mxu0 0
      %656 = vmatpush1.bf16.msra.mxu0 %v636
      %657 = vmatprep.subr.bf16.mxu0 0
      %658 = vmatpush1.bf16.msra.mxu0 %v637
      %659 = vmatprep.subr.bf16.mxu0 0
      %660 = vmatpush1.bf16.msra.mxu0 %v638
      %661 = vmatprep.subr.bf16.mxu0 0
      %662 = vmatpush1.bf16.msra.mxu0 %v639
      %663 = vmatprep.subr.bf16.mxu0 0
      %664 = vmatpush1.bf16.msra.mxu0 %v640
      %665 = vmatprep.subr.bf16.mxu0 0
      %666 = vmatpush1.bf16.msra.mxu0 0
      %667 = vmatprep.subr.bf16.mxu0 0
      %668 = vmatpush1.bf16.msra.mxu0 0
      %669 = vmatprep.subr.bf16.mxu0 0
      %670 = vmatpush1.bf16.msra.mxu0 0
      %671 = vmatprep.subr.bf16.mxu0 0
      %672 = vmatpush1.bf16.msra.mxu0 0
      %673 = vmatprep.subr.bf16.mxu0 0
      %674 = vmatpush1.bf16.msra.mxu0 0
      %675 = vmatprep.subr.bf16.mxu0 0
      %676 = vmatpush1.bf16.msra.mxu0 0
      %677 = vmatprep.subr.bf16.mxu0 0
      %678 = vmatpush1.bf16.msra.mxu0 0
      %679 = vmatprep.subr.bf16.mxu0 0
      %680 = vmatpush1.bf16.msra.mxu0 0
      %681 = vmatprep.mubr.bf16.mxu0 0
      %682 = vmatmul.mubr.bf16.gmra.mrb[0].mxu0 %v581
      %v683 = vpop.f32.mrb[0].mxu0
      %v684 = vadd.f32 0.0, %v683
      %v685 = vpop.f32.mrb[0].mxu0
      %v686 = vpop.f32.mrb[0].mxu0
      %v687 = vadd.f32 0.0, %v686
      %v688 = vpop.f32.mrb[0].mxu0
      %689 = vmatprep.mubr.bf16.mxu0 0
      %690 = vmatmul.mubr.bf16.gmra.mrb[0].mxu0 %v582
      %v691 = vpop.f32.mrb[0].mxu0
      %v692 = vadd.f32 0.0, %v691
      %v693 = vpop.f32.mrb[0].mxu0
      %v694 = vpop.f32.mrb[0].mxu0
      %v695 = vadd.f32 0.0, %v694
      %v696 = vpop.f32.mrb[0].mxu0
      %697 = vmatprep.mubr.bf16.mxu0 0
      %698 = vmatmul.mubr.bf16.gmra.mrb[0].mxu0 %v583
      %v699 = vpop.f32.mrb[0].mxu0
      %v700 = vadd.f32 0.0, %v699
      %v701 = vpop.f32.mrb[0].mxu0
      %v702 = vpop.f32.mrb[0].mxu0
      %v703 = vadd.f32 0.0, %v702
      %v704 = vpop.f32.mrb[0].mxu0
      %705 = vmatprep.mubr.bf16.mxu0 0
      %706 = vmatmul.mubr.bf16.gmra.mrb[0].mxu0 %v584
      %v707 = vpop.f32.mrb[0].mxu0
      %v708 = vadd.f32 0.0, %v707
      %v709 = vpop.f32.mrb[0].mxu0
      %v710 = vpop.f32.mrb[0].mxu0
      %v711 = vadd.f32 0.0, %v710
      %v712 = vpop.f32.mrb[0].mxu0
      %713 = vmatprep.mubr.bf16.mxu0 0
      %714 = vmatmul.mubr.bf16.gmra.mrb[0].mxu0 %v585
      %v715 = vpop.f32.mrb[0].mxu0
      %v716 = vadd.f32 0.0, %v715
      %v717 = vpop.f32.mrb[0].mxu0
      %v718 = vpop.f32.mrb[0].mxu0
      %v719 = vadd.f32 0.0, %v718
      %v720 = vpop.f32.mrb[0].mxu0
      %721 = vmatprep.mubr.bf16.mxu0 0
      %722 = vmatmul.mubr.bf16.gmra.mrb[0].mxu0 %v586
      %v723 = vpop.f32.mrb[0].mxu0
      %v724 = vadd.f32 0.0, %v723
      %v725 = vpop.f32.mrb[0].mxu0
      %v726 = vpop.f32.mrb[0].mxu0
      %v727 = vadd.f32 0.0, %v726
      %v728 = vpop.f32.mrb[0].mxu0
      %729 = vmatprep.mubr.bf16.mxu0 0
      %730 = vmatmul.mubr.bf16.gmra.mrb[0].mxu0 %v587
      %v731 = vpop.f32.mrb[0].mxu0
      %v732 = vadd.f32 0.0, %v731
      %v733 = vpop.f32.mrb[0].mxu0
      %v734 = vpop.f32.mrb[0].mxu0
      %v735 = vadd.f32 0.0, %v734
      %v736 = vpop.f32.mrb[0].mxu0
      %737 = vmatprep.mubr.bf16.mxu0 0
      %738 = vmatmul.mubr.bf16.gmra.mrb[0].mxu0 %v588
      %v739 = vpop.f32.mrb[0].mxu0
      %v740 = vadd.f32 0.0, %v739
      %v741 = vpop.f32.mrb[0].mxu0
      %v742 = vpop.f32.mrb[0].mxu0
      %v743 = vadd.f32 0.0, %v742
      %v744 = vpop.f32.mrb[0].mxu0
      %745 = vmatprep.mubr.bf16.mxu0 0
      %746 = vmatmul.mubr.bf16.gmra.mrb[0].mxu0 %v589
      %v747 = vpop.f32.mrb[0].mxu0
      %v748 = vadd.f32 0.0, %v747
      %v749 = vpop.f32.mrb[0].mxu0
      %v750 = vpop.f32.mrb[0].mxu0
      %v751 = vadd.f32 0.0, %v750
      %v752 = vpop.f32.mrb[0].mxu0
      %753 = vmatprep.mubr.bf16.mxu0 0
      %754 = vmatmul.mubr.bf16.gmra.mrb[0].mxu0 %v590
      %v755 = vpop.f32.mrb[0].mxu0
      %v756 = vadd.f32 0.0, %v755
      %v757 = vpop.f32.mrb[0].mxu0
      %v758 = vpop.f32.mrb[0].mxu0
      %v759 = vadd.f32 0.0, %v758
      %v760 = vpop.f32.mrb[0].mxu0
      %761 = vdwg.mxu0
      %v782 = vunpack.c.l.b16 %v255
      %v783 = vunpack.c.l.b16 %v256
      %v784 = vunpack.c.l.b16 %v258
      %v785 = vunpack.c.l.b16 %v259
      %v786 = vunpack.c.l.b16 %v261
      %v787 = vunpack.c.l.b16 %v262
      %v788 = vunpack.c.l.b16 %v264
      %v789 = vunpack.c.l.b16 %v265
      %v790 = vunpack.c.l.b16 %v267
      %v791 = vunpack.c.l.b16 %v268
      %v792 = vunpack.c.l.b16 %v270
      %v793 = vunpack.c.l.b16 %v271
      %v794 = vunpack.c.l.b16 %v273
      %v795 = vunpack.c.l.b16 %v274
      %v796 = vunpack.c.l.b16 %v276
      %v797 = vunpack.c.l.b16 %v277
      %v798 = vunpack.c.l.b16 %v279
      %v799 = vunpack.c.l.b16 %v280
      %v800 = vunpack.c.l.b16 %v282
      %v801 = vunpack.c.l.b16 %v283
      %v802 = vpack.c.b16 %v783, %v782
      %v803 = vpack.c.b16 %v785, %v784
      %v804 = vpack.c.b16 %v787, %v786
      %v805 = vpack.c.b16 %v789, %v788
      %v806 = vpack.c.b16 %v791, %v790
      %v807 = vpack.c.b16 %v793, %v792
      %v808 = vpack.c.b16 %v795, %v794
      %v809 = vpack.c.b16 %v797, %v796
      %v810 = vpack.c.b16 %v799, %v798
      %v811 = vpack.c.b16 %v801, %v800
      %v838 = vunpack.c.l.b16 %v285
      %v839 = vunpack.c.l.b16 %v286
      %v840 = vunpack.c.l.b16 %v287
      %v841 = vunpack.c.l.b16 %v288
      %v842 = vunpack.c.l.b16 %v289
      %v843 = vunpack.c.l.b16 %v290
      %v844 = vunpack.c.l.b16 %v291
      %v845 = vunpack.c.l.b16 %v292
      %v846 = vunpack.c.l.b16 %v293
      %v847 = vunpack.c.l.b16 %v294
      %v848 = vunpack.c.l.b16 %v295
      %v849 = vunpack.c.l.b16 %v296
      %v850 = vunpack.c.l.b16 %v297
      %v851 = vunpack.c.l.b16 %v298
      %v852 = vunpack.c.l.b16 %v299
      %v853 = vunpack.c.l.b16 %v300
      %v854 = vpack.c.b16 %v839, %v838
      %v855 = vpack.c.b16 %v841, %v840
      %v856 = vpack.c.b16 %v843, %v842
      %v857 = vpack.c.b16 %v845, %v844
      %v858 = vpack.c.b16 %v847, %v846
      %v859 = vpack.c.b16 %v849, %v848
      %v860 = vpack.c.b16 %v851, %v850
      %v861 = vpack.c.b16 %v853, %v852
      %870 = vmatprep.subr.bf16.mxu0 0
      %871 = vmatpush1.bf16.msra.mxu0 %v854
      %872 = vmatprep.subr.bf16.mxu0 0
      %873 = vmatpush1.bf16.msra.mxu0 %v855
      %874 = vmatprep.subr.bf16.mxu0 0
      %875 = vmatpush1.bf16.msra.mxu0 %v856
      %876 = vmatprep.subr.bf16.mxu0 0
      %877 = vmatpush1.bf16.msra.mxu0 %v857
      %878 = vmatprep.subr.bf16.mxu0 0
      %879 = vmatpush1.bf16.msra.mxu0 %v858
      %880 = vmatprep.subr.bf16.mxu0 0
      %881 = vmatpush1.bf16.msra.mxu0 %v859
      %882 = vmatprep.subr.bf16.mxu0 0
      %883 = vmatpush1.bf16.msra.mxu0 %v860
      %884 = vmatprep.subr.bf16.mxu0 0
      %885 = vmatpush1.bf16.msra.mxu0 %v861
      %886 = vmatprep.subr.bf16.mxu0 0
      %887 = vmatpush1.bf16.msra.mxu0 0
      %888 = vmatprep.subr.bf16.mxu0 0
      %889 = vmatpush1.bf16.msra.mxu0 0
      %890 = vmatprep.subr.bf16.mxu0 0
      %891 = vmatpush1.bf16.msra.mxu0 0
      %892 = vmatprep.subr.bf16.mxu0 0
      %893 = vmatpush1.bf16.msra.mxu0 0
      %894 = vmatprep.subr.bf16.mxu0 0
      %895 = vmatpush1.bf16.msra.mxu0 0
      %896 = vmatprep.subr.bf16.mxu0 0
      %897 = vmatpush1.bf16.msra.mxu0 0
      %898 = vmatprep.subr.bf16.mxu0 0
      %899 = vmatpush1.bf16.msra.mxu0 0
      %900 = vmatprep.subr.bf16.mxu0 0
      %901 = vmatpush1.bf16.msra.mxu0 0
      %902 = vmatprep.mubr.bf16.mxu0 0
      %903 = vmatmul.mubr.bf16.gmra.mrb[0].mxu0 %v802
      %v904 = vpop.f32.mrb[0].mxu0
      %v905 = vadd.f32 %v684, %v904
      %v906 = vpop.f32.mrb[0].mxu0
      %v907 = vpop.f32.mrb[0].mxu0
      %v908 = vadd.f32 %v687, %v907
      %v909 = vpop.f32.mrb[0].mxu0
      %910 = vmatprep.mubr.bf16.mxu0 0
      %911 = vmatmul.mubr.bf16.gmra.mrb[0].mxu0 %v803
      %v912 = vpop.f32.mrb[0].mxu0
      %v913 = vadd.f32 %v692, %v912
      %v914 = vpop.f32.mrb[0].mxu0
      %v915 = vpop.f32.mrb[0].mxu0
      %v916 = vadd.f32 %v695, %v915
      %v917 = vpop.f32.mrb[0].mxu0
      %918 = vmatprep.mubr.bf16.mxu0 0
      %919 = vmatmul.mubr.bf16.gmra.mrb[0].mxu0 %v804
      %v920 = vpop.f32.mrb[0].mxu0
      %v921 = vadd.f32 %v700, %v920
      %v922 = vpop.f32.mrb[0].mxu0
      %v923 = vpop.f32.mrb[0].mxu0
      %v924 = vadd.f32 %v703, %v923
      %v925 = vpop.f32.mrb[0].mxu0
      %926 = vmatprep.mubr.bf16.mxu0 0
      %927 = vmatmul.mubr.bf16.gmra.mrb[0].mxu0 %v805
      %v928 = vpop.f32.mrb[0].mxu0
      %v929 = vadd.f32 %v708, %v928
      %v930 = vpop.f32.mrb[0].mxu0
      %v931 = vpop.f32.mrb[0].mxu0
      %v932 = vadd.f32 %v711, %v931
      %v933 = vpop.f32.mrb[0].mxu0
      %934 = vmatprep.mubr.bf16.mxu0 0
      %935 = vmatmul.mubr.bf16.gmra.mrb[0].mxu0 %v806
      %v936 = vpop.f32.mrb[0].mxu0
      %v937 = vadd.f32 %v716, %v936
      %v938 = vpop.f32.mrb[0].mxu0
      %v939 = vpop.f32.mrb[0].mxu0
      %v940 = vadd.f32 %v719, %v939
      %v941 = vpop.f32.mrb[0].mxu0
      %942 = vmatprep.mubr.bf16.mxu0 0
      %943 = vmatmul.mubr.bf16.gmra.mrb[0].mxu0 %v807
      %v944 = vpop.f32.mrb[0].mxu0
      %v945 = vadd.f32 %v724, %v944
      %v946 = vpop.f32.mrb[0].mxu0
      %v947 = vpop.f32.mrb[0].mxu0
      %v948 = vadd.f32 %v727, %v947
      %v949 = vpop.f32.mrb[0].mxu0
      %950 = vmatprep.mubr.bf16.mxu0 0
      %951 = vmatmul.mubr.bf16.gmra.mrb[0].mxu0 %v808
      %v952 = vpop.f32.mrb[0].mxu0
      %v953 = vadd.f32 %v732, %v952
      %v954 = vpop.f32.mrb[0].mxu0
      %v955 = vpop.f32.mrb[0].mxu0
      %v956 = vadd.f32 %v735, %v955
      %v957 = vpop.f32.mrb[0].mxu0
      %958 = vmatprep.mubr.bf16.mxu0 0
      %959 = vmatmul.mubr.bf16.gmra.mrb[0].mxu0 %v809
      %v960 = vpop.f32.mrb[0].mxu0
      %v961 = vadd.f32 %v740, %v960
      %v962 = vpop.f32.mrb[0].mxu0
      %v963 = vpop.f32.mrb[0].mxu0
      %v964 = vadd.f32 %v743, %v963
      %v965 = vpop.f32.mrb[0].mxu0
      %966 = vmatprep.mubr.bf16.mxu0 0
      %967 = vmatmul.mubr.bf16.gmra.mrb[0].mxu0 %v810
      %v968 = vpop.f32.mrb[0].mxu0
      %v969 = vadd.f32 %v748, %v968
      %v970 = vpop.f32.mrb[0].mxu0
      %v971 = vpop.f32.mrb[0].mxu0
      %v972 = vadd.f32 %v751, %v971
      %v973 = vpop.f32.mrb[0].mxu0
      %974 = vmatprep.mubr.bf16.mxu0 0
      %975 = vmatmul.mubr.bf16.gmra.mrb[0].mxu0 %v811
      %v976 = vpop.f32.mrb[0].mxu0
      %v977 = vadd.f32 %v756, %v976
      %v978 = vpop.f32.mrb[0].mxu0
      %v979 = vpop.f32.mrb[0].mxu0
      %v980 = vadd.f32 %v759, %v979
      %v981 = vpop.f32.mrb[0].mxu0
      %982 = vdwg.mxu0
      %vm993 = vcmask 1042432
      %vm994 = vcmask 1046532
      %vm995 = vmor %vm993, %vm994
      %v996 = vrot.slane %v255, 5
      %v997 = vrot.slane %v996, 4
      %v998 = vrot.slane %v256, 5
      %v999 = vsel %vm995, %v997, %v998
      %v1000 = vrot.slane %v998, 4
      %v1001 = vrot.slane %v257, 5
      %v1002 = vsel %vm995, %v1000, %v1001
      %v1003 = vrot.slane %v258, 5
      %v1004 = vrot.slane %v1003, 4
      %v1005 = vrot.slane %v259, 5
      %v1006 = vsel %vm995, %v1004, %v1005
      %v1007 = vrot.slane %v1005, 4
      %v1008 = vrot.slane %v260, 5
      %v1009 = vsel %vm995, %v1007, %v1008
      %v1010 = vrot.slane %v261, 5
      %v1011 = vrot.slane %v1010, 4
      %v1012 = vrot.slane %v262, 5
      %v1013 = vsel %vm995, %v1011, %v1012
      %v1014 = vrot.slane %v1012, 4
      %v1015 = vrot.slane %v263, 5
      %v1016 = vsel %vm995, %v1014, %v1015
      %v1017 = vrot.slane %v264, 5
      %v1018 = vrot.slane %v1017, 4
      %v1019 = vrot.slane %v265, 5
      %v1020 = vsel %vm995, %v1018, %v1019
      %v1021 = vrot.slane %v1019, 4
      %v1022 = vrot.slane %v266, 5
      %v1023 = vsel %vm995, %v1021, %v1022
      %v1024 = vrot.slane %v267, 5
      %v1025 = vrot.slane %v1024, 4
      %v1026 = vrot.slane %v268, 5
      %v1027 = vsel %vm995, %v1025, %v1026
      %v1028 = vrot.slane %v1026, 4
      %v1029 = vrot.slane %v269, 5
      %v1030 = vsel %vm995, %v1028, %v1029
      %v1031 = vrot.slane %v270, 5
      %v1032 = vrot.slane %v1031, 4
      %v1033 = vrot.slane %v271, 5
      %v1034 = vsel %vm995, %v1032, %v1033
      %v1035 = vrot.slane %v1033, 4
      %v1036 = vrot.slane %v272, 5
      %v1037 = vsel %vm995, %v1035, %v1036
      %v1038 = vrot.slane %v273, 5
      %v1039 = vrot.slane %v1038, 4
      %v1040 = vrot.slane %v274, 5
      %v1041 = vsel %vm995, %v1039, %v1040
      %v1042 = vrot.slane %v1040, 4
      %v1043 = vrot.slane %v275, 5
      %v1044 = vsel %vm995, %v1042, %v1043
      %v1045 = vrot.slane %v276, 5
      %v1046 = vrot.slane %v1045, 4
      %v1047 = vrot.slane %v277, 5
      %v1048 = vsel %vm995, %v1046, %v1047
      %v1049 = vrot.slane %v1047, 4
      %v1050 = vrot.slane %v278, 5
      %v1051 = vsel %vm995, %v1049, %v1050
      %v1052 = vrot.slane %v279, 5
      %v1053 = vrot.slane %v1052, 4
      %v1054 = vrot.slane %v280, 5
      %v1055 = vsel %vm995, %v1053, %v1054
      %v1056 = vrot.slane %v1054, 4
      %v1057 = vrot.slane %v281, 5
      %v1058 = vsel %vm995, %v1056, %v1057
      %v1059 = vrot.slane %v282, 5
      %v1060 = vrot.slane %v1059, 4
      %v1061 = vrot.slane %v283, 5
      %v1062 = vsel %vm995, %v1060, %v1061
      %v1063 = vrot.slane %v1061, 4
      %v1064 = vrot.slane %v284, 5
      %v1065 = vsel %vm995, %v1063, %v1064
      %s1066 = scalar_lea.vmem %s1, 128
      %v1067 = vld [vmem:[%s1066] sm:$0xf]
      %v1068 = vld [vmem:[%s1066 + $0x4] sm:$0xf]
      %v1069 = vld [vmem:[%s1066 + $0x8] sm:$0xf]
      %v1070 = vld [vmem:[%s1066 + $0xc] sm:$0xf]
      %v1071 = vld [vmem:[%s1066 + $0x10] sm:$0xf]
      %v1072 = vld [vmem:[%s1066 + $0x14] sm:$0xf]
      %v1073 = vld [vmem:[%s1066 + $0x18] sm:$0xf]
      %v1074 = vld [vmem:[%s1066 + $0x1c] sm:$0xf]
      %v1075 = vld [vmem:[%s1066 + $0x20] sm:$0xf]
      %v1076 = vld [vmem:[%s1066 + $0x24] sm:$0xf]
      %v1077 = vld [vmem:[%s1066 + $0x28] sm:$0xf]
      %v1078 = vld [vmem:[%s1066 + $0x2c] sm:$0xf]
      %v1079 = vld [vmem:[%s1066 + $0x30] sm:$0xf]
      %v1080 = vld [vmem:[%s1066 + $0x34] sm:$0xf]
      %v1081 = vld [vmem:[%s1066 + $0x38] sm:$0xf]
      %v1082 = vld [vmem:[%s1066 + $0x3c] sm:$0xf]
      %v1083 = vunpack.c.l.b16 %v999
      %v1084 = vunpack.c.l.b16 %v1002
      %v1085 = vunpack.c.l.b16 %v1006
      %v1086 = vunpack.c.l.b16 %v1009
      %v1087 = vunpack.c.l.b16 %v1013
      %v1088 = vunpack.c.l.b16 %v1016
      %v1089 = vunpack.c.l.b16 %v1020
      %v1090 = vunpack.c.l.b16 %v1023
      %v1091 = vunpack.c.l.b16 %v1027
      %v1092 = vunpack.c.l.b16 %v1030
      %v1093 = vunpack.c.l.b16 %v1034
      %v1094 = vunpack.c.l.b16 %v1037
      %v1095 = vunpack.c.l.b16 %v1041
      %v1096 = vunpack.c.l.b16 %v1044
      %v1097 = vunpack.c.l.b16 %v1048
      %v1098 = vunpack.c.l.b16 %v1051
      %v1099 = vunpack.c.l.b16 %v1055
      %v1100 = vunpack.c.l.b16 %v1058
      %v1101 = vunpack.c.l.b16 %v1062
      %v1102 = vunpack.c.l.b16 %v1065
      %v1103 = vpack.c.b16 %v1084, %v1083
      %v1104 = vpack.c.b16 %v1086, %v1085
      %v1105 = vpack.c.b16 %v1088, %v1087
      %v1106 = vpack.c.b16 %v1090, %v1089
      %v1107 = vpack.c.b16 %v1092, %v1091
      %v1108 = vpack.c.b16 %v1094, %v1093
      %v1109 = vpack.c.b16 %v1096, %v1095
      %v1110 = vpack.c.b16 %v1098, %v1097
      %v1111 = vpack.c.b16 %v1100, %v1099
      %v1112 = vpack.c.b16 %v1102, %v1101
      %v1139 = vunpack.c.l.b16 %v1067
      %v1140 = vunpack.c.l.b16 %v1068
      %v1141 = vunpack.c.l.b16 %v1069
      %v1142 = vunpack.c.l.b16 %v1070
      %v1143 = vunpack.c.l.b16 %v1071
      %v1144 = vunpack.c.l.b16 %v1072
      %v1145 = vunpack.c.l.b16 %v1073
      %v1146 = vunpack.c.l.b16 %v1074
      %v1147 = vunpack.c.l.b16 %v1075
      %v1148 = vunpack.c.l.b16 %v1076
      %v1149 = vunpack.c.l.b16 %v1077
      %v1150 = vunpack.c.l.b16 %v1078
      %v1151 = vunpack.c.l.b16 %v1079
      %v1152 = vunpack.c.l.b16 %v1080
      %v1153 = vunpack.c.l.b16 %v1081
      %v1154 = vunpack.c.l.b16 %v1082
      %v1155 = vpack.c.b16 %v1140, %v1139
      %v1156 = vpack.c.b16 %v1142, %v1141
      %v1157 = vpack.c.b16 %v1144, %v1143
      %v1158 = vpack.c.b16 %v1146, %v1145
      %v1159 = vpack.c.b16 %v1148, %v1147
      %v1160 = vpack.c.b16 %v1150, %v1149
      %v1161 = vpack.c.b16 %v1152, %v1151
      %v1162 = vpack.c.b16 %v1154, %v1153
      %1171 = vmatprep.subr.bf16.mxu0 0
      %1172 = vmatpush1.bf16.msra.mxu0 %v1155
      %1173 = vmatprep.subr.bf16.mxu0 0
      %1174 = vmatpush1.bf16.msra.mxu0 %v1156
      %1175 = vmatprep.subr.bf16.mxu0 0
      %1176 = vmatpush1.bf16.msra.mxu0 %v1157
      %1177 = vmatprep.subr.bf16.mxu0 0
      %1178 = vmatpush1.bf16.msra.mxu0 %v1158
      %1179 = vmatprep.subr.bf16.mxu0 0
      %1180 = vmatpush1.bf16.msra.mxu0 %v1159
      %1181 = vmatprep.subr.bf16.mxu0 0
      %1182 = vmatpush1.bf16.msra.mxu0 %v1160
      %1183 = vmatprep.subr.bf16.mxu0 0
      %1184 = vmatpush1.bf16.msra.mxu0 %v1161
      %1185 = vmatprep.subr.bf16.mxu0 0
      %1186 = vmatpush1.bf16.msra.mxu0 %v1162
      %1187 = vmatprep.subr.bf16.mxu0 0
      %1188 = vmatpush1.bf16.msra.mxu0 0
      %1189 = vmatprep.subr.bf16.mxu0 0
      %1190 = vmatpush1.bf16.msra.mxu0 0
      %1191 = vmatprep.subr.bf16.mxu0 0
      %1192 = vmatpush1.bf16.msra.mxu0 0
      %1193 = vmatprep.subr.bf16.mxu0 0
      %1194 = vmatpush1.bf16.msra.mxu0 0
      %1195 = vmatprep.subr.bf16.mxu0 0
      %1196 = vmatpush1.bf16.msra.mxu0 0
      %1197 = vmatprep.subr.bf16.mxu0 0
      %1198 = vmatpush1.bf16.msra.mxu0 0
      %1199 = vmatprep.subr.bf16.mxu0 0
      %1200 = vmatpush1.bf16.msra.mxu0 0
      %1201 = vmatprep.subr.bf16.mxu0 0
      %1202 = vmatpush1.bf16.msra.mxu0 0
      %1203 = vmatprep.mubr.bf16.mxu0 0
      %1204 = vmatmul.mubr.bf16.gmra.mrb[0].mxu0 %v1103
      %v1205 = vpop.f32.mrb[0].mxu0
      %v1206 = vadd.f32 0.0, %v1205
      %v1207 = vpop.f32.mrb[0].mxu0
      %v1208 = vpop.f32.mrb[0].mxu0
      %v1209 = vadd.f32 0.0, %v1208
      %v1210 = vpop.f32.mrb[0].mxu0
      %1211 = vmatprep.mubr.bf16.mxu0 0
      %1212 = vmatmul.mubr.bf16.gmra.mrb[0].mxu0 %v1104
      %v1213 = vpop.f32.mrb[0].mxu0
      %v1214 = vadd.f32 0.0, %v1213
      %v1215 = vpop.f32.mrb[0].mxu0
      %v1216 = vpop.f32.mrb[0].mxu0
      %v1217 = vadd.f32 0.0, %v1216
      %v1218 = vpop.f32.mrb[0].mxu0
      %1219 = vmatprep.mubr.bf16.mxu0 0
      %1220 = vmatmul.mubr.bf16.gmra.mrb[0].mxu0 %v1105
      %v1221 = vpop.f32.mrb[0].mxu0
      %v1222 = vadd.f32 0.0, %v1221
      %v1223 = vpop.f32.mrb[0].mxu0
      %v1224 = vpop.f32.mrb[0].mxu0
      %v1225 = vadd.f32 0.0, %v1224
      %v1226 = vpop.f32.mrb[0].mxu0
      %1227 = vmatprep.mubr.bf16.mxu0 0
      %1228 = vmatmul.mubr.bf16.gmra.mrb[0].mxu0 %v1106
      %v1229 = vpop.f32.mrb[0].mxu0
      %v1230 = vadd.f32 0.0, %v1229
      %v1231 = vpop.f32.mrb[0].mxu0
      %v1232 = vpop.f32.mrb[0].mxu0
      %v1233 = vadd.f32 0.0, %v1232
      %v1234 = vpop.f32.mrb[0].mxu0
      %1235 = vmatprep.mubr.bf16.mxu0 0
      %1236 = vmatmul.mubr.bf16.gmra.mrb[0].mxu0 %v1107
      %v1237 = vpop.f32.mrb[0].mxu0
      %v1238 = vadd.f32 0.0, %v1237
      %v1239 = vpop.f32.mrb[0].mxu0
      %v1240 = vpop.f32.mrb[0].mxu0
      %v1241 = vadd.f32 0.0, %v1240
      %v1242 = vpop.f32.mrb[0].mxu0
      %1243 = vmatprep.mubr.bf16.mxu0 0
      %1244 = vmatmul.mubr.bf16.gmra.mrb[0].mxu0 %v1108
      %v1245 = vpop.f32.mrb[0].mxu0
      %v1246 = vadd.f32 0.0, %v1245
      %v1247 = vpop.f32.mrb[0].mxu0
      %v1248 = vpop.f32.mrb[0].mxu0
      %v1249 = vadd.f32 0.0, %v1248
      %v1250 = vpop.f32.mrb[0].mxu0
      %1251 = vmatprep.mubr.bf16.mxu0 0
      %1252 = vmatmul.mubr.bf16.gmra.mrb[0].mxu0 %v1109
      %v1253 = vpop.f32.mrb[0].mxu0
      %v1254 = vadd.f32 0.0, %v1253
      %v1255 = vpop.f32.mrb[0].mxu0
      %v1256 = vpop.f32.mrb[0].mxu0
      %v1257 = vadd.f32 0.0, %v1256
      %v1258 = vpop.f32.mrb[0].mxu0
      %1259 = vmatprep.mubr.bf16.mxu0 0
      %1260 = vmatmul.mubr.bf16.gmra.mrb[0].mxu0 %v1110
      %v1261 = vpop.f32.mrb[0].mxu0
      %v1262 = vadd.f32 0.0, %v1261
      %v1263 = vpop.f32.mrb[0].mxu0
      %v1264 = vpop.f32.mrb[0].mxu0
      %v1265 = vadd.f32 0.0, %v1264
      %v1266 = vpop.f32.mrb[0].mxu0
      %1267 = vmatprep.mubr.bf16.mxu0 0
      %1268 = vmatmul.mubr.bf16.gmra.mrb[0].mxu0 %v1111
      %v1269 = vpop.f32.mrb[0].mxu0
      %v1270 = vadd.f32 0.0, %v1269
      %v1271 = vpop.f32.mrb[0].mxu0
      %v1272 = vpop.f32.mrb[0].mxu0
      %v1273 = vadd.f32 0.0, %v1272
      %v1274 = vpop.f32.mrb[0].mxu0
      %1275 = vmatprep.mubr.bf16.mxu0 0
      %1276 = vmatmul.mubr.bf16.gmra.mrb[0].mxu0 %v1112
      %v1277 = vpop.f32.mrb[0].mxu0
      %v1278 = vadd.f32 0.0, %v1277
      %v1279 = vpop.f32.mrb[0].mxu0
      %v1280 = vpop.f32.mrb[0].mxu0
      %v1281 = vadd.f32 0.0, %v1280
      %v1282 = vpop.f32.mrb[0].mxu0
      %1283 = vdwg.mxu0
      %v1284 = vadd.f32 %v905, %v1206
      %v1285 = vadd.f32 %v908, %v1209
      %v1286 = vadd.f32 %v913, %v1214
      %v1287 = vadd.f32 %v916, %v1217
      %v1288 = vadd.f32 %v921, %v1222
      %v1289 = vadd.f32 %v924, %v1225
      %v1290 = vadd.f32 %v929, %v1230
      %v1291 = vadd.f32 %v932, %v1233
      %v1292 = vadd.f32 %v937, %v1238
      %v1293 = vadd.f32 %v940, %v1241
      %v1294 = vadd.f32 %v945, %v1246
      %v1295 = vadd.f32 %v948, %v1249
      %v1296 = vadd.f32 %v953, %v1254
      %v1297 = vadd.f32 %v956, %v1257
      %v1298 = vadd.f32 %v961, %v1262
      %v1299 = vadd.f32 %v964, %v1265
      %v1300 = vadd.f32 %v969, %v1270
      %v1301 = vadd.f32 %v972, %v1273
      %v1302 = vadd.f32 %v977, %v1278
      %v1303 = vadd.f32 %v980, %v1281
      %s1304 = sadd.s32 %s251, 1
      %s1305 = smul.u32 %s1304, 3
      %s1306 = smul.addr %s1305, 4
      %s1307 = scalar_lea.vmem %s238, %s1306
      %v1308 = vld [vmem:[%s1307] sm:$0xf]
      %v1309 = vld [vmem:[%s1307 + $0x4] sm:$0xf]
      %v1310 = vld [vmem:[%s1307 + $0x8] sm:$0x1]
      %v1311 = vld [vmem:[%s1307 + $0xc] sm:$0xf]
      %v1312 = vld [vmem:[%s1307 + $0x10] sm:$0xf]
      %v1313 = vld [vmem:[%s1307 + $0x14] sm:$0x1]
      %v1314 = vld [vmem:[%s1307 + $0x18] sm:$0xf]
      %v1315 = vld [vmem:[%s1307 + $0x1c] sm:$0xf]
      %v1316 = vld [vmem:[%s1307 + $0x20] sm:$0x1]
      %v1317 = vld [vmem:[%s1307 + $0x24] sm:$0xf]
      %v1318 = vld [vmem:[%s1307 + $0x28] sm:$0xf]
      %v1319 = vld [vmem:[%s1307 + $0x2c] sm:$0x1]
      %v1320 = vld [vmem:[%s1307 + $0x30] sm:$0xf]
      %v1321 = vld [vmem:[%s1307 + $0x34] sm:$0xf]
      %v1322 = vld [vmem:[%s1307 + $0x38] sm:$0x1]
      %v1323 = vld [vmem:[%s1307 + $0x3c] sm:$0xf]
      %v1324 = vld [vmem:[%s1307 + $0x40] sm:$0xf]
      %v1325 = vld [vmem:[%s1307 + $0x44] sm:$0x1]
      %v1326 = vld [vmem:[%s1307 + $0x48] sm:$0xf]
      %v1327 = vld [vmem:[%s1307 + $0x4c] sm:$0xf]
      %v1328 = vld [vmem:[%s1307 + $0x50] sm:$0x1]
      %v1329 = vld [vmem:[%s1307 + $0x54] sm:$0xf]
      %v1330 = vld [vmem:[%s1307 + $0x58] sm:$0xf]
      %v1331 = vld [vmem:[%s1307 + $0x5c] sm:$0x1]
      %v1332 = vld [vmem:[%s1307 + $0x60] sm:$0xf]
      %v1333 = vld [vmem:[%s1307 + $0x64] sm:$0xf]
      %v1334 = vld [vmem:[%s1307 + $0x68] sm:$0x1]
      %v1335 = vld [vmem:[%s1307 + $0x6c] sm:$0xf]
      %v1336 = vld [vmem:[%s1307 + $0x70] sm:$0xf]
      %v1337 = vld [vmem:[%s1307 + $0x74] sm:$0x1]
      %s1338 = scalar_lea.vmem %s1, 192
      %v1339 = vld [vmem:[%s1338] sm:$0xf]
      %v1340 = vld [vmem:[%s1338 + $0x4] sm:$0xf]
      %v1341 = vld [vmem:[%s1338 + $0x8] sm:$0xf]
      %v1342 = vld [vmem:[%s1338 + $0xc] sm:$0xf]
      %v1343 = vld [vmem:[%s1338 + $0x10] sm:$0xf]
      %v1344 = vld [vmem:[%s1338 + $0x14] sm:$0xf]
      %v1345 = vld [vmem:[%s1338 + $0x18] sm:$0xf]
      %v1346 = vld [vmem:[%s1338 + $0x1c] sm:$0xf]
      %v1347 = vld [vmem:[%s1338 + $0x20] sm:$0xf]
      %v1348 = vld [vmem:[%s1338 + $0x24] sm:$0xf]
      %v1349 = vld [vmem:[%s1338 + $0x28] sm:$0xf]
      %v1350 = vld [vmem:[%s1338 + $0x2c] sm:$0xf]
      %v1351 = vld [vmem:[%s1338 + $0x30] sm:$0xf]
      %v1352 = vld [vmem:[%s1338 + $0x34] sm:$0xf]
      %v1353 = vld [vmem:[%s1338 + $0x38] sm:$0xf]
      %v1354 = vld [vmem:[%s1338 + $0x3c] sm:$0xf]
      %v1375 = vunpack.c.l.b16 %v1308
      %v1376 = vunpack.c.l.b16 %v1309
      %v1377 = vunpack.c.l.b16 %v1311
      %v1378 = vunpack.c.l.b16 %v1312
      %v1379 = vunpack.c.l.b16 %v1314
      %v1380 = vunpack.c.l.b16 %v1315
      %v1381 = vunpack.c.l.b16 %v1317
      %v1382 = vunpack.c.l.b16 %v1318
      %v1383 = vunpack.c.l.b16 %v1320
      %v1384 = vunpack.c.l.b16 %v1321
      %v1385 = vunpack.c.l.b16 %v1323
      %v1386 = vunpack.c.l.b16 %v1324
      %v1387 = vunpack.c.l.b16 %v1326
      %v1388 = vunpack.c.l.b16 %v1327
      %v1389 = vunpack.c.l.b16 %v1329
      %v1390 = vunpack.c.l.b16 %v1330
      %v1391 = vunpack.c.l.b16 %v1332
      %v1392 = vunpack.c.l.b16 %v1333
      %v1393 = vunpack.c.l.b16 %v1335
      %v1394 = vunpack.c.l.b16 %v1336
      %v1395 = vpack.c.b16 %v1376, %v1375
      %v1396 = vpack.c.b16 %v1378, %v1377
      %v1397 = vpack.c.b16 %v1380, %v1379
      %v1398 = vpack.c.b16 %v1382, %v1381
      %v1399 = vpack.c.b16 %v1384, %v1383
      %v1400 = vpack.c.b16 %v1386, %v1385
      %v1401 = vpack.c.b16 %v1388, %v1387
      %v1402 = vpack.c.b16 %v1390, %v1389
      %v1403 = vpack.c.b16 %v1392, %v1391
      %v1404 = vpack.c.b16 %v1394, %v1393
      %v1431 = vunpack.c.l.b16 %v1339
      %v1432 = vunpack.c.l.b16 %v1340
      %v1433 = vunpack.c.l.b16 %v1341
      %v1434 = vunpack.c.l.b16 %v1342
      %v1435 = vunpack.c.l.b16 %v1343
      %v1436 = vunpack.c.l.b16 %v1344
      %v1437 = vunpack.c.l.b16 %v1345
      %v1438 = vunpack.c.l.b16 %v1346
      %v1439 = vunpack.c.l.b16 %v1347
      %v1440 = vunpack.c.l.b16 %v1348
      %v1441 = vunpack.c.l.b16 %v1349
      %v1442 = vunpack.c.l.b16 %v1350
      %v1443 = vunpack.c.l.b16 %v1351
      %v1444 = vunpack.c.l.b16 %v1352
      %v1445 = vunpack.c.l.b16 %v1353
      %v1446 = vunpack.c.l.b16 %v1354
      %v1447 = vpack.c.b16 %v1432, %v1431
      %v1448 = vpack.c.b16 %v1434, %v1433
      %v1449 = vpack.c.b16 %v1436, %v1435
      %v1450 = vpack.c.b16 %v1438, %v1437
      %v1451 = vpack.c.b16 %v1440, %v1439
      %v1452 = vpack.c.b16 %v1442, %v1441
      %v1453 = vpack.c.b16 %v1444, %v1443
      %v1454 = vpack.c.b16 %v1446, %v1445
      %1463 = vmatprep.subr.bf16.mxu0 0
      %1464 = vmatpush1.bf16.msra.mxu0 %v1447
      %1465 = vmatprep.subr.bf16.mxu0 0
      %1466 = vmatpush1.bf16.msra.mxu0 %v1448
      %1467 = vmatprep.subr.bf16.mxu0 0
      %1468 = vmatpush1.bf16.msra.mxu0 %v1449
      %1469 = vmatprep.subr.bf16.mxu0 0
      %1470 = vmatpush1.bf16.msra.mxu0 %v1450
      %1471 = vmatprep.subr.bf16.mxu0 0
      %1472 = vmatpush1.bf16.msra.mxu0 %v1451
      %1473 = vmatprep.subr.bf16.mxu0 0
      %1474 = vmatpush1.bf16.msra.mxu0 %v1452
      %1475 = vmatprep.subr.bf16.mxu0 0
      %1476 = vmatpush1.bf16.msra.mxu0 %v1453
      %1477 = vmatprep.subr.bf16.mxu0 0
      %1478 = vmatpush1.bf16.msra.mxu0 %v1454
      %1479 = vmatprep.subr.bf16.mxu0 0
      %1480 = vmatpush1.bf16.msra.mxu0 0
      %1481 = vmatprep.subr.bf16.mxu0 0
      %1482 = vmatpush1.bf16.msra.mxu0 0
      %1483 = vmatprep.subr.bf16.mxu0 0
      %1484 = vmatpush1.bf16.msra.mxu0 0
      %1485 = vmatprep.subr.bf16.mxu0 0
      %1486 = vmatpush1.bf16.msra.mxu0 0
      %1487 = vmatprep.subr.bf16.mxu0 0
      %1488 = vmatpush1.bf16.msra.mxu0 0
      %1489 = vmatprep.subr.bf16.mxu0 0
      %1490 = vmatpush1.bf16.msra.mxu0 0
      %1491 = vmatprep.subr.bf16.mxu0 0
      %1492 = vmatpush1.bf16.msra.mxu0 0
      %1493 = vmatprep.subr.bf16.mxu0 0
      %1494 = vmatpush1.bf16.msra.mxu0 0
      %1495 = vmatprep.mubr.bf16.mxu0 0
      %1496 = vmatmul.mubr.bf16.gmra.mrb[0].mxu0 %v1395
      %v1497 = vpop.f32.mrb[0].mxu0
      %v1498 = vadd.f32 0.0, %v1497
      %v1499 = vpop.f32.mrb[0].mxu0
      %v1500 = vpop.f32.mrb[0].mxu0
      %v1501 = vadd.f32 0.0, %v1500
      %v1502 = vpop.f32.mrb[0].mxu0
      %1503 = vmatprep.mubr.bf16.mxu0 0
      %1504 = vmatmul.mubr.bf16.gmra.mrb[0].mxu0 %v1396
      %v1505 = vpop.f32.mrb[0].mxu0
      %v1506 = vadd.f32 0.0, %v1505
      %v1507 = vpop.f32.mrb[0].mxu0
      %v1508 = vpop.f32.mrb[0].mxu0
      %v1509 = vadd.f32 0.0, %v1508
      %v1510 = vpop.f32.mrb[0].mxu0
      %1511 = vmatprep.mubr.bf16.mxu0 0
      %1512 = vmatmul.mubr.bf16.gmra.mrb[0].mxu0 %v1397
      %v1513 = vpop.f32.mrb[0].mxu0
      %v1514 = vadd.f32 0.0, %v1513
      %v1515 = vpop.f32.mrb[0].mxu0
      %v1516 = vpop.f32.mrb[0].mxu0
      %v1517 = vadd.f32 0.0, %v1516
      %v1518 = vpop.f32.mrb[0].mxu0
      %1519 = vmatprep.mubr.bf16.mxu0 0
      %1520 = vmatmul.mubr.bf16.gmra.mrb[0].mxu0 %v1398
      %v1521 = vpop.f32.mrb[0].mxu0
      %v1522 = vadd.f32 0.0, %v1521
      %v1523 = vpop.f32.mrb[0].mxu0
      %v1524 = vpop.f32.mrb[0].mxu0
      %v1525 = vadd.f32 0.0, %v1524
      %v1526 = vpop.f32.mrb[0].mxu0
      %1527 = vmatprep.mubr.bf16.mxu0 0
      %1528 = vmatmul.mubr.bf16.gmra.mrb[0].mxu0 %v1399
      %v1529 = vpop.f32.mrb[0].mxu0
      %v1530 = vadd.f32 0.0, %v1529
      %v1531 = vpop.f32.mrb[0].mxu0
      %v1532 = vpop.f32.mrb[0].mxu0
      %v1533 = vadd.f32 0.0, %v1532
      %v1534 = vpop.f32.mrb[0].mxu0
      %1535 = vmatprep.mubr.bf16.mxu0 0
      %1536 = vmatmul.mubr.bf16.gmra.mrb[0].mxu0 %v1400
      %v1537 = vpop.f32.mrb[0].mxu0
      %v1538 = vadd.f32 0.0, %v1537
      %v1539 = vpop.f32.mrb[0].mxu0
      %v1540 = vpop.f32.mrb[0].mxu0
      %v1541 = vadd.f32 0.0, %v1540
      %v1542 = vpop.f32.mrb[0].mxu0
      %1543 = vmatprep.mubr.bf16.mxu0 0
      %1544 = vmatmul.mubr.bf16.gmra.mrb[0].mxu0 %v1401
      %v1545 = vpop.f32.mrb[0].mxu0
      %v1546 = vadd.f32 0.0, %v1545
      %v1547 = vpop.f32.mrb[0].mxu0
      %v1548 = vpop.f32.mrb[0].mxu0
      %v1549 = vadd.f32 0.0, %v1548
      %v1550 = vpop.f32.mrb[0].mxu0
      %1551 = vmatprep.mubr.bf16.mxu0 0
      %1552 = vmatmul.mubr.bf16.gmra.mrb[0].mxu0 %v1402
      %v1553 = vpop.f32.mrb[0].mxu0
      %v1554 = vadd.f32 0.0, %v1553
      %v1555 = vpop.f32.mrb[0].mxu0
      %v1556 = vpop.f32.mrb[0].mxu0
      %v1557 = vadd.f32 0.0, %v1556
      %v1558 = vpop.f32.mrb[0].mxu0
      %1559 = vmatprep.mubr.bf16.mxu0 0
      %1560 = vmatmul.mubr.bf16.gmra.mrb[0].mxu0 %v1403
      %v1561 = vpop.f32.mrb[0].mxu0
      %v1562 = vadd.f32 0.0, %v1561
      %v1563 = vpop.f32.mrb[0].mxu0
      %v1564 = vpop.f32.mrb[0].mxu0
      %v1565 = vadd.f32 0.0, %v1564
      %v1566 = vpop.f32.mrb[0].mxu0
      %1567 = vmatprep.mubr.bf16.mxu0 0
      %1568 = vmatmul.mubr.bf16.gmra.mrb[0].mxu0 %v1404
      %v1569 = vpop.f32.mrb[0].mxu0
      %v1570 = vadd.f32 0.0, %v1569
      %v1571 = vpop.f32.mrb[0].mxu0
      %v1572 = vpop.f32.mrb[0].mxu0
      %v1573 = vadd.f32 0.0, %v1572
      %v1574 = vpop.f32.mrb[0].mxu0
      %1575 = vdwg.mxu0
      %v1576 = vadd.f32 %v1284, %v1498
      %v1577 = vadd.f32 %v1285, %v1501
      %v1578 = vadd.f32 %v1286, %v1506
      %v1579 = vadd.f32 %v1287, %v1509
      %v1580 = vadd.f32 %v1288, %v1514
      %v1581 = vadd.f32 %v1289, %v1517
      %v1582 = vadd.f32 %v1290, %v1522
      %v1583 = vadd.f32 %v1291, %v1525
      %v1584 = vadd.f32 %v1292, %v1530
      %v1585 = vadd.f32 %v1293, %v1533
      %v1586 = vadd.f32 %v1294, %v1538
      %v1587 = vadd.f32 %v1295, %v1541
      %v1588 = vadd.f32 %v1296, %v1546
      %v1589 = vadd.f32 %v1297, %v1549
      %v1590 = vadd.f32 %v1298, %v1554
      %v1591 = vadd.f32 %v1299, %v1557
      %v1592 = vadd.f32 %v1300, %v1562
      %v1593 = vadd.f32 %v1301, %v1565
      %v1594 = vadd.f32 %v1302, %v1570
      %v1595 = vadd.f32 %v1303, %v1573
      %v1597 = vshrl.u32 %v1308, 16
      %v1599 = vrot.slane %v1597, 4
      %v1600 = vshll.u32 %v1308, 16
      %v1602 = vrot.slane %v1600, 5
      %v1603 = vor.u32 %v1599, %v1602
      %v1604 = vrot.slane %v1603, 4
      %v1606 = vshll.u32 %v1309, 16
      %v1608 = vrot.slane %v1606, 5
      %v1609 = vsel %vm303, %v1604, %v1608
      %v1610 = vshrl.u32 %v1309, 16
      %v1612 = vrot.slane %v1610, 4
      %v1613 = vor.u32 %v1612, %v1608
      %v1614 = vrot.slane %v1613, 4
      %v1616 = vshll.u32 %v1310, 16
      %v1618 = vrot.slane %v1616, 5
      %v1619 = vsel %vm303, %v1614, %v1618
      %v1621 = vshrl.u32 %v1311, 16
      %v1623 = vrot.slane %v1621, 4
      %v1624 = vshll.u32 %v1311, 16
      %v1626 = vrot.slane %v1624, 5
      %v1627 = vor.u32 %v1623, %v1626
      %v1628 = vrot.slane %v1627, 4
      %v1630 = vshll.u32 %v1312, 16
      %v1632 = vrot.slane %v1630, 5
      %v1633 = vsel %vm303, %v1628, %v1632
      %v1634 = vshrl.u32 %v1312, 16
      %v1636 = vrot.slane %v1634, 4
      %v1637 = vor.u32 %v1636, %v1632
      %v1638 = vrot.slane %v1637, 4
      %v1640 = vshll.u32 %v1313, 16
      %v1642 = vrot.slane %v1640, 5
      %v1643 = vsel %vm303, %v1638, %v1642
      %v1645 = vshrl.u32 %v1314, 16
      %v1647 = vrot.slane %v1645, 4
      %v1648 = vshll.u32 %v1314, 16
      %v1650 = vrot.slane %v1648, 5
      %v1651 = vor.u32 %v1647, %v1650
      %v1652 = vrot.slane %v1651, 4
      %v1654 = vshll.u32 %v1315, 16
      %v1656 = vrot.slane %v1654, 5
      %v1657 = vsel %vm303, %v1652, %v1656
      %v1658 = vshrl.u32 %v1315, 16
      %v1660 = vrot.slane %v1658, 4
      %v1661 = vor.u32 %v1660, %v1656
      %v1662 = vrot.slane %v1661, 4
      %v1664 = vshll.u32 %v1316, 16
      %v1666 = vrot.slane %v1664, 5
      %v1667 = vsel %vm303, %v1662, %v1666
      %v1669 = vshrl.u32 %v1317, 16
      %v1671 = vrot.slane %v1669, 4
      %v1672 = vshll.u32 %v1317, 16
      %v1674 = vrot.slane %v1672, 5
      %v1675 = vor.u32 %v1671, %v1674
      %v1676 = vrot.slane %v1675, 4
      %v1678 = vshll.u32 %v1318, 16
      %v1680 = vrot.slane %v1678, 5
      %v1681 = vsel %vm303, %v1676, %v1680
      %v1682 = vshrl.u32 %v1318, 16
      %v1684 = vrot.slane %v1682, 4
      %v1685 = vor.u32 %v1684, %v1680
      %v1686 = vrot.slane %v1685, 4
      %v1688 = vshll.u32 %v1319, 16
      %v1690 = vrot.slane %v1688, 5
      %v1691 = vsel %vm303, %v1686, %v1690
      %v1693 = vshrl.u32 %v1320, 16
      %v1695 = vrot.slane %v1693, 4
      %v1696 = vshll.u32 %v1320, 16
      %v1698 = vrot.slane %v1696, 5
      %v1699 = vor.u32 %v1695, %v1698
      %v1700 = vrot.slane %v1699, 4
      %v1702 = vshll.u32 %v1321, 16
      %v1704 = vrot.slane %v1702, 5
      %v1705 = vsel %vm303, %v1700, %v1704
      %v1706 = vshrl.u32 %v1321, 16
      %v1708 = vrot.slane %v1706, 4
      %v1709 = vor.u32 %v1708, %v1704
      %v1710 = vrot.slane %v1709, 4
      %v1712 = vshll.u32 %v1322, 16
      %v1714 = vrot.slane %v1712, 5
      %v1715 = vsel %vm303, %v1710, %v1714
      %v1717 = vshrl.u32 %v1323, 16
      %v1719 = vrot.slane %v1717, 4
      %v1720 = vshll.u32 %v1323, 16
      %v1722 = vrot.slane %v1720, 5
      %v1723 = vor.u32 %v1719, %v1722
      %v1724 = vrot.slane %v1723, 4
      %v1726 = vshll.u32 %v1324, 16
      %v1728 = vrot.slane %v1726, 5
      %v1729 = vsel %vm303, %v1724, %v1728
      %v1730 = vshrl.u32 %v1324, 16
      %v1732 = vrot.slane %v1730, 4
      %v1733 = vor.u32 %v1732, %v1728
      %v1734 = vrot.slane %v1733, 4
      %v1736 = vshll.u32 %v1325, 16
      %v1738 = vrot.slane %v1736, 5
      %v1739 = vsel %vm303, %v1734, %v1738
      %v1741 = vshrl.u32 %v1326, 16
      %v1743 = vrot.slane %v1741, 4
      %v1744 = vshll.u32 %v1326, 16
      %v1746 = vrot.slane %v1744, 5
      %v1747 = vor.u32 %v1743, %v1746
      %v1748 = vrot.slane %v1747, 4
      %v1750 = vshll.u32 %v1327, 16
      %v1752 = vrot.slane %v1750, 5
      %v1753 = vsel %vm303, %v1748, %v1752
      %v1754 = vshrl.u32 %v1327, 16
      %v1756 = vrot.slane %v1754, 4
      %v1757 = vor.u32 %v1756, %v1752
      %v1758 = vrot.slane %v1757, 4
      %v1760 = vshll.u32 %v1328, 16
      %v1762 = vrot.slane %v1760, 5
      %v1763 = vsel %vm303, %v1758, %v1762
      %v1765 = vshrl.u32 %v1329, 16
      %v1767 = vrot.slane %v1765, 4
      %v1768 = vshll.u32 %v1329, 16
      %v1770 = vrot.slane %v1768, 5
      %v1771 = vor.u32 %v1767, %v1770
      %v1772 = vrot.slane %v1771, 4
      %v1774 = vshll.u32 %v1330, 16
      %v1776 = vrot.slane %v1774, 5
      %v1777 = vsel %vm303, %v1772, %v1776
      %v1778 = vshrl.u32 %v1330, 16
      %v1780 = vrot.slane %v1778, 4
      %v1781 = vor.u32 %v1780, %v1776
      %v1782 = vrot.slane %v1781, 4
      %v1784 = vshll.u32 %v1331, 16
      %v1786 = vrot.slane %v1784, 5
      %v1787 = vsel %vm303, %v1782, %v1786
      %v1789 = vshrl.u32 %v1332, 16
      %v1791 = vrot.slane %v1789, 4
      %v1792 = vshll.u32 %v1332, 16
      %v1794 = vrot.slane %v1792, 5
      %v1795 = vor.u32 %v1791, %v1794
      %v1796 = vrot.slane %v1795, 4
      %v1798 = vshll.u32 %v1333, 16
      %v1800 = vrot.slane %v1798, 5
      %v1801 = vsel %vm303, %v1796, %v1800
      %v1802 = vshrl.u32 %v1333, 16
      %v1804 = vrot.slane %v1802, 4
      %v1805 = vor.u32 %v1804, %v1800
      %v1806 = vrot.slane %v1805, 4
      %v1808 = vshll.u32 %v1334, 16
      %v1810 = vrot.slane %v1808, 5
      %v1811 = vsel %vm303, %v1806, %v1810
      %v1813 = vshrl.u32 %v1335, 16
      %v1815 = vrot.slane %v1813, 4
      %v1816 = vshll.u32 %v1335, 16
      %v1818 = vrot.slane %v1816, 5
      %v1819 = vor.u32 %v1815, %v1818
      %v1820 = vrot.slane %v1819, 4
      %v1822 = vshll.u32 %v1336, 16
      %v1824 = vrot.slane %v1822, 5
      %v1825 = vsel %vm303, %v1820, %v1824
      %v1826 = vshrl.u32 %v1336, 16
      %v1828 = vrot.slane %v1826, 4
      %v1829 = vor.u32 %v1828, %v1824
      %v1830 = vrot.slane %v1829, 4
      %v1832 = vshll.u32 %v1337, 16
      %v1834 = vrot.slane %v1832, 5
      %v1835 = vsel %vm303, %v1830, %v1834
      %s1836 = scalar_lea.vmem %s1, 256
      %v1837 = vld [vmem:[%s1836] sm:$0xf]
      %v1838 = vld [vmem:[%s1836 + $0x4] sm:$0xf]
      %v1839 = vld [vmem:[%s1836 + $0x8] sm:$0xf]
      %v1840 = vld [vmem:[%s1836 + $0xc] sm:$0xf]
      %v1841 = vld [vmem:[%s1836 + $0x10] sm:$0xf]
      %v1842 = vld [vmem:[%s1836 + $0x14] sm:$0xf]
      %v1843 = vld [vmem:[%s1836 + $0x18] sm:$0xf]
      %v1844 = vld [vmem:[%s1836 + $0x1c] sm:$0xf]
      %v1845 = vld [vmem:[%s1836 + $0x20] sm:$0xf]
      %v1846 = vld [vmem:[%s1836 + $0x24] sm:$0xf]
      %v1847 = vld [vmem:[%s1836 + $0x28] sm:$0xf]
      %v1848 = vld [vmem:[%s1836 + $0x2c] sm:$0xf]
      %v1849 = vld [vmem:[%s1836 + $0x30] sm:$0xf]
      %v1850 = vld [vmem:[%s1836 + $0x34] sm:$0xf]
      %v1851 = vld [vmem:[%s1836 + $0x38] sm:$0xf]
      %v1852 = vld [vmem:[%s1836 + $0x3c] sm:$0xf]
      %v1853 = vunpack.c.l.b16 %v1609
      %v1854 = vunpack.c.l.b16 %v1619
      %v1855 = vunpack.c.l.b16 %v1633
      %v1856 = vunpack.c.l.b16 %v1643
      %v1857 = vunpack.c.l.b16 %v1657
      %v1858 = vunpack.c.l.b16 %v1667
      %v1859 = vunpack.c.l.b16 %v1681
      %v1860 = vunpack.c.l.b16 %v1691
      %v1861 = vunpack.c.l.b16 %v1705
      %v1862 = vunpack.c.l.b16 %v1715
      %v1863 = vunpack.c.l.b16 %v1729
      %v1864 = vunpack.c.l.b16 %v1739
      %v1865 = vunpack.c.l.b16 %v1753
      %v1866 = vunpack.c.l.b16 %v1763
      %v1867 = vunpack.c.l.b16 %v1777
      %v1868 = vunpack.c.l.b16 %v1787
      %v1869 = vunpack.c.l.b16 %v1801
      %v1870 = vunpack.c.l.b16 %v1811
      %v1871 = vunpack.c.l.b16 %v1825
      %v1872 = vunpack.c.l.b16 %v1835
      %v1873 = vpack.c.b16 %v1854, %v1853
      %v1874 = vpack.c.b16 %v1856, %v1855
      %v1875 = vpack.c.b16 %v1858, %v1857
      %v1876 = vpack.c.b16 %v1860, %v1859
      %v1877 = vpack.c.b16 %v1862, %v1861
      %v1878 = vpack.c.b16 %v1864, %v1863
      %v1879 = vpack.c.b16 %v1866, %v1865
      %v1880 = vpack.c.b16 %v1868, %v1867
      %v1881 = vpack.c.b16 %v1870, %v1869
      %v1882 = vpack.c.b16 %v1872, %v1871
      %v1909 = vunpack.c.l.b16 %v1837
      %v1910 = vunpack.c.l.b16 %v1838
      %v1911 = vunpack.c.l.b16 %v1839
      %v1912 = vunpack.c.l.b16 %v1840
      %v1913 = vunpack.c.l.b16 %v1841
      %v1914 = vunpack.c.l.b16 %v1842
      %v1915 = vunpack.c.l.b16 %v1843
      %v1916 = vunpack.c.l.b16 %v1844
      %v1917 = vunpack.c.l.b16 %v1845
      %v1918 = vunpack.c.l.b16 %v1846
      %v1919 = vunpack.c.l.b16 %v1847
      %v1920 = vunpack.c.l.b16 %v1848
      %v1921 = vunpack.c.l.b16 %v1849
      %v1922 = vunpack.c.l.b16 %v1850
      %v1923 = vunpack.c.l.b16 %v1851
      %v1924 = vunpack.c.l.b16 %v1852
      %v1925 = vpack.c.b16 %v1910, %v1909
      %v1926 = vpack.c.b16 %v1912, %v1911
      %v1927 = vpack.c.b16 %v1914, %v1913
      %v1928 = vpack.c.b16 %v1916, %v1915
      %v1929 = vpack.c.b16 %v1918, %v1917
      %v1930 = vpack.c.b16 %v1920, %v1919
      %v1931 = vpack.c.b16 %v1922, %v1921
      %v1932 = vpack.c.b16 %v1924, %v1923
      %1941 = vmatprep.subr.bf16.mxu0 0
      %1942 = vmatpush1.bf16.msra.mxu0 %v1925
      %1943 = vmatprep.subr.bf16.mxu0 0
      %1944 = vmatpush1.bf16.msra.mxu0 %v1926
      %1945 = vmatprep.subr.bf16.mxu0 0
      %1946 = vmatpush1.bf16.msra.mxu0 %v1927
      %1947 = vmatprep.subr.bf16.mxu0 0
      %1948 = vmatpush1.bf16.msra.mxu0 %v1928
      %1949 = vmatprep.subr.bf16.mxu0 0
      %1950 = vmatpush1.bf16.msra.mxu0 %v1929
      %1951 = vmatprep.subr.bf16.mxu0 0
      %1952 = vmatpush1.bf16.msra.mxu0 %v1930
      %1953 = vmatprep.subr.bf16.mxu0 0
      %1954 = vmatpush1.bf16.msra.mxu0 %v1931
      %1955 = vmatprep.subr.bf16.mxu0 0
      %1956 = vmatpush1.bf16.msra.mxu0 %v1932
      %1957 = vmatprep.subr.bf16.mxu0 0
      %1958 = vmatpush1.bf16.msra.mxu0 0
      %1959 = vmatprep.subr.bf16.mxu0 0
      %1960 = vmatpush1.bf16.msra.mxu0 0
      %1961 = vmatprep.subr.bf16.mxu0 0
      %1962 = vmatpush1.bf16.msra.mxu0 0
      %1963 = vmatprep.subr.bf16.mxu0 0
      %1964 = vmatpush1.bf16.msra.mxu0 0
      %1965 = vmatprep.subr.bf16.mxu0 0
      %1966 = vmatpush1.bf16.msra.mxu0 0
      %1967 = vmatprep.subr.bf16.mxu0 0
      %1968 = vmatpush1.bf16.msra.mxu0 0
      %1969 = vmatprep.subr.bf16.mxu0 0
      %1970 = vmatpush1.bf16.msra.mxu0 0
      %1971 = vmatprep.subr.bf16.mxu0 0
      %1972 = vmatpush1.bf16.msra.mxu0 0
      %1973 = vmatprep.mubr.bf16.mxu0 0
      %1974 = vmatmul.mubr.bf16.gmra.mrb[0].mxu0 %v1873
      %v1975 = vpop.f32.mrb[0].mxu0
      %v1976 = vadd.f32 0.0, %v1975
      %v1977 = vpop.f32.mrb[0].mxu0
      %v1978 = vpop.f32.mrb[0].mxu0
      %v1979 = vadd.f32 0.0, %v1978
      %v1980 = vpop.f32.mrb[0].mxu0
      %1981 = vmatprep.mubr.bf16.mxu0 0
      %1982 = vmatmul.mubr.bf16.gmra.mrb[0].mxu0 %v1874
      %v1983 = vpop.f32.mrb[0].mxu0
      %v1984 = vadd.f32 0.0, %v1983
      %v1985 = vpop.f32.mrb[0].mxu0
      %v1986 = vpop.f32.mrb[0].mxu0
      %v1987 = vadd.f32 0.0, %v1986
      %v1988 = vpop.f32.mrb[0].mxu0
      %1989 = vmatprep.mubr.bf16.mxu0 0
      %1990 = vmatmul.mubr.bf16.gmra.mrb[0].mxu0 %v1875
      %v1991 = vpop.f32.mrb[0].mxu0
      %v1992 = vadd.f32 0.0, %v1991
      %v1993 = vpop.f32.mrb[0].mxu0
      %v1994 = vpop.f32.mrb[0].mxu0
      %v1995 = vadd.f32 0.0, %v1994
      %v1996 = vpop.f32.mrb[0].mxu0
      %1997 = vmatprep.mubr.bf16.mxu0 0
      %1998 = vmatmul.mubr.bf16.gmra.mrb[0].mxu0 %v1876
      %v1999 = vpop.f32.mrb[0].mxu0
      %v2000 = vadd.f32 0.0, %v1999
      %v2001 = vpop.f32.mrb[0].mxu0
      %v2002 = vpop.f32.mrb[0].mxu0
      %v2003 = vadd.f32 0.0, %v2002
      %v2004 = vpop.f32.mrb[0].mxu0
      %2005 = vmatprep.mubr.bf16.mxu0 0
      %2006 = vmatmul.mubr.bf16.gmra.mrb[0].mxu0 %v1877
      %v2007 = vpop.f32.mrb[0].mxu0
      %v2008 = vadd.f32 0.0, %v2007
      %v2009 = vpop.f32.mrb[0].mxu0
      %v2010 = vpop.f32.mrb[0].mxu0
      %v2011 = vadd.f32 0.0, %v2010
      %v2012 = vpop.f32.mrb[0].mxu0
      %2013 = vmatprep.mubr.bf16.mxu0 0
      %2014 = vmatmul.mubr.bf16.gmra.mrb[0].mxu0 %v1878
      %v2015 = vpop.f32.mrb[0].mxu0
      %v2016 = vadd.f32 0.0, %v2015
      %v2017 = vpop.f32.mrb[0].mxu0
      %v2018 = vpop.f32.mrb[0].mxu0
      %v2019 = vadd.f32 0.0, %v2018
      %v2020 = vpop.f32.mrb[0].mxu0
      %2021 = vmatprep.mubr.bf16.mxu0 0
      %2022 = vmatmul.mubr.bf16.gmra.mrb[0].mxu0 %v1879
      %v2023 = vpop.f32.mrb[0].mxu0
      %v2024 = vadd.f32 0.0, %v2023
      %v2025 = vpop.f32.mrb[0].mxu0
      %v2026 = vpop.f32.mrb[0].mxu0
      %v2027 = vadd.f32 0.0, %v2026
      %v2028 = vpop.f32.mrb[0].mxu0
      %2029 = vmatprep.mubr.bf16.mxu0 0
      %2030 = vmatmul.mubr.bf16.gmra.mrb[0].mxu0 %v1880
      %v2031 = vpop.f32.mrb[0].mxu0
      %v2032 = vadd.f32 0.0, %v2031
      %v2033 = vpop.f32.mrb[0].mxu0
      %v2034 = vpop.f32.mrb[0].mxu0
      %v2035 = vadd.f32 0.0, %v2034
      %v2036 = vpop.f32.mrb[0].mxu0
      %2037 = vmatprep.mubr.bf16.mxu0 0
      %2038 = vmatmul.mubr.bf16.gmra.mrb[0].mxu0 %v1881
      %v2039 = vpop.f32.mrb[0].mxu0
      %v2040 = vadd.f32 0.0, %v2039
      %v2041 = vpop.f32.mrb[0].mxu0
      %v2042 = vpop.f32.mrb[0].mxu0
      %v2043 = vadd.f32 0.0, %v2042
      %v2044 = vpop.f32.mrb[0].mxu0
      %2045 = vmatprep.mubr.bf16.mxu0 0
      %2046 = vmatmul.mubr.bf16.gmra.mrb[0].mxu0 %v1882
      %v2047 = vpop.f32.mrb[0].mxu0
      %v2048 = vadd.f32 0.0, %v2047
      %v2049 = vpop.f32.mrb[0].mxu0
      %v2050 = vpop.f32.mrb[0].mxu0
      %v2051 = vadd.f32 0.0, %v2050
      %v2052 = vpop.f32.mrb[0].mxu0
      %2053 = vdwg.mxu0
      %v2054 = vadd.f32 %v1576, %v1976
      %v2055 = vadd.f32 %v1577, %v1979
      %v2056 = vadd.f32 %v1578, %v1984
      %v2057 = vadd.f32 %v1579, %v1987
      %v2058 = vadd.f32 %v1580, %v1992
      %v2059 = vadd.f32 %v1581, %v1995
      %v2060 = vadd.f32 %v1582, %v2000
      %v2061 = vadd.f32 %v1583, %v2003
      %v2062 = vadd.f32 %v1584, %v2008
      %v2063 = vadd.f32 %v1585, %v2011
      %v2064 = vadd.f32 %v1586, %v2016
      %v2065 = vadd.f32 %v1587, %v2019
      %v2066 = vadd.f32 %v1588, %v2024
      %v2067 = vadd.f32 %v1589, %v2027
      %v2068 = vadd.f32 %v1590, %v2032
      %v2069 = vadd.f32 %v1591, %v2035
      %v2070 = vadd.f32 %v1592, %v2040
      %v2071 = vadd.f32 %v1593, %v2043
      %v2072 = vadd.f32 %v1594, %v2048
      %v2073 = vadd.f32 %v1595, %v2051
      %v2084 = vrot.slane %v1308, 5
      %v2085 = vrot.slane %v2084, 4
      %v2086 = vrot.slane %v1309, 5
      %v2087 = vsel %vm995, %v2085, %v2086
      %v2088 = vrot.slane %v2086, 4
      %v2089 = vrot.slane %v1310, 5
      %v2090 = vsel %vm995, %v2088, %v2089
      %v2091 = vrot.slane %v1311, 5
      %v2092 = vrot.slane %v2091, 4
      %v2093 = vrot.slane %v1312, 5
      %v2094 = vsel %vm995, %v2092, %v2093
      %v2095 = vrot.slane %v2093, 4
      %v2096 = vrot.slane %v1313, 5
      %v2097 = vsel %vm995, %v2095, %v2096
      %v2098 = vrot.slane %v1314, 5
      %v2099 = vrot.slane %v2098, 4
      %v2100 = vrot.slane %v1315, 5
      %v2101 = vsel %vm995, %v2099, %v2100
      %v2102 = vrot.slane %v2100, 4
      %v2103 = vrot.slane %v1316, 5
      %v2104 = vsel %vm995, %v2102, %v2103
      %v2105 = vrot.slane %v1317, 5
      %v2106 = vrot.slane %v2105, 4
      %v2107 = vrot.slane %v1318, 5
      %v2108 = vsel %vm995, %v2106, %v2107
      %v2109 = vrot.slane %v2107, 4
      %v2110 = vrot.slane %v1319, 5
      %v2111 = vsel %vm995, %v2109, %v2110
      %v2112 = vrot.slane %v1320, 5
      %v2113 = vrot.slane %v2112, 4
      %v2114 = vrot.slane %v1321, 5
      %v2115 = vsel %vm995, %v2113, %v2114
      %v2116 = vrot.slane %v2114, 4
      %v2117 = vrot.slane %v1322, 5
      %v2118 = vsel %vm995, %v2116, %v2117
      %v2119 = vrot.slane %v1323, 5
      %v2120 = vrot.slane %v2119, 4
      %v2121 = vrot.slane %v1324, 5
      %v2122 = vsel %vm995, %v2120, %v2121
      %v2123 = vrot.slane %v2121, 4
      %v2124 = vrot.slane %v1325, 5
      %v2125 = vsel %vm995, %v2123, %v2124
      %v2126 = vrot.slane %v1326, 5
      %v2127 = vrot.slane %v2126, 4
      %v2128 = vrot.slane %v1327, 5
      %v2129 = vsel %vm995, %v2127, %v2128
      %v2130 = vrot.slane %v2128, 4
      %v2131 = vrot.slane %v1328, 5
      %v2132 = vsel %vm995, %v2130, %v2131
      %v2133 = vrot.slane %v1329, 5
      %v2134 = vrot.slane %v2133, 4
      %v2135 = vrot.slane %v1330, 5
      %v2136 = vsel %vm995, %v2134, %v2135
      %v2137 = vrot.slane %v2135, 4
      %v2138 = vrot.slane %v1331, 5
      %v2139 = vsel %vm995, %v2137, %v2138
      %v2140 = vrot.slane %v1332, 5
      %v2141 = vrot.slane %v2140, 4
      %v2142 = vrot.slane %v1333, 5
      %v2143 = vsel %vm995, %v2141, %v2142
      %v2144 = vrot.slane %v2142, 4
      %v2145 = vrot.slane %v1334, 5
      %v2146 = vsel %vm995, %v2144, %v2145
      %v2147 = vrot.slane %v1335, 5
      %v2148 = vrot.slane %v2147, 4
      %v2149 = vrot.slane %v1336, 5
      %v2150 = vsel %vm995, %v2148, %v2149
      %v2151 = vrot.slane %v2149, 4
      %v2152 = vrot.slane %v1337, 5
      %v2153 = vsel %vm995, %v2151, %v2152
      %s2154 = scalar_lea.vmem %s1, 320
      %v2155 = vld [vmem:[%s2154] sm:$0xf]
      %v2156 = vld [vmem:[%s2154 + $0x4] sm:$0xf]
      %v2157 = vld [vmem:[%s2154 + $0x8] sm:$0xf]
      %v2158 = vld [vmem:[%s2154 + $0xc] sm:$0xf]
      %v2159 = vld [vmem:[%s2154 + $0x10] sm:$0xf]
      %v2160 = vld [vmem:[%s2154 + $0x14] sm:$0xf]
      %v2161 = vld [vmem:[%s2154 + $0x18] sm:$0xf]
      %v2162 = vld [vmem:[%s2154 + $0x1c] sm:$0xf]
      %v2163 = vld [vmem:[%s2154 + $0x20] sm:$0xf]
      %v2164 = vld [vmem:[%s2154 + $0x24] sm:$0xf]
      %v2165 = vld [vmem:[%s2154 + $0x28] sm:$0xf]
      %v2166 = vld [vmem:[%s2154 + $0x2c] sm:$0xf]
      %v2167 = vld [vmem:[%s2154 + $0x30] sm:$0xf]
      %v2168 = vld [vmem:[%s2154 + $0x34] sm:$0xf]
      %v2169 = vld [vmem:[%s2154 + $0x38] sm:$0xf]
      %v2170 = vld [vmem:[%s2154 + $0x3c] sm:$0xf]
      %v2171 = vunpack.c.l.b16 %v2087
      %v2172 = vunpack.c.l.b16 %v2090
      %v2173 = vunpack.c.l.b16 %v2094
      %v2174 = vunpack.c.l.b16 %v2097
      %v2175 = vunpack.c.l.b16 %v2101
      %v2176 = vunpack.c.l.b16 %v2104
      %v2177 = vunpack.c.l.b16 %v2108
      %v2178 = vunpack.c.l.b16 %v2111
      %v2179 = vunpack.c.l.b16 %v2115
      %v2180 = vunpack.c.l.b16 %v2118
      %v2181 = vunpack.c.l.b16 %v2122
      %v2182 = vunpack.c.l.b16 %v2125
      %v2183 = vunpack.c.l.b16 %v2129
      %v2184 = vunpack.c.l.b16 %v2132
      %v2185 = vunpack.c.l.b16 %v2136
      %v2186 = vunpack.c.l.b16 %v2139
      %v2187 = vunpack.c.l.b16 %v2143
      %v2188 = vunpack.c.l.b16 %v2146
      %v2189 = vunpack.c.l.b16 %v2150
      %v2190 = vunpack.c.l.b16 %v2153
      %v2191 = vpack.c.b16 %v2172, %v2171
      %v2192 = vpack.c.b16 %v2174, %v2173
      %v2193 = vpack.c.b16 %v2176, %v2175
      %v2194 = vpack.c.b16 %v2178, %v2177
      %v2195 = vpack.c.b16 %v2180, %v2179
      %v2196 = vpack.c.b16 %v2182, %v2181
      %v2197 = vpack.c.b16 %v2184, %v2183
      %v2198 = vpack.c.b16 %v2186, %v2185
      %v2199 = vpack.c.b16 %v2188, %v2187
      %v2200 = vpack.c.b16 %v2190, %v2189
      %v2227 = vunpack.c.l.b16 %v2155
      %v2228 = vunpack.c.l.b16 %v2156
      %v2229 = vunpack.c.l.b16 %v2157
      %v2230 = vunpack.c.l.b16 %v2158
      %v2231 = vunpack.c.l.b16 %v2159
      %v2232 = vunpack.c.l.b16 %v2160
      %v2233 = vunpack.c.l.b16 %v2161
      %v2234 = vunpack.c.l.b16 %v2162
      %v2235 = vunpack.c.l.b16 %v2163
      %v2236 = vunpack.c.l.b16 %v2164
      %v2237 = vunpack.c.l.b16 %v2165
      %v2238 = vunpack.c.l.b16 %v2166
      %v2239 = vunpack.c.l.b16 %v2167
      %v2240 = vunpack.c.l.b16 %v2168
      %v2241 = vunpack.c.l.b16 %v2169
      %v2242 = vunpack.c.l.b16 %v2170
      %v2243 = vpack.c.b16 %v2228, %v2227
      %v2244 = vpack.c.b16 %v2230, %v2229
      %v2245 = vpack.c.b16 %v2232, %v2231
      %v2246 = vpack.c.b16 %v2234, %v2233
      %v2247 = vpack.c.b16 %v2236, %v2235
      %v2248 = vpack.c.b16 %v2238, %v2237
      %v2249 = vpack.c.b16 %v2240, %v2239
      %v2250 = vpack.c.b16 %v2242, %v2241
      %2259 = vmatprep.subr.bf16.mxu0 0
      %2260 = vmatpush1.bf16.msra.mxu0 %v2243
      %2261 = vmatprep.subr.bf16.mxu0 0
      %2262 = vmatpush1.bf16.msra.mxu0 %v2244
      %2263 = vmatprep.subr.bf16.mxu0 0
      %2264 = vmatpush1.bf16.msra.mxu0 %v2245
      %2265 = vmatprep.subr.bf16.mxu0 0
      %2266 = vmatpush1.bf16.msra.mxu0 %v2246
      %2267 = vmatprep.subr.bf16.mxu0 0
      %2268 = vmatpush1.bf16.msra.mxu0 %v2247
      %2269 = vmatprep.subr.bf16.mxu0 0
      %2270 = vmatpush1.bf16.msra.mxu0 %v2248
      %2271 = vmatprep.subr.bf16.mxu0 0
      %2272 = vmatpush1.bf16.msra.mxu0 %v2249
      %2273 = vmatprep.subr.bf16.mxu0 0
      %2274 = vmatpush1.bf16.msra.mxu0 %v2250
      %2275 = vmatprep.subr.bf16.mxu0 0
      %2276 = vmatpush1.bf16.msra.mxu0 0
      %2277 = vmatprep.subr.bf16.mxu0 0
      %2278 = vmatpush1.bf16.msra.mxu0 0
      %2279 = vmatprep.subr.bf16.mxu0 0
      %2280 = vmatpush1.bf16.msra.mxu0 0
      %2281 = vmatprep.subr.bf16.mxu0 0
      %2282 = vmatpush1.bf16.msra.mxu0 0
      %2283 = vmatprep.subr.bf16.mxu0 0
      %2284 = vmatpush1.bf16.msra.mxu0 0
      %2285 = vmatprep.subr.bf16.mxu0 0
      %2286 = vmatpush1.bf16.msra.mxu0 0
      %2287 = vmatprep.subr.bf16.mxu0 0
      %2288 = vmatpush1.bf16.msra.mxu0 0
      %2289 = vmatprep.subr.bf16.mxu0 0
      %2290 = vmatpush1.bf16.msra.mxu0 0
      %2291 = vmatprep.mubr.bf16.mxu0 0
      %2292 = vmatmul.mubr.bf16.gmra.mrb[0].mxu0 %v2191
      %v2293 = vpop.f32.mrb[0].mxu0
      %v2294 = vadd.f32 0.0, %v2293
      %v2295 = vpop.f32.mrb[0].mxu0
      %v2296 = vpop.f32.mrb[0].mxu0
      %v2297 = vadd.f32 0.0, %v2296
      %v2298 = vpop.f32.mrb[0].mxu0
      %2299 = vmatprep.mubr.bf16.mxu0 0
      %2300 = vmatmul.mubr.bf16.gmra.mrb[0].mxu0 %v2192
      %v2301 = vpop.f32.mrb[0].mxu0
      %v2302 = vadd.f32 0.0, %v2301
      %v2303 = vpop.f32.mrb[0].mxu0
      %v2304 = vpop.f32.mrb[0].mxu0
      %v2305 = vadd.f32 0.0, %v2304
      %v2306 = vpop.f32.mrb[0].mxu0
      %2307 = vmatprep.mubr.bf16.mxu0 0
      %2308 = vmatmul.mubr.bf16.gmra.mrb[0].mxu0 %v2193
      %v2309 = vpop.f32.mrb[0].mxu0
      %v2310 = vadd.f32 0.0, %v2309
      %v2311 = vpop.f32.mrb[0].mxu0
      %v2312 = vpop.f32.mrb[0].mxu0
      %v2313 = vadd.f32 0.0, %v2312
      %v2314 = vpop.f32.mrb[0].mxu0
      %2315 = vmatprep.mubr.bf16.mxu0 0
      %2316 = vmatmul.mubr.bf16.gmra.mrb[0].mxu0 %v2194
      %v2317 = vpop.f32.mrb[0].mxu0
      %v2318 = vadd.f32 0.0, %v2317
      %v2319 = vpop.f32.mrb[0].mxu0
      %v2320 = vpop.f32.mrb[0].mxu0
      %v2321 = vadd.f32 0.0, %v2320
      %v2322 = vpop.f32.mrb[0].mxu0
      %2323 = vmatprep.mubr.bf16.mxu0 0
      %2324 = vmatmul.mubr.bf16.gmra.mrb[0].mxu0 %v2195
      %v2325 = vpop.f32.mrb[0].mxu0
      %v2326 = vadd.f32 0.0, %v2325
      %v2327 = vpop.f32.mrb[0].mxu0
      %v2328 = vpop.f32.mrb[0].mxu0
      %v2329 = vadd.f32 0.0, %v2328
      %v2330 = vpop.f32.mrb[0].mxu0
      %2331 = vmatprep.mubr.bf16.mxu0 0
      %2332 = vmatmul.mubr.bf16.gmra.mrb[0].mxu0 %v2196
      %v2333 = vpop.f32.mrb[0].mxu0
      %v2334 = vadd.f32 0.0, %v2333
      %v2335 = vpop.f32.mrb[0].mxu0
      %v2336 = vpop.f32.mrb[0].mxu0
      %v2337 = vadd.f32 0.0, %v2336
      %v2338 = vpop.f32.mrb[0].mxu0
      %2339 = vmatprep.mubr.bf16.mxu0 0
      %2340 = vmatmul.mubr.bf16.gmra.mrb[0].mxu0 %v2197
      %v2341 = vpop.f32.mrb[0].mxu0
      %v2342 = vadd.f32 0.0, %v2341
      %v2343 = vpop.f32.mrb[0].mxu0
      %v2344 = vpop.f32.mrb[0].mxu0
      %v2345 = vadd.f32 0.0, %v2344
      %v2346 = vpop.f32.mrb[0].mxu0
      %2347 = vmatprep.mubr.bf16.mxu0 0
      %2348 = vmatmul.mubr.bf16.gmra.mrb[0].mxu0 %v2198
      %v2349 = vpop.f32.mrb[0].mxu0
      %v2350 = vadd.f32 0.0, %v2349
      %v2351 = vpop.f32.mrb[0].mxu0
      %v2352 = vpop.f32.mrb[0].mxu0
      %v2353 = vadd.f32 0.0, %v2352
      %v2354 = vpop.f32.mrb[0].mxu0
      %2355 = vmatprep.mubr.bf16.mxu0 0
      %2356 = vmatmul.mubr.bf16.gmra.mrb[0].mxu0 %v2199
      %v2357 = vpop.f32.mrb[0].mxu0
      %v2358 = vadd.f32 0.0, %v2357
      %v2359 = vpop.f32.mrb[0].mxu0
      %v2360 = vpop.f32.mrb[0].mxu0
      %v2361 = vadd.f32 0.0, %v2360
      %v2362 = vpop.f32.mrb[0].mxu0
      %2363 = vmatprep.mubr.bf16.mxu0 0
      %2364 = vmatmul.mubr.bf16.gmra.mrb[0].mxu0 %v2200
      %v2365 = vpop.f32.mrb[0].mxu0
      %v2366 = vadd.f32 0.0, %v2365
      %v2367 = vpop.f32.mrb[0].mxu0
      %v2368 = vpop.f32.mrb[0].mxu0
      %v2369 = vadd.f32 0.0, %v2368
      %v2370 = vpop.f32.mrb[0].mxu0
      %2371 = vdwg.mxu0
      %v2372 = vadd.f32 %v2054, %v2294
      %v2373 = vadd.f32 %v2055, %v2297
      %v2374 = vadd.f32 %v2056, %v2302
      %v2375 = vadd.f32 %v2057, %v2305
      %v2376 = vadd.f32 %v2058, %v2310
      %v2377 = vadd.f32 %v2059, %v2313
      %v2378 = vadd.f32 %v2060, %v2318
      %v2379 = vadd.f32 %v2061, %v2321
      %v2380 = vadd.f32 %v2062, %v2326
      %v2381 = vadd.f32 %v2063, %v2329
      %v2382 = vadd.f32 %v2064, %v2334
      %v2383 = vadd.f32 %v2065, %v2337
      %v2384 = vadd.f32 %v2066, %v2342
      %v2385 = vadd.f32 %v2067, %v2345
      %v2386 = vadd.f32 %v2068, %v2350
      %v2387 = vadd.f32 %v2069, %v2353
      %v2388 = vadd.f32 %v2070, %v2358
      %v2389 = vadd.f32 %v2071, %v2361
      %v2390 = vadd.f32 %v2072, %v2366
      %v2391 = vadd.f32 %v2073, %v2369
      %s2392 = sadd.s32 %s251, 2
      %s2393 = smul.u32 %s2392, 3
      %s2394 = smul.addr %s2393, 4
      %s2395 = scalar_lea.vmem %s238, %s2394
      %v2396 = vld [vmem:[%s2395] sm:$0xf]
      %v2397 = vld [vmem:[%s2395 + $0x4] sm:$0xf]
      %v2398 = vld [vmem:[%s2395 + $0x8] sm:$0x1]
      %v2399 = vld [vmem:[%s2395 + $0xc] sm:$0xf]
      %v2400 = vld [vmem:[%s2395 + $0x10] sm:$0xf]
      %v2401 = vld [vmem:[%s2395 + $0x14] sm:$0x1]
      %v2402 = vld [vmem:[%s2395 + $0x18] sm:$0xf]
      %v2403 = vld [vmem:[%s2395 + $0x1c] sm:$0xf]
      %v2404 = vld [vmem:[%s2395 + $0x20] sm:$0x1]
      %v2405 = vld [vmem:[%s2395 + $0x24] sm:$0xf]
      %v2406 = vld [vmem:[%s2395 + $0x28] sm:$0xf]
      %v2407 = vld [vmem:[%s2395 + $0x2c] sm:$0x1]
      %v2408 = vld [vmem:[%s2395 + $0x30] sm:$0xf]
      %v2409 = vld [vmem:[%s2395 + $0x34] sm:$0xf]
      %v2410 = vld [vmem:[%s2395 + $0x38] sm:$0x1]
      %v2411 = vld [vmem:[%s2395 + $0x3c] sm:$0xf]
      %v2412 = vld [vmem:[%s2395 + $0x40] sm:$0xf]
      %v2413 = vld [vmem:[%s2395 + $0x44] sm:$0x1]
      %v2414 = vld [vmem:[%s2395 + $0x48] sm:$0xf]
      %v2415 = vld [vmem:[%s2395 + $0x4c] sm:$0xf]
      %v2416 = vld [vmem:[%s2395 + $0x50] sm:$0x1]
      %v2417 = vld [vmem:[%s2395 + $0x54] sm:$0xf]
      %v2418 = vld [vmem:[%s2395 + $0x58] sm:$0xf]
      %v2419 = vld [vmem:[%s2395 + $0x5c] sm:$0x1]
      %v2420 = vld [vmem:[%s2395 + $0x60] sm:$0xf]
      %v2421 = vld [vmem:[%s2395 + $0x64] sm:$0xf]
      %v2422 = vld [vmem:[%s2395 + $0x68] sm:$0x1]
      %v2423 = vld [vmem:[%s2395 + $0x6c] sm:$0xf]
      %v2424 = vld [vmem:[%s2395 + $0x70] sm:$0xf]
      %v2425 = vld [vmem:[%s2395 + $0x74] sm:$0x1]
      %s2426 = scalar_lea.vmem %s1, 384
      %v2427 = vld [vmem:[%s2426] sm:$0xf]
      %v2428 = vld [vmem:[%s2426 + $0x4] sm:$0xf]
      %v2429 = vld [vmem:[%s2426 + $0x8] sm:$0xf]
      %v2430 = vld [vmem:[%s2426 + $0xc] sm:$0xf]
      %v2431 = vld [vmem:[%s2426 + $0x10] sm:$0xf]
      %v2432 = vld [vmem:[%s2426 + $0x14] sm:$0xf]
      %v2433 = vld [vmem:[%s2426 + $0x18] sm:$0xf]
      %v2434 = vld [vmem:[%s2426 + $0x1c] sm:$0xf]
      %v2435 = vld [vmem:[%s2426 + $0x20] sm:$0xf]
      %v2436 = vld [vmem:[%s2426 + $0x24] sm:$0xf]
      %v2437 = vld [vmem:[%s2426 + $0x28] sm:$0xf]
      %v2438 = vld [vmem:[%s2426 + $0x2c] sm:$0xf]
      %v2439 = vld [vmem:[%s2426 + $0x30] sm:$0xf]
      %v2440 = vld [vmem:[%s2426 + $0x34] sm:$0xf]
      %v2441 = vld [vmem:[%s2426 + $0x38] sm:$0xf]
      %v2442 = vld [vmem:[%s2426 + $0x3c] sm:$0xf]
      %v2463 = vunpack.c.l.b16 %v2396
      %v2464 = vunpack.c.l.b16 %v2397
      %v2465 = vunpack.c.l.b16 %v2399
      %v2466 = vunpack.c.l.b16 %v2400
      %v2467 = vunpack.c.l.b16 %v2402
      %v2468 = vunpack.c.l.b16 %v2403
      %v2469 = vunpack.c.l.b16 %v2405
      %v2470 = vunpack.c.l.b16 %v2406
      %v2471 = vunpack.c.l.b16 %v2408
      %v2472 = vunpack.c.l.b16 %v2409
      %v2473 = vunpack.c.l.b16 %v2411
      %v2474 = vunpack.c.l.b16 %v2412
      %v2475 = vunpack.c.l.b16 %v2414
      %v2476 = vunpack.c.l.b16 %v2415
      %v2477 = vunpack.c.l.b16 %v2417
      %v2478 = vunpack.c.l.b16 %v2418
      %v2479 = vunpack.c.l.b16 %v2420
      %v2480 = vunpack.c.l.b16 %v2421
      %v2481 = vunpack.c.l.b16 %v2423
      %v2482 = vunpack.c.l.b16 %v2424
      %v2483 = vpack.c.b16 %v2464, %v2463
      %v2484 = vpack.c.b16 %v2466, %v2465
      %v2485 = vpack.c.b16 %v2468, %v2467
      %v2486 = vpack.c.b16 %v2470, %v2469
      %v2487 = vpack.c.b16 %v2472, %v2471
      %v2488 = vpack.c.b16 %v2474, %v2473
      %v2489 = vpack.c.b16 %v2476, %v2475
      %v2490 = vpack.c.b16 %v2478, %v2477
      %v2491 = vpack.c.b16 %v2480, %v2479
      %v2492 = vpack.c.b16 %v2482, %v2481
      %v2519 = vunpack.c.l.b16 %v2427
      %v2520 = vunpack.c.l.b16 %v2428
      %v2521 = vunpack.c.l.b16 %v2429
      %v2522 = vunpack.c.l.b16 %v2430
      %v2523 = vunpack.c.l.b16 %v2431
      %v2524 = vunpack.c.l.b16 %v2432
      %v2525 = vunpack.c.l.b16 %v2433
      %v2526 = vunpack.c.l.b16 %v2434
      %v2527 = vunpack.c.l.b16 %v2435
      %v2528 = vunpack.c.l.b16 %v2436
      %v2529 = vunpack.c.l.b16 %v2437
      %v2530 = vunpack.c.l.b16 %v2438
      %v2531 = vunpack.c.l.b16 %v2439
      %v2532 = vunpack.c.l.b16 %v2440
      %v2533 = vunpack.c.l.b16 %v2441
      %v2534 = vunpack.c.l.b16 %v2442
      %v2535 = vpack.c.b16 %v2520, %v2519
      %v2536 = vpack.c.b16 %v2522, %v2521
      %v2537 = vpack.c.b16 %v2524, %v2523
      %v2538 = vpack.c.b16 %v2526, %v2525
      %v2539 = vpack.c.b16 %v2528, %v2527
      %v2540 = vpack.c.b16 %v2530, %v2529
      %v2541 = vpack.c.b16 %v2532, %v2531
      %v2542 = vpack.c.b16 %v2534, %v2533
      %2551 = vmatprep.subr.bf16.mxu0 0
      %2552 = vmatpush1.bf16.msra.mxu0 %v2535
      %2553 = vmatprep.subr.bf16.mxu0 0
      %2554 = vmatpush1.bf16.msra.mxu0 %v2536
      %2555 = vmatprep.subr.bf16.mxu0 0
      %2556 = vmatpush1.bf16.msra.mxu0 %v2537
      %2557 = vmatprep.subr.bf16.mxu0 0
      %2558 = vmatpush1.bf16.msra.mxu0 %v2538
      %2559 = vmatprep.subr.bf16.mxu0 0
      %2560 = vmatpush1.bf16.msra.mxu0 %v2539
      %2561 = vmatprep.subr.bf16.mxu0 0
      %2562 = vmatpush1.bf16.msra.mxu0 %v2540
      %2563 = vmatprep.subr.bf16.mxu0 0
      %2564 = vmatpush1.bf16.msra.mxu0 %v2541
      %2565 = vmatprep.subr.bf16.mxu0 0
      %2566 = vmatpush1.bf16.msra.mxu0 %v2542
      %2567 = vmatprep.subr.bf16.mxu0 0
      %2568 = vmatpush1.bf16.msra.mxu0 0
      %2569 = vmatprep.subr.bf16.mxu0 0
      %2570 = vmatpush1.bf16.msra.mxu0 0
      %2571 = vmatprep.subr.bf16.mxu0 0
      %2572 = vmatpush1.bf16.msra.mxu0 0
      %2573 = vmatprep.subr.bf16.mxu0 0
      %2574 = vmatpush1.bf16.msra.mxu0 0
      %2575 = vmatprep.subr.bf16.mxu0 0
      %2576 = vmatpush1.bf16.msra.mxu0 0
      %2577 = vmatprep.subr.bf16.mxu0 0
      %2578 = vmatpush1.bf16.msra.mxu0 0
      %2579 = vmatprep.subr.bf16.mxu0 0
      %2580 = vmatpush1.bf16.msra.mxu0 0
      %2581 = vmatprep.subr.bf16.mxu0 0
      %2582 = vmatpush1.bf16.msra.mxu0 0
      %2583 = vmatprep.mubr.bf16.mxu0 0
      %2584 = vmatmul.mubr.bf16.gmra.mrb[0].mxu0 %v2483
      %v2585 = vpop.f32.mrb[0].mxu0
      %v2586 = vadd.f32 0.0, %v2585
      %v2587 = vpop.f32.mrb[0].mxu0
      %v2588 = vpop.f32.mrb[0].mxu0
      %v2589 = vadd.f32 0.0, %v2588
      %v2590 = vpop.f32.mrb[0].mxu0
      %2591 = vmatprep.mubr.bf16.mxu0 0
      %2592 = vmatmul.mubr.bf16.gmra.mrb[0].mxu0 %v2484
      %v2593 = vpop.f32.mrb[0].mxu0
      %v2594 = vadd.f32 0.0, %v2593
      %v2595 = vpop.f32.mrb[0].mxu0
      %v2596 = vpop.f32.mrb[0].mxu0
      %v2597 = vadd.f32 0.0, %v2596
      %v2598 = vpop.f32.mrb[0].mxu0
      %2599 = vmatprep.mubr.bf16.mxu0 0
      %2600 = vmatmul.mubr.bf16.gmra.mrb[0].mxu0 %v2485
      %v2601 = vpop.f32.mrb[0].mxu0
      %v2602 = vadd.f32 0.0, %v2601
      %v2603 = vpop.f32.mrb[0].mxu0
      %v2604 = vpop.f32.mrb[0].mxu0
      %v2605 = vadd.f32 0.0, %v2604
      %v2606 = vpop.f32.mrb[0].mxu0
      %2607 = vmatprep.mubr.bf16.mxu0 0
      %2608 = vmatmul.mubr.bf16.gmra.mrb[0].mxu0 %v2486
      %v2609 = vpop.f32.mrb[0].mxu0
      %v2610 = vadd.f32 0.0, %v2609
      %v2611 = vpop.f32.mrb[0].mxu0
      %v2612 = vpop.f32.mrb[0].mxu0
      %v2613 = vadd.f32 0.0, %v2612
      %v2614 = vpop.f32.mrb[0].mxu0
      %2615 = vmatprep.mubr.bf16.mxu0 0
      %2616 = vmatmul.mubr.bf16.gmra.mrb[0].mxu0 %v2487
      %v2617 = vpop.f32.mrb[0].mxu0
      %v2618 = vadd.f32 0.0, %v2617
      %v2619 = vpop.f32.mrb[0].mxu0
      %v2620 = vpop.f32.mrb[0].mxu0
      %v2621 = vadd.f32 0.0, %v2620
      %v2622 = vpop.f32.mrb[0].mxu0
      %2623 = vmatprep.mubr.bf16.mxu0 0
      %2624 = vmatmul.mubr.bf16.gmra.mrb[0].mxu0 %v2488
      %v2625 = vpop.f32.mrb[0].mxu0
      %v2626 = vadd.f32 0.0, %v2625
      %v2627 = vpop.f32.mrb[0].mxu0
      %v2628 = vpop.f32.mrb[0].mxu0
      %v2629 = vadd.f32 0.0, %v2628
      %v2630 = vpop.f32.mrb[0].mxu0
      %2631 = vmatprep.mubr.bf16.mxu0 0
      %2632 = vmatmul.mubr.bf16.gmra.mrb[0].mxu0 %v2489
      %v2633 = vpop.f32.mrb[0].mxu0
      %v2634 = vadd.f32 0.0, %v2633
      %v2635 = vpop.f32.mrb[0].mxu0
      %v2636 = vpop.f32.mrb[0].mxu0
      %v2637 = vadd.f32 0.0, %v2636
      %v2638 = vpop.f32.mrb[0].mxu0
      %2639 = vmatprep.mubr.bf16.mxu0 0
      %2640 = vmatmul.mubr.bf16.gmra.mrb[0].mxu0 %v2490
      %v2641 = vpop.f32.mrb[0].mxu0
      %v2642 = vadd.f32 0.0, %v2641
      %v2643 = vpop.f32.mrb[0].mxu0
      %v2644 = vpop.f32.mrb[0].mxu0
      %v2645 = vadd.f32 0.0, %v2644
      %v2646 = vpop.f32.mrb[0].mxu0
      %2647 = vmatprep.mubr.bf16.mxu0 0
      %2648 = vmatmul.mubr.bf16.gmra.mrb[0].mxu0 %v2491
      %v2649 = vpop.f32.mrb[0].mxu0
      %v2650 = vadd.f32 0.0, %v2649
      %v2651 = vpop.f32.mrb[0].mxu0
      %v2652 = vpop.f32.mrb[0].mxu0
      %v2653 = vadd.f32 0.0, %v2652
      %v2654 = vpop.f32.mrb[0].mxu0
      %2655 = vmatprep.mubr.bf16.mxu0 0
      %2656 = vmatmul.mubr.bf16.gmra.mrb[0].mxu0 %v2492
      %v2657 = vpop.f32.mrb[0].mxu0
      %v2658 = vadd.f32 0.0, %v2657
      %v2659 = vpop.f32.mrb[0].mxu0
      %v2660 = vpop.f32.mrb[0].mxu0
      %v2661 = vadd.f32 0.0, %v2660
      %v2662 = vpop.f32.mrb[0].mxu0
      %2663 = vdwg.mxu0
      %v2664 = vadd.f32 %v2372, %v2586
      %v2665 = vadd.f32 %v2373, %v2589
      %v2666 = vadd.f32 %v2374, %v2594
      %v2667 = vadd.f32 %v2375, %v2597
      %v2668 = vadd.f32 %v2376, %v2602
      %v2669 = vadd.f32 %v2377, %v2605
      %v2670 = vadd.f32 %v2378, %v2610
      %v2671 = vadd.f32 %v2379, %v2613
      %v2672 = vadd.f32 %v2380, %v2618
      %v2673 = vadd.f32 %v2381, %v2621
      %v2674 = vadd.f32 %v2382, %v2626
      %v2675 = vadd.f32 %v2383, %v2629
      %v2676 = vadd.f32 %v2384, %v2634
      %v2677 = vadd.f32 %v2385, %v2637
      %v2678 = vadd.f32 %v2386, %v2642
      %v2679 = vadd.f32 %v2387, %v2645
      %v2680 = vadd.f32 %v2388, %v2650
      %v2681 = vadd.f32 %v2389, %v2653
      %v2682 = vadd.f32 %v2390, %v2658
      %v2683 = vadd.f32 %v2391, %v2661
      %v2685 = vshrl.u32 %v2396, 16
      %v2687 = vrot.slane %v2685, 4
      %v2688 = vshll.u32 %v2396, 16
      %v2690 = vrot.slane %v2688, 5
      %v2691 = vor.u32 %v2687, %v2690
      %v2692 = vrot.slane %v2691, 4
      %v2694 = vshll.u32 %v2397, 16
      %v2696 = vrot.slane %v2694, 5
      %v2697 = vsel %vm303, %v2692, %v2696
      %v2698 = vshrl.u32 %v2397, 16
      %v2700 = vrot.slane %v2698, 4
      %v2701 = vor.u32 %v2700, %v2696
      %v2702 = vrot.slane %v2701, 4
      %v2704 = vshll.u32 %v2398, 16
      %v2706 = vrot.slane %v2704, 5
      %v2707 = vsel %vm303, %v2702, %v2706
      %v2709 = vshrl.u32 %v2399, 16
      %v2711 = vrot.slane %v2709, 4
      %v2712 = vshll.u32 %v2399, 16
      %v2714 = vrot.slane %v2712, 5
      %v2715 = vor.u32 %v2711, %v2714
      %v2716 = vrot.slane %v2715, 4
      %v2718 = vshll.u32 %v2400, 16
      %v2720 = vrot.slane %v2718, 5
      %v2721 = vsel %vm303, %v2716, %v2720
      %v2722 = vshrl.u32 %v2400, 16
      %v2724 = vrot.slane %v2722, 4
      %v2725 = vor.u32 %v2724, %v2720
      %v2726 = vrot.slane %v2725, 4
      %v2728 = vshll.u32 %v2401, 16
      %v2730 = vrot.slane %v2728, 5
      %v2731 = vsel %vm303, %v2726, %v2730
      %v2733 = vshrl.u32 %v2402, 16
      %v2735 = vrot.slane %v2733, 4
      %v2736 = vshll.u32 %v2402, 16
      %v2738 = vrot.slane %v2736, 5
      %v2739 = vor.u32 %v2735, %v2738
      %v2740 = vrot.slane %v2739, 4
      %v2742 = vshll.u32 %v2403, 16
      %v2744 = vrot.slane %v2742, 5
      %v2745 = vsel %vm303, %v2740, %v2744
      %v2746 = vshrl.u32 %v2403, 16
      %v2748 = vrot.slane %v2746, 4
      %v2749 = vor.u32 %v2748, %v2744
      %v2750 = vrot.slane %v2749, 4
      %v2752 = vshll.u32 %v2404, 16
      %v2754 = vrot.slane %v2752, 5
      %v2755 = vsel %vm303, %v2750, %v2754
      %v2757 = vshrl.u32 %v2405, 16
      %v2759 = vrot.slane %v2757, 4
      %v2760 = vshll.u32 %v2405, 16
      %v2762 = vrot.slane %v2760, 5
      %v2763 = vor.u32 %v2759, %v2762
      %v2764 = vrot.slane %v2763, 4
      %v2766 = vshll.u32 %v2406, 16
      %v2768 = vrot.slane %v2766, 5
      %v2769 = vsel %vm303, %v2764, %v2768
      %v2770 = vshrl.u32 %v2406, 16
      %v2772 = vrot.slane %v2770, 4
      %v2773 = vor.u32 %v2772, %v2768
      %v2774 = vrot.slane %v2773, 4
      %v2776 = vshll.u32 %v2407, 16
      %v2778 = vrot.slane %v2776, 5
      %v2779 = vsel %vm303, %v2774, %v2778
      %v2781 = vshrl.u32 %v2408, 16
      %v2783 = vrot.slane %v2781, 4
      %v2784 = vshll.u32 %v2408, 16
      %v2786 = vrot.slane %v2784, 5
      %v2787 = vor.u32 %v2783, %v2786
      %v2788 = vrot.slane %v2787, 4
      %v2790 = vshll.u32 %v2409, 16
      %v2792 = vrot.slane %v2790, 5
      %v2793 = vsel %vm303, %v2788, %v2792
      %v2794 = vshrl.u32 %v2409, 16
      %v2796 = vrot.slane %v2794, 4
      %v2797 = vor.u32 %v2796, %v2792
      %v2798 = vrot.slane %v2797, 4
      %v2800 = vshll.u32 %v2410, 16
      %v2802 = vrot.slane %v2800, 5
      %v2803 = vsel %vm303, %v2798, %v2802
      %v2805 = vshrl.u32 %v2411, 16
      %v2807 = vrot.slane %v2805, 4
      %v2808 = vshll.u32 %v2411, 16
      %v2810 = vrot.slane %v2808, 5
      %v2811 = vor.u32 %v2807, %v2810
      %v2812 = vrot.slane %v2811, 4
      %v2814 = vshll.u32 %v2412, 16
      %v2816 = vrot.slane %v2814, 5
      %v2817 = vsel %vm303, %v2812, %v2816
      %v2818 = vshrl.u32 %v2412, 16
      %v2820 = vrot.slane %v2818, 4
      %v2821 = vor.u32 %v2820, %v2816
      %v2822 = vrot.slane %v2821, 4
      %v2824 = vshll.u32 %v2413, 16
      %v2826 = vrot.slane %v2824, 5
      %v2827 = vsel %vm303, %v2822, %v2826
      %v2829 = vshrl.u32 %v2414, 16
      %v2831 = vrot.slane %v2829, 4
      %v2832 = vshll.u32 %v2414, 16
      %v2834 = vrot.slane %v2832, 5
      %v2835 = vor.u32 %v2831, %v2834
      %v2836 = vrot.slane %v2835, 4
      %v2838 = vshll.u32 %v2415, 16
      %v2840 = vrot.slane %v2838, 5
      %v2841 = vsel %vm303, %v2836, %v2840
      %v2842 = vshrl.u32 %v2415, 16
      %v2844 = vrot.slane %v2842, 4
      %v2845 = vor.u32 %v2844, %v2840
      %v2846 = vrot.slane %v2845, 4
      %v2848 = vshll.u32 %v2416, 16
      %v2850 = vrot.slane %v2848, 5
      %v2851 = vsel %vm303, %v2846, %v2850
      %v2853 = vshrl.u32 %v2417, 16
      %v2855 = vrot.slane %v2853, 4
      %v2856 = vshll.u32 %v2417, 16
      %v2858 = vrot.slane %v2856, 5
      %v2859 = vor.u32 %v2855, %v2858
      %v2860 = vrot.slane %v2859, 4
      %v2862 = vshll.u32 %v2418, 16
      %v2864 = vrot.slane %v2862, 5
      %v2865 = vsel %vm303, %v2860, %v2864
      %v2866 = vshrl.u32 %v2418, 16
      %v2868 = vrot.slane %v2866, 4
      %v2869 = vor.u32 %v2868, %v2864
      %v2870 = vrot.slane %v2869, 4
      %v2872 = vshll.u32 %v2419, 16
      %v2874 = vrot.slane %v2872, 5
      %v2875 = vsel %vm303, %v2870, %v2874
      %v2877 = vshrl.u32 %v2420, 16
      %v2879 = vrot.slane %v2877, 4
      %v2880 = vshll.u32 %v2420, 16
      %v2882 = vrot.slane %v2880, 5
      %v2883 = vor.u32 %v2879, %v2882
      %v2884 = vrot.slane %v2883, 4
      %v2886 = vshll.u32 %v2421, 16
      %v2888 = vrot.slane %v2886, 5
      %v2889 = vsel %vm303, %v2884, %v2888
      %v2890 = vshrl.u32 %v2421, 16
      %v2892 = vrot.slane %v2890, 4
      %v2893 = vor.u32 %v2892, %v2888
      %v2894 = vrot.slane %v2893, 4
      %v2896 = vshll.u32 %v2422, 16
      %v2898 = vrot.slane %v2896, 5
      %v2899 = vsel %vm303, %v2894, %v2898
      %v2901 = vshrl.u32 %v2423, 16
      %v2903 = vrot.slane %v2901, 4
      %v2904 = vshll.u32 %v2423, 16
      %v2906 = vrot.slane %v2904, 5
      %v2907 = vor.u32 %v2903, %v2906
      %v2908 = vrot.slane %v2907, 4
      %v2910 = vshll.u32 %v2424, 16
      %v2912 = vrot.slane %v2910, 5
      %v2913 = vsel %vm303, %v2908, %v2912
      %v2914 = vshrl.u32 %v2424, 16
      %v2916 = vrot.slane %v2914, 4
      %v2917 = vor.u32 %v2916, %v2912
      %v2918 = vrot.slane %v2917, 4
      %v2920 = vshll.u32 %v2425, 16
      %v2922 = vrot.slane %v2920, 5
      %v2923 = vsel %vm303, %v2918, %v2922
      %s2924 = scalar_lea.vmem %s1, 448
      %v2925 = vld [vmem:[%s2924] sm:$0xf]
      %v2926 = vld [vmem:[%s2924 + $0x4] sm:$0xf]
      %v2927 = vld [vmem:[%s2924 + $0x8] sm:$0xf]
      %v2928 = vld [vmem:[%s2924 + $0xc] sm:$0xf]
      %v2929 = vld [vmem:[%s2924 + $0x10] sm:$0xf]
      %v2930 = vld [vmem:[%s2924 + $0x14] sm:$0xf]
      %v2931 = vld [vmem:[%s2924 + $0x18] sm:$0xf]
      %v2932 = vld [vmem:[%s2924 + $0x1c] sm:$0xf]
      %v2933 = vld [vmem:[%s2924 + $0x20] sm:$0xf]
      %v2934 = vld [vmem:[%s2924 + $0x24] sm:$0xf]
      %v2935 = vld [vmem:[%s2924 + $0x28] sm:$0xf]
      %v2936 = vld [vmem:[%s2924 + $0x2c] sm:$0xf]
      %v2937 = vld [vmem:[%s2924 + $0x30] sm:$0xf]
      %v2938 = vld [vmem:[%s2924 + $0x34] sm:$0xf]
      %v2939 = vld [vmem:[%s2924 + $0x38] sm:$0xf]
      %v2940 = vld [vmem:[%s2924 + $0x3c] sm:$0xf]
      %v2941 = vunpack.c.l.b16 %v2697
      %v2942 = vunpack.c.l.b16 %v2707
      %v2943 = vunpack.c.l.b16 %v2721
      %v2944 = vunpack.c.l.b16 %v2731
      %v2945 = vunpack.c.l.b16 %v2745
      %v2946 = vunpack.c.l.b16 %v2755
      %v2947 = vunpack.c.l.b16 %v2769
      %v2948 = vunpack.c.l.b16 %v2779
      %v2949 = vunpack.c.l.b16 %v2793
      %v2950 = vunpack.c.l.b16 %v2803
      %v2951 = vunpack.c.l.b16 %v2817
      %v2952 = vunpack.c.l.b16 %v2827
      %v2953 = vunpack.c.l.b16 %v2841
      %v2954 = vunpack.c.l.b16 %v2851
      %v2955 = vunpack.c.l.b16 %v2865
      %v2956 = vunpack.c.l.b16 %v2875
      %v2957 = vunpack.c.l.b16 %v2889
      %v2958 = vunpack.c.l.b16 %v2899
      %v2959 = vunpack.c.l.b16 %v2913
      %v2960 = vunpack.c.l.b16 %v2923
      %v2961 = vpack.c.b16 %v2942, %v2941
      %v2962 = vpack.c.b16 %v2944, %v2943
      %v2963 = vpack.c.b16 %v2946, %v2945
      %v2964 = vpack.c.b16 %v2948, %v2947
      %v2965 = vpack.c.b16 %v2950, %v2949
      %v2966 = vpack.c.b16 %v2952, %v2951
      %v2967 = vpack.c.b16 %v2954, %v2953
      %v2968 = vpack.c.b16 %v2956, %v2955
      %v2969 = vpack.c.b16 %v2958, %v2957
      %v2970 = vpack.c.b16 %v2960, %v2959
      %v2997 = vunpack.c.l.b16 %v2925
      %v2998 = vunpack.c.l.b16 %v2926
      %v2999 = vunpack.c.l.b16 %v2927
      %v3000 = vunpack.c.l.b16 %v2928
      %v3001 = vunpack.c.l.b16 %v2929
      %v3002 = vunpack.c.l.b16 %v2930
      %v3003 = vunpack.c.l.b16 %v2931
      %v3004 = vunpack.c.l.b16 %v2932
      %v3005 = vunpack.c.l.b16 %v2933
      %v3006 = vunpack.c.l.b16 %v2934
      %v3007 = vunpack.c.l.b16 %v2935
      %v3008 = vunpack.c.l.b16 %v2936
      %v3009 = vunpack.c.l.b16 %v2937
      %v3010 = vunpack.c.l.b16 %v2938
      %v3011 = vunpack.c.l.b16 %v2939
      %v3012 = vunpack.c.l.b16 %v2940
      %v3013 = vpack.c.b16 %v2998, %v2997
      %v3014 = vpack.c.b16 %v3000, %v2999
      %v3015 = vpack.c.b16 %v3002, %v3001
      %v3016 = vpack.c.b16 %v3004, %v3003
      %v3017 = vpack.c.b16 %v3006, %v3005
      %v3018 = vpack.c.b16 %v3008, %v3007
      %v3019 = vpack.c.b16 %v3010, %v3009
      %v3020 = vpack.c.b16 %v3012, %v3011
      %3029 = vmatprep.subr.bf16.mxu0 0
      %3030 = vmatpush1.bf16.msra.mxu0 %v3013
      %3031 = vmatprep.subr.bf16.mxu0 0
      %3032 = vmatpush1.bf16.msra.mxu0 %v3014
      %3033 = vmatprep.subr.bf16.mxu0 0
      %3034 = vmatpush1.bf16.msra.mxu0 %v3015
      %3035 = vmatprep.subr.bf16.mxu0 0
      %3036 = vmatpush1.bf16.msra.mxu0 %v3016
      %3037 = vmatprep.subr.bf16.mxu0 0
      %3038 = vmatpush1.bf16.msra.mxu0 %v3017
      %3039 = vmatprep.subr.bf16.mxu0 0
      %3040 = vmatpush1.bf16.msra.mxu0 %v3018
      %3041 = vmatprep.subr.bf16.mxu0 0
      %3042 = vmatpush1.bf16.msra.mxu0 %v3019
      %3043 = vmatprep.subr.bf16.mxu0 0
      %3044 = vmatpush1.bf16.msra.mxu0 %v3020
      %3045 = vmatprep.subr.bf16.mxu0 0
      %3046 = vmatpush1.bf16.msra.mxu0 0
      %3047 = vmatprep.subr.bf16.mxu0 0
      %3048 = vmatpush1.bf16.msra.mxu0 0
      %3049 = vmatprep.subr.bf16.mxu0 0
      %3050 = vmatpush1.bf16.msra.mxu0 0
      %3051 = vmatprep.subr.bf16.mxu0 0
      %3052 = vmatpush1.bf16.msra.mxu0 0
      %3053 = vmatprep.subr.bf16.mxu0 0
      %3054 = vmatpush1.bf16.msra.mxu0 0
      %3055 = vmatprep.subr.bf16.mxu0 0
      %3056 = vmatpush1.bf16.msra.mxu0 0
      %3057 = vmatprep.subr.bf16.mxu0 0
      %3058 = vmatpush1.bf16.msra.mxu0 0
      %3059 = vmatprep.subr.bf16.mxu0 0
      %3060 = vmatpush1.bf16.msra.mxu0 0
      %3061 = vmatprep.mubr.bf16.mxu0 0
      %3062 = vmatmul.mubr.bf16.gmra.mrb[0].mxu0 %v2961
      %v3063 = vpop.f32.mrb[0].mxu0
      %v3064 = vadd.f32 0.0, %v3063
      %v3065 = vpop.f32.mrb[0].mxu0
      %v3066 = vpop.f32.mrb[0].mxu0
      %v3067 = vadd.f32 0.0, %v3066
      %v3068 = vpop.f32.mrb[0].mxu0
      %3069 = vmatprep.mubr.bf16.mxu0 0
      %3070 = vmatmul.mubr.bf16.gmra.mrb[0].mxu0 %v2962
      %v3071 = vpop.f32.mrb[0].mxu0
      %v3072 = vadd.f32 0.0, %v3071
      %v3073 = vpop.f32.mrb[0].mxu0
      %v3074 = vpop.f32.mrb[0].mxu0
      %v3075 = vadd.f32 0.0, %v3074
      %v3076 = vpop.f32.mrb[0].mxu0
      %3077 = vmatprep.mubr.bf16.mxu0 0
      %3078 = vmatmul.mubr.bf16.gmra.mrb[0].mxu0 %v2963
      %v3079 = vpop.f32.mrb[0].mxu0
      %v3080 = vadd.f32 0.0, %v3079
      %v3081 = vpop.f32.mrb[0].mxu0
      %v3082 = vpop.f32.mrb[0].mxu0
      %v3083 = vadd.f32 0.0, %v3082
      %v3084 = vpop.f32.mrb[0].mxu0
      %3085 = vmatprep.mubr.bf16.mxu0 0
      %3086 = vmatmul.mubr.bf16.gmra.mrb[0].mxu0 %v2964
      %v3087 = vpop.f32.mrb[0].mxu0
      %v3088 = vadd.f32 0.0, %v3087
      %v3089 = vpop.f32.mrb[0].mxu0
      %v3090 = vpop.f32.mrb[0].mxu0
      %v3091 = vadd.f32 0.0, %v3090
      %v3092 = vpop.f32.mrb[0].mxu0
      %3093 = vmatprep.mubr.bf16.mxu0 0
      %3094 = vmatmul.mubr.bf16.gmra.mrb[0].mxu0 %v2965
      %v3095 = vpop.f32.mrb[0].mxu0
      %v3096 = vadd.f32 0.0, %v3095
      %v3097 = vpop.f32.mrb[0].mxu0
      %v3098 = vpop.f32.mrb[0].mxu0
      %v3099 = vadd.f32 0.0, %v3098
      %v3100 = vpop.f32.mrb[0].mxu0
      %3101 = vmatprep.mubr.bf16.mxu0 0
      %3102 = vmatmul.mubr.bf16.gmra.mrb[0].mxu0 %v2966
      %v3103 = vpop.f32.mrb[0].mxu0
      %v3104 = vadd.f32 0.0, %v3103
      %v3105 = vpop.f32.mrb[0].mxu0
      %v3106 = vpop.f32.mrb[0].mxu0
      %v3107 = vadd.f32 0.0, %v3106
      %v3108 = vpop.f32.mrb[0].mxu0
      %3109 = vmatprep.mubr.bf16.mxu0 0
      %3110 = vmatmul.mubr.bf16.gmra.mrb[0].mxu0 %v2967
      %v3111 = vpop.f32.mrb[0].mxu0
      %v3112 = vadd.f32 0.0, %v3111
      %v3113 = vpop.f32.mrb[0].mxu0
      %v3114 = vpop.f32.mrb[0].mxu0
      %v3115 = vadd.f32 0.0, %v3114
      %v3116 = vpop.f32.mrb[0].mxu0
      %3117 = vmatprep.mubr.bf16.mxu0 0
      %3118 = vmatmul.mubr.bf16.gmra.mrb[0].mxu0 %v2968
      %v3119 = vpop.f32.mrb[0].mxu0
      %v3120 = vadd.f32 0.0, %v3119
      %v3121 = vpop.f32.mrb[0].mxu0
      %v3122 = vpop.f32.mrb[0].mxu0
      %v3123 = vadd.f32 0.0, %v3122
      %v3124 = vpop.f32.mrb[0].mxu0
      %3125 = vmatprep.mubr.bf16.mxu0 0
      %3126 = vmatmul.mubr.bf16.gmra.mrb[0].mxu0 %v2969
      %v3127 = vpop.f32.mrb[0].mxu0
      %v3128 = vadd.f32 0.0, %v3127
      %v3129 = vpop.f32.mrb[0].mxu0
      %v3130 = vpop.f32.mrb[0].mxu0
      %v3131 = vadd.f32 0.0, %v3130
      %v3132 = vpop.f32.mrb[0].mxu0
      %3133 = vmatprep.mubr.bf16.mxu0 0
      %3134 = vmatmul.mubr.bf16.gmra.mrb[0].mxu0 %v2970
      %v3135 = vpop.f32.mrb[0].mxu0
      %v3136 = vadd.f32 0.0, %v3135
      %v3137 = vpop.f32.mrb[0].mxu0
      %v3138 = vpop.f32.mrb[0].mxu0
      %v3139 = vadd.f32 0.0, %v3138
      %v3140 = vpop.f32.mrb[0].mxu0
      %3141 = vdwg.mxu0
      %v3142 = vadd.f32 %v2664, %v3064
      %v3143 = vadd.f32 %v2665, %v3067
      %v3144 = vadd.f32 %v2666, %v3072
      %v3145 = vadd.f32 %v2667, %v3075
      %v3146 = vadd.f32 %v2668, %v3080
      %v3147 = vadd.f32 %v2669, %v3083
      %v3148 = vadd.f32 %v2670, %v3088
      %v3149 = vadd.f32 %v2671, %v3091
      %v3150 = vadd.f32 %v2672, %v3096
      %v3151 = vadd.f32 %v2673, %v3099
      %v3152 = vadd.f32 %v2674, %v3104
      %v3153 = vadd.f32 %v2675, %v3107
      %v3154 = vadd.f32 %v2676, %v3112
      %v3155 = vadd.f32 %v2677, %v3115
      %v3156 = vadd.f32 %v2678, %v3120
      %v3157 = vadd.f32 %v2679, %v3123
      %v3158 = vadd.f32 %v2680, %v3128
      %v3159 = vadd.f32 %v2681, %v3131
      %v3160 = vadd.f32 %v2682, %v3136
      %v3161 = vadd.f32 %v2683, %v3139
      %v3172 = vrot.slane %v2396, 5
      %v3173 = vrot.slane %v3172, 4
      %v3174 = vrot.slane %v2397, 5
      %v3175 = vsel %vm995, %v3173, %v3174
      %v3176 = vrot.slane %v3174, 4
      %v3177 = vrot.slane %v2398, 5
      %v3178 = vsel %vm995, %v3176, %v3177
      %v3179 = vrot.slane %v2399, 5
      %v3180 = vrot.slane %v3179, 4
      %v3181 = vrot.slane %v2400, 5
      %v3182 = vsel %vm995, %v3180, %v3181
      %v3183 = vrot.slane %v3181, 4
      %v3184 = vrot.slane %v2401, 5
      %v3185 = vsel %vm995, %v3183, %v3184
      %v3186 = vrot.slane %v2402, 5
      %v3187 = vrot.slane %v3186, 4
      %v3188 = vrot.slane %v2403, 5
      %v3189 = vsel %vm995, %v3187, %v3188
      %v3190 = vrot.slane %v3188, 4
      %v3191 = vrot.slane %v2404, 5
      %v3192 = vsel %vm995, %v3190, %v3191
      %v3193 = vrot.slane %v2405, 5
      %v3194 = vrot.slane %v3193, 4
      %v3195 = vrot.slane %v2406, 5
      %v3196 = vsel %vm995, %v3194, %v3195
      %v3197 = vrot.slane %v3195, 4
      %v3198 = vrot.slane %v2407, 5
      %v3199 = vsel %vm995, %v3197, %v3198
      %v3200 = vrot.slane %v2408, 5
      %v3201 = vrot.slane %v3200, 4
      %v3202 = vrot.slane %v2409, 5
      %v3203 = vsel %vm995, %v3201, %v3202
      %v3204 = vrot.slane %v3202, 4
      %v3205 = vrot.slane %v2410, 5
      %v3206 = vsel %vm995, %v3204, %v3205
      %v3207 = vrot.slane %v2411, 5
      %v3208 = vrot.slane %v3207, 4
      %v3209 = vrot.slane %v2412, 5
      %v3210 = vsel %vm995, %v3208, %v3209
      %v3211 = vrot.slane %v3209, 4
      %v3212 = vrot.slane %v2413, 5
      %v3213 = vsel %vm995, %v3211, %v3212
      %v3214 = vrot.slane %v2414, 5
      %v3215 = vrot.slane %v3214, 4
      %v3216 = vrot.slane %v2415, 5
      %v3217 = vsel %vm995, %v3215, %v3216
      %v3218 = vrot.slane %v3216, 4
      %v3219 = vrot.slane %v2416, 5
      %v3220 = vsel %vm995, %v3218, %v3219
      %v3221 = vrot.slane %v2417, 5
      %v3222 = vrot.slane %v3221, 4
      %v3223 = vrot.slane %v2418, 5
      %v3224 = vsel %vm995, %v3222, %v3223
      %v3225 = vrot.slane %v3223, 4
      %v3226 = vrot.slane %v2419, 5
      %v3227 = vsel %vm995, %v3225, %v3226
      %v3228 = vrot.slane %v2420, 5
      %v3229 = vrot.slane %v3228, 4
      %v3230 = vrot.slane %v2421, 5
      %v3231 = vsel %vm995, %v3229, %v3230
      %v3232 = vrot.slane %v3230, 4
      %v3233 = vrot.slane %v2422, 5
      %v3234 = vsel %vm995, %v3232, %v3233
      %v3235 = vrot.slane %v2423, 5
      %v3236 = vrot.slane %v3235, 4
      %v3237 = vrot.slane %v2424, 5
      %v3238 = vsel %vm995, %v3236, %v3237
      %v3239 = vrot.slane %v3237, 4
      %v3240 = vrot.slane %v2425, 5
      %v3241 = vsel %vm995, %v3239, %v3240
      %s3242 = scalar_lea.vmem %s1, 512
      %v3243 = vld [vmem:[%s3242] sm:$0xf]
      %v3244 = vld [vmem:[%s3242 + $0x4] sm:$0xf]
      %v3245 = vld [vmem:[%s3242 + $0x8] sm:$0xf]
      %v3246 = vld [vmem:[%s3242 + $0xc] sm:$0xf]
      %v3247 = vld [vmem:[%s3242 + $0x10] sm:$0xf]
      %v3248 = vld [vmem:[%s3242 + $0x14] sm:$0xf]
      %v3249 = vld [vmem:[%s3242 + $0x18] sm:$0xf]
      %v3250 = vld [vmem:[%s3242 + $0x1c] sm:$0xf]
      %v3251 = vld [vmem:[%s3242 + $0x20] sm:$0xf]
      %v3252 = vld [vmem:[%s3242 + $0x24] sm:$0xf]
      %v3253 = vld [vmem:[%s3242 + $0x28] sm:$0xf]
      %v3254 = vld [vmem:[%s3242 + $0x2c] sm:$0xf]
      %v3255 = vld [vmem:[%s3242 + $0x30] sm:$0xf]
      %v3256 = vld [vmem:[%s3242 + $0x34] sm:$0xf]
      %v3257 = vld [vmem:[%s3242 + $0x38] sm:$0xf]
      %v3258 = vld [vmem:[%s3242 + $0x3c] sm:$0xf]
      %v3259 = vunpack.c.l.b16 %v3175
      %v3260 = vunpack.c.l.b16 %v3178
      %v3261 = vunpack.c.l.b16 %v3182
      %v3262 = vunpack.c.l.b16 %v3185
      %v3263 = vunpack.c.l.b16 %v3189
      %v3264 = vunpack.c.l.b16 %v3192
      %v3265 = vunpack.c.l.b16 %v3196
      %v3266 = vunpack.c.l.b16 %v3199
      %v3267 = vunpack.c.l.b16 %v3203
      %v3268 = vunpack.c.l.b16 %v3206
      %v3269 = vunpack.c.l.b16 %v3210
      %v3270 = vunpack.c.l.b16 %v3213
      %v3271 = vunpack.c.l.b16 %v3217
      %v3272 = vunpack.c.l.b16 %v3220
      %v3273 = vunpack.c.l.b16 %v3224
      %v3274 = vunpack.c.l.b16 %v3227
      %v3275 = vunpack.c.l.b16 %v3231
      %v3276 = vunpack.c.l.b16 %v3234
      %v3277 = vunpack.c.l.b16 %v3238
      %v3278 = vunpack.c.l.b16 %v3241
      %v3279 = vpack.c.b16 %v3260, %v3259
      %v3280 = vpack.c.b16 %v3262, %v3261
      %v3281 = vpack.c.b16 %v3264, %v3263
      %v3282 = vpack.c.b16 %v3266, %v3265
      %v3283 = vpack.c.b16 %v3268, %v3267
      %v3284 = vpack.c.b16 %v3270, %v3269
      %v3285 = vpack.c.b16 %v3272, %v3271
      %v3286 = vpack.c.b16 %v3274, %v3273
      %v3287 = vpack.c.b16 %v3276, %v3275
      %v3288 = vpack.c.b16 %v3278, %v3277
      %v3315 = vunpack.c.l.b16 %v3243
      %v3316 = vunpack.c.l.b16 %v3244
      %v3317 = vunpack.c.l.b16 %v3245
      %v3318 = vunpack.c.l.b16 %v3246
      %v3319 = vunpack.c.l.b16 %v3247
      %v3320 = vunpack.c.l.b16 %v3248
      %v3321 = vunpack.c.l.b16 %v3249
      %v3322 = vunpack.c.l.b16 %v3250
      %v3323 = vunpack.c.l.b16 %v3251
      %v3324 = vunpack.c.l.b16 %v3252
      %v3325 = vunpack.c.l.b16 %v3253
      %v3326 = vunpack.c.l.b16 %v3254
      %v3327 = vunpack.c.l.b16 %v3255
      %v3328 = vunpack.c.l.b16 %v3256
      %v3329 = vunpack.c.l.b16 %v3257
      %v3330 = vunpack.c.l.b16 %v3258
      %v3331 = vpack.c.b16 %v3316, %v3315
      %v3332 = vpack.c.b16 %v3318, %v3317
      %v3333 = vpack.c.b16 %v3320, %v3319
      %v3334 = vpack.c.b16 %v3322, %v3321
      %v3335 = vpack.c.b16 %v3324, %v3323
      %v3336 = vpack.c.b16 %v3326, %v3325
      %v3337 = vpack.c.b16 %v3328, %v3327
      %v3338 = vpack.c.b16 %v3330, %v3329
      %3347 = vmatprep.subr.bf16.mxu0 0
      %3348 = vmatpush1.bf16.msra.mxu0 %v3331
      %3349 = vmatprep.subr.bf16.mxu0 0
      %3350 = vmatpush1.bf16.msra.mxu0 %v3332
      %3351 = vmatprep.subr.bf16.mxu0 0
      %3352 = vmatpush1.bf16.msra.mxu0 %v3333
      %3353 = vmatprep.subr.bf16.mxu0 0
      %3354 = vmatpush1.bf16.msra.mxu0 %v3334
      %3355 = vmatprep.subr.bf16.mxu0 0
      %3356 = vmatpush1.bf16.msra.mxu0 %v3335
      %3357 = vmatprep.subr.bf16.mxu0 0
      %3358 = vmatpush1.bf16.msra.mxu0 %v3336
      %3359 = vmatprep.subr.bf16.mxu0 0
      %3360 = vmatpush1.bf16.msra.mxu0 %v3337
      %3361 = vmatprep.subr.bf16.mxu0 0
      %3362 = vmatpush1.bf16.msra.mxu0 %v3338
      %3363 = vmatprep.subr.bf16.mxu0 0
      %3364 = vmatpush1.bf16.msra.mxu0 0
      %3365 = vmatprep.subr.bf16.mxu0 0
      %3366 = vmatpush1.bf16.msra.mxu0 0
      %3367 = vmatprep.subr.bf16.mxu0 0
      %3368 = vmatpush1.bf16.msra.mxu0 0
      %3369 = vmatprep.subr.bf16.mxu0 0
      %3370 = vmatpush1.bf16.msra.mxu0 0
      %3371 = vmatprep.subr.bf16.mxu0 0
      %3372 = vmatpush1.bf16.msra.mxu0 0
      %3373 = vmatprep.subr.bf16.mxu0 0
      %3374 = vmatpush1.bf16.msra.mxu0 0
      %3375 = vmatprep.subr.bf16.mxu0 0
      %3376 = vmatpush1.bf16.msra.mxu0 0
      %3377 = vmatprep.subr.bf16.mxu0 0
      %3378 = vmatpush1.bf16.msra.mxu0 0
      %3379 = vmatprep.mubr.bf16.mxu0 0
      %3380 = vmatmul.mubr.bf16.gmra.mrb[0].mxu0 %v3279
      %v3381 = vpop.f32.mrb[0].mxu0
      %v3382 = vadd.f32 0.0, %v3381
      %v3383 = vpop.f32.mrb[0].mxu0
      %v3384 = vpop.f32.mrb[0].mxu0
      %v3385 = vadd.f32 0.0, %v3384
      %v3386 = vpop.f32.mrb[0].mxu0
      %3387 = vmatprep.mubr.bf16.mxu0 0
      %3388 = vmatmul.mubr.bf16.gmra.mrb[0].mxu0 %v3280
      %v3389 = vpop.f32.mrb[0].mxu0
      %v3390 = vadd.f32 0.0, %v3389
      %v3391 = vpop.f32.mrb[0].mxu0
      %v3392 = vpop.f32.mrb[0].mxu0
      %v3393 = vadd.f32 0.0, %v3392
      %v3394 = vpop.f32.mrb[0].mxu0
      %3395 = vmatprep.mubr.bf16.mxu0 0
      %3396 = vmatmul.mubr.bf16.gmra.mrb[0].mxu0 %v3281
      %v3397 = vpop.f32.mrb[0].mxu0
      %v3398 = vadd.f32 0.0, %v3397
      %v3399 = vpop.f32.mrb[0].mxu0
      %v3400 = vpop.f32.mrb[0].mxu0
      %v3401 = vadd.f32 0.0, %v3400
      %v3402 = vpop.f32.mrb[0].mxu0
      %3403 = vmatprep.mubr.bf16.mxu0 0
      %3404 = vmatmul.mubr.bf16.gmra.mrb[0].mxu0 %v3282
      %v3405 = vpop.f32.mrb[0].mxu0
      %v3406 = vadd.f32 0.0, %v3405
      %v3407 = vpop.f32.mrb[0].mxu0
      %v3408 = vpop.f32.mrb[0].mxu0
      %v3409 = vadd.f32 0.0, %v3408
      %v3410 = vpop.f32.mrb[0].mxu0
      %3411 = vmatprep.mubr.bf16.mxu0 0
      %3412 = vmatmul.mubr.bf16.gmra.mrb[0].mxu0 %v3283
      %v3413 = vpop.f32.mrb[0].mxu0
      %v3414 = vadd.f32 0.0, %v3413
      %v3415 = vpop.f32.mrb[0].mxu0
      %v3416 = vpop.f32.mrb[0].mxu0
      %v3417 = vadd.f32 0.0, %v3416
      %v3418 = vpop.f32.mrb[0].mxu0
      %3419 = vmatprep.mubr.bf16.mxu0 0
      %3420 = vmatmul.mubr.bf16.gmra.mrb[0].mxu0 %v3284
      %v3421 = vpop.f32.mrb[0].mxu0
      %v3422 = vadd.f32 0.0, %v3421
      %v3423 = vpop.f32.mrb[0].mxu0
      %v3424 = vpop.f32.mrb[0].mxu0
      %v3425 = vadd.f32 0.0, %v3424
      %v3426 = vpop.f32.mrb[0].mxu0
      %3427 = vmatprep.mubr.bf16.mxu0 0
      %3428 = vmatmul.mubr.bf16.gmra.mrb[0].mxu0 %v3285
      %v3429 = vpop.f32.mrb[0].mxu0
      %v3430 = vadd.f32 0.0, %v3429
      %v3431 = vpop.f32.mrb[0].mxu0
      %v3432 = vpop.f32.mrb[0].mxu0
      %v3433 = vadd.f32 0.0, %v3432
      %v3434 = vpop.f32.mrb[0].mxu0
      %3435 = vmatprep.mubr.bf16.mxu0 0
      %3436 = vmatmul.mubr.bf16.gmra.mrb[0].mxu0 %v3286
      %v3437 = vpop.f32.mrb[0].mxu0
      %v3438 = vadd.f32 0.0, %v3437
      %v3439 = vpop.f32.mrb[0].mxu0
      %v3440 = vpop.f32.mrb[0].mxu0
      %v3441 = vadd.f32 0.0, %v3440
      %v3442 = vpop.f32.mrb[0].mxu0
      %3443 = vmatprep.mubr.bf16.mxu0 0
      %3444 = vmatmul.mubr.bf16.gmra.mrb[0].mxu0 %v3287
      %v3445 = vpop.f32.mrb[0].mxu0
      %v3446 = vadd.f32 0.0, %v3445
      %v3447 = vpop.f32.mrb[0].mxu0
      %v3448 = vpop.f32.mrb[0].mxu0
      %v3449 = vadd.f32 0.0, %v3448
      %v3450 = vpop.f32.mrb[0].mxu0
      %3451 = vmatprep.mubr.bf16.mxu0 0
      %3452 = vmatmul.mubr.bf16.gmra.mrb[0].mxu0 %v3288
      %v3453 = vpop.f32.mrb[0].mxu0
      %v3454 = vadd.f32 0.0, %v3453
      %v3455 = vpop.f32.mrb[0].mxu0
      %v3456 = vpop.f32.mrb[0].mxu0
      %v3457 = vadd.f32 0.0, %v3456
      %v3458 = vpop.f32.mrb[0].mxu0
      %3459 = vdwg.mxu0
      %v3460 = vadd.f32 %v3142, %v3382
      %v3461 = vadd.f32 %v3143, %v3385
      %v3462 = vadd.f32 %v3144, %v3390
      %v3463 = vadd.f32 %v3145, %v3393
      %v3464 = vadd.f32 %v3146, %v3398
      %v3465 = vadd.f32 %v3147, %v3401
      %v3466 = vadd.f32 %v3148, %v3406
      %v3467 = vadd.f32 %v3149, %v3409
      %v3468 = vadd.f32 %v3150, %v3414
      %v3469 = vadd.f32 %v3151, %v3417
      %v3470 = vadd.f32 %v3152, %v3422
      %v3471 = vadd.f32 %v3153, %v3425
      %v3472 = vadd.f32 %v3154, %v3430
      %v3473 = vadd.f32 %v3155, %v3433
      %v3474 = vadd.f32 %v3156, %v3438
      %v3475 = vadd.f32 %v3157, %v3441
      %v3476 = vadd.f32 %v3158, %v3446
      %v3477 = vadd.f32 %v3159, %v3449
      %v3478 = vadd.f32 %v3160, %v3454
      %v3479 = vadd.f32 %v3161, %v3457
      %v3480 = vld [vmem:[%s2] sm:$0x1]
      %v3482 = vlaneseq
      %v3483 = vshrl.u32 %v3482, 7
      %v3484 = vsub.s32 0, %v3483
      %v3485 = vrot.slane %v3480, %v3484
      %v3487 = vadd.f32 %v3460, %v3485
      %v3488 = vadd.f32 %v3461, %v3485
      %v3489 = vadd.f32 %v3462, %v3485
      %v3490 = vadd.f32 %v3463, %v3485
      %v3491 = vadd.f32 %v3464, %v3485
      %v3492 = vadd.f32 %v3465, %v3485
      %v3493 = vadd.f32 %v3466, %v3485
      %v3494 = vadd.f32 %v3467, %v3485
      %v3495 = vadd.f32 %v3468, %v3485
      %v3496 = vadd.f32 %v3469, %v3485
      %v3497 = vadd.f32 %v3470, %v3485
      %v3498 = vadd.f32 %v3471, %v3485
      %v3499 = vadd.f32 %v3472, %v3485
      %v3500 = vadd.f32 %v3473, %v3485
      %v3501 = vadd.f32 %v3474, %v3485
      %v3502 = vadd.f32 %v3475, %v3485
      %v3503 = vadd.f32 %v3476, %v3485
      %v3504 = vadd.f32 %v3477, %v3485
      %v3505 = vadd.f32 %v3478, %v3485
      %v3506 = vadd.f32 %v3479, %v3485
      %v3507 = vmax.f32 %v3487, 0.0
      %v3508 = vmax.f32 %v3488, 0.0
      %v3509 = vmax.f32 %v3489, 0.0
      %v3510 = vmax.f32 %v3490, 0.0
      %v3511 = vmax.f32 %v3491, 0.0
      %v3512 = vmax.f32 %v3492, 0.0
      %v3513 = vmax.f32 %v3493, 0.0
      %v3514 = vmax.f32 %v3494, 0.0
      %v3515 = vmax.f32 %v3495, 0.0
      %v3516 = vmax.f32 %v3496, 0.0
      %v3517 = vmax.f32 %v3497, 0.0
      %v3518 = vmax.f32 %v3498, 0.0
      %v3519 = vmax.f32 %v3499, 0.0
      %v3520 = vmax.f32 %v3500, 0.0
      %v3521 = vmax.f32 %v3501, 0.0
      %v3522 = vmax.f32 %v3502, 0.0
      %v3523 = vmax.f32 %v3503, 0.0
      %v3524 = vmax.f32 %v3504, 0.0
      %v3525 = vmax.f32 %v3505, 0.0
      %v3526 = vmax.f32 %v3506, 0.0
      %v3527 = vpack.c.bf16 %v3508, %v3507
      %v3528 = vpack.c.bf16 %v3510, %v3509
      %v3529 = vpack.c.bf16 %v3512, %v3511
      %v3530 = vpack.c.bf16 %v3514, %v3513
      %v3531 = vpack.c.bf16 %v3516, %v3515
      %v3532 = vpack.c.bf16 %v3518, %v3517
      %v3533 = vpack.c.bf16 %v3520, %v3519
      %v3534 = vpack.c.bf16 %v3522, %v3521
      %v3535 = vpack.c.bf16 %v3524, %v3523
      %v3536 = vpack.c.bf16 %v3526, %v3525
      %v3547 = vunpack.c.l.b16 %v3527
      %v3548 = vunpack.c.h.b16 %v3527
      %v3549 = vunpack.c.l.b16 %v3528
      %v3550 = vunpack.c.h.b16 %v3528
      %v3551 = vunpack.c.l.b16 %v3529
      %v3552 = vunpack.c.h.b16 %v3529
      %v3553 = vunpack.c.l.b16 %v3530
      %v3554 = vunpack.c.h.b16 %v3530
      %v3555 = vunpack.c.l.b16 %v3531
      %v3556 = vunpack.c.h.b16 %v3531
      %v3557 = vunpack.c.l.b16 %v3532
      %v3558 = vunpack.c.h.b16 %v3532
      %v3559 = vunpack.c.l.b16 %v3533
      %v3560 = vunpack.c.h.b16 %v3533
      %v3561 = vunpack.c.l.b16 %v3534
      %v3562 = vunpack.c.h.b16 %v3534
      %v3563 = vunpack.c.l.b16 %v3535
      %v3564 = vunpack.c.h.b16 %v3535
      %v3565 = vunpack.c.l.b16 %v3536
      %v3566 = vunpack.c.h.b16 %v3536
      %v3567 = vpack.c.b16 %v3547, %v3547
      %v3568 = vpack.c.b16 %v3548, %v3548
      %v3569 = vpack.c.b16 %v3549, %v3549
      %v3570 = vpack.c.b16 %v3550, %v3550
      %v3571 = vpack.c.b16 %v3551, %v3551
      %v3572 = vpack.c.b16 %v3552, %v3552
      %v3573 = vpack.c.b16 %v3553, %v3553
      %v3574 = vpack.c.b16 %v3554, %v3554
      %v3575 = vpack.c.b16 %v3555, %v3555
      %v3576 = vpack.c.b16 %v3556, %v3556
      %v3577 = vpack.c.b16 %v3557, %v3557
      %v3578 = vpack.c.b16 %v3558, %v3558
      %v3579 = vpack.c.b16 %v3559, %v3559
      %v3580 = vpack.c.b16 %v3560, %v3560
      %v3581 = vpack.c.b16 %v3561, %v3561
      %v3582 = vpack.c.b16 %v3562, %v3562
      %v3583 = vpack.c.b16 %v3563, %v3563
      %v3584 = vpack.c.b16 %v3564, %v3564
      %v3585 = vpack.c.b16 %v3565, %v3565
      %v3586 = vpack.c.b16 %v3566, %v3566
      %vm3587 = vsmask.f32 256
      %vm3588 = vsmask.f32 4368
      %vm3589 = vmor %vm3587, %vm3588
      %v3591 = vshrl.u32 %v3567, 16
      %v3593 = vrot.slane %v3591, 7
      %v3594 = vshll.u32 %v3567, 16
      %v3596 = vor.u32 %v3593, %v3594
      %v3597 = vrot.slane %v3593, 4
      %v3599 = vshrl.u32 %v3568, 16
      %v3601 = vrot.slane %v3599, 7
      %v3602 = vshll.u32 %v3568, 16
      %v3604 = vor.u32 %v3601, %v3602
      %v3605 = vsel %vm3589, %v3597, %v3604
      %v3606 = vrot.slane %v3601, 4
      %v3608 = vshrl.u32 %v3569, 16
      %v3610 = vrot.slane %v3608, 7
      %v3611 = vshll.u32 %v3569, 16
      %v3613 = vor.u32 %v3610, %v3611
      %v3614 = vrot.slane %v3610, 4
      %v3616 = vshrl.u32 %v3570, 16
      %v3618 = vrot.slane %v3616, 7
      %v3619 = vshll.u32 %v3570, 16
      %v3621 = vor.u32 %v3618, %v3619
      %v3622 = vsel %vm3589, %v3614, %v3621
      %v3623 = vrot.slane %v3618, 4
      %v3625 = vshrl.u32 %v3571, 16
      %v3627 = vrot.slane %v3625, 7
      %v3628 = vshll.u32 %v3571, 16
      %v3630 = vor.u32 %v3627, %v3628
      %v3631 = vrot.slane %v3627, 4
      %v3633 = vshrl.u32 %v3572, 16
      %v3635 = vrot.slane %v3633, 7
      %v3636 = vshll.u32 %v3572, 16
      %v3638 = vor.u32 %v3635, %v3636
      %v3639 = vsel %vm3589, %v3631, %v3638
      %v3640 = vrot.slane %v3635, 4
      %v3642 = vshrl.u32 %v3573, 16
      %v3644 = vrot.slane %v3642, 7
      %v3645 = vshll.u32 %v3573, 16
      %v3647 = vor.u32 %v3644, %v3645
      %v3648 = vrot.slane %v3644, 4
      %v3650 = vshrl.u32 %v3574, 16
      %v3652 = vrot.slane %v3650, 7
      %v3653 = vshll.u32 %v3574, 16
      %v3655 = vor.u32 %v3652, %v3653
      %v3656 = vsel %vm3589, %v3648, %v3655
      %v3657 = vrot.slane %v3652, 4
      %v3659 = vshrl.u32 %v3575, 16
      %v3661 = vrot.slane %v3659, 7
      %v3662 = vshll.u32 %v3575, 16
      %v3664 = vor.u32 %v3661, %v3662
      %v3665 = vrot.slane %v3661, 4
      %v3667 = vshrl.u32 %v3576, 16
      %v3669 = vrot.slane %v3667, 7
      %v3670 = vshll.u32 %v3576, 16
      %v3672 = vor.u32 %v3669, %v3670
      %v3673 = vsel %vm3589, %v3665, %v3672
      %v3674 = vrot.slane %v3669, 4
      %v3676 = vshrl.u32 %v3577, 16
      %v3678 = vrot.slane %v3676, 7
      %v3679 = vshll.u32 %v3577, 16
      %v3681 = vor.u32 %v3678, %v3679
      %v3682 = vrot.slane %v3678, 4
      %v3684 = vshrl.u32 %v3578, 16
      %v3686 = vrot.slane %v3684, 7
      %v3687 = vshll.u32 %v3578, 16
      %v3689 = vor.u32 %v3686, %v3687
      %v3690 = vsel %vm3589, %v3682, %v3689
      %v3691 = vrot.slane %v3686, 4
      %v3693 = vshrl.u32 %v3579, 16
      %v3695 = vrot.slane %v3693, 7
      %v3696 = vshll.u32 %v3579, 16
      %v3698 = vor.u32 %v3695, %v3696
      %v3699 = vrot.slane %v3695, 4
      %v3701 = vshrl.u32 %v3580, 16
      %v3703 = vrot.slane %v3701, 7
      %v3704 = vshll.u32 %v3580, 16
      %v3706 = vor.u32 %v3703, %v3704
      %v3707 = vsel %vm3589, %v3699, %v3706
      %v3708 = vrot.slane %v3703, 4
      %v3710 = vshrl.u32 %v3581, 16
      %v3712 = vrot.slane %v3710, 7
      %v3713 = vshll.u32 %v3581, 16
      %v3715 = vor.u32 %v3712, %v3713
      %v3716 = vrot.slane %v3712, 4
      %v3718 = vshrl.u32 %v3582, 16
      %v3720 = vrot.slane %v3718, 7
      %v3721 = vshll.u32 %v3582, 16
      %v3723 = vor.u32 %v3720, %v3721
      %v3724 = vsel %vm3589, %v3716, %v3723
      %v3725 = vrot.slane %v3720, 4
      %v3727 = vshrl.u32 %v3583, 16
      %v3729 = vrot.slane %v3727, 7
      %v3730 = vshll.u32 %v3583, 16
      %v3732 = vor.u32 %v3729, %v3730
      %v3733 = vrot.slane %v3729, 4
      %v3735 = vshrl.u32 %v3584, 16
      %v3737 = vrot.slane %v3735, 7
      %v3738 = vshll.u32 %v3584, 16
      %v3740 = vor.u32 %v3737, %v3738
      %v3741 = vsel %vm3589, %v3733, %v3740
      %v3742 = vrot.slane %v3737, 4
      %v3744 = vshrl.u32 %v3585, 16
      %v3746 = vrot.slane %v3744, 7
      %v3747 = vshll.u32 %v3585, 16
      %v3749 = vor.u32 %v3746, %v3747
      %v3750 = vrot.slane %v3746, 4
      %v3752 = vshrl.u32 %v3586, 16
      %v3754 = vrot.slane %v3752, 7
      %v3755 = vshll.u32 %v3586, 16
      %v3757 = vor.u32 %v3754, %v3755
      %v3758 = vsel %vm3589, %v3750, %v3757
      %v3759 = vrot.slane %v3754, 4
      %vm3790 = vcmask 1043456
      %vm3791 = vsmask.f32 7938
      %vm3792 = vmand %vm3790, %vm3791
      %v3793 = vld [vmem:[#allocation2] sm:$0xf]
      %v3794 = vsel %vm3792, %v3596, %v3793
      %3795 = vst [vmem:[#allocation2] sm:$0xf] %v3794
      %3796 = vst [vmem:[#allocation2 + $0x4] sm:$0xf] %v3605
      %vm3797 = vcmask 1040384
      %vm3798 = vmand %vm3797, %vm3587
      %v3799 = vld [vmem:[#allocation2 + $0x8] sm:$0x1]
      %v3800 = vsel %vm3798, %v3606, %v3799
      %3801 = vst [vmem:[#allocation2 + $0x8] sm:$0x1] %v3800
      %v3802 = vld [vmem:[#allocation2 + $0xc] sm:$0xf]
      %v3803 = vsel %vm3792, %v3613, %v3802
      %3804 = vst [vmem:[#allocation2 + $0xc] sm:$0xf] %v3803
      %3805 = vst [vmem:[#allocation2 + $0x10] sm:$0xf] %v3622
      %v3806 = vld [vmem:[#allocation2 + $0x14] sm:$0x1]
      %v3807 = vsel %vm3798, %v3623, %v3806
      %3808 = vst [vmem:[#allocation2 + $0x14] sm:$0x1] %v3807
      %v3809 = vld [vmem:[#allocation2 + $0x18] sm:$0xf]
      %v3810 = vsel %vm3792, %v3630, %v3809
      %3811 = vst [vmem:[#allocation2 + $0x18] sm:$0xf] %v3810
      %3812 = vst [vmem:[#allocation2 + $0x1c] sm:$0xf] %v3639
      %v3813 = vld [vmem:[#allocation2 + $0x20] sm:$0x1]
      %v3814 = vsel %vm3798, %v3640, %v3813
      %3815 = vst [vmem:[#allocation2 + $0x20] sm:$0x1] %v3814
      %v3816 = vld [vmem:[#allocation2 + $0x24] sm:$0xf]
      %v3817 = vsel %vm3792, %v3647, %v3816
      %3818 = vst [vmem:[#allocation2 + $0x24] sm:$0xf] %v3817
      %3819 = vst [vmem:[#allocation2 + $0x28] sm:$0xf] %v3656
      %v3820 = vld [vmem:[#allocation2 + $0x2c] sm:$0x1]
      %v3821 = vsel %vm3798, %v3657, %v3820
      %3822 = vst [vmem:[#allocation2 + $0x2c] sm:$0x1] %v3821
      %v3823 = vld [vmem:[#allocation2 + $0x30] sm:$0xf]
      %v3824 = vsel %vm3792, %v3664, %v3823
      %3825 = vst [vmem:[#allocation2 + $0x30] sm:$0xf] %v3824
      %3826 = vst [vmem:[#allocation2 + $0x34] sm:$0xf] %v3673
      %v3827 = vld [vmem:[#allocation2 + $0x38] sm:$0x1]
      %v3828 = vsel %vm3798, %v3674, %v3827
      %3829 = vst [vmem:[#allocation2 + $0x38] sm:$0x1] %v3828
      %v3830 = vld [vmem:[#allocation2 + $0x3c] sm:$0xf]
      %v3831 = vsel %vm3792, %v3681, %v3830
      %3832 = vst [vmem:[#allocation2 + $0x3c] sm:$0xf] %v3831
      %3833 = vst [vmem:[#allocation2 + $0x40] sm:$0xf] %v3690
      %v3834 = vld [vmem:[#allocation2 + $0x44] sm:$0x1]
      %v3835 = vsel %vm3798, %v3691, %v3834
      %3836 = vst [vmem:[#allocation2 + $0x44] sm:$0x1] %v3835
      %v3837 = vld [vmem:[#allocation2 + $0x48] sm:$0xf]
      %v3838 = vsel %vm3792, %v3698, %v3837
      %3839 = vst [vmem:[#allocation2 + $0x48] sm:$0xf] %v3838
      %3840 = vst [vmem:[#allocation2 + $0x4c] sm:$0xf] %v3707
      %v3841 = vld [vmem:[#allocation2 + $0x50] sm:$0x1]
      %v3842 = vsel %vm3798, %v3708, %v3841
      %3843 = vst [vmem:[#allocation2 + $0x50] sm:$0x1] %v3842
      %v3844 = vld [vmem:[#allocation2 + $0x54] sm:$0xf]
      %v3845 = vsel %vm3792, %v3715, %v3844
      %3846 = vst [vmem:[#allocation2 + $0x54] sm:$0xf] %v3845
      %3847 = vst [vmem:[#allocation2 + $0x58] sm:$0xf] %v3724
      %v3848 = vld [vmem:[#allocation2 + $0x5c] sm:$0x1]
      %v3849 = vsel %vm3798, %v3725, %v3848
      %3850 = vst [vmem:[#allocation2 + $0x5c] sm:$0x1] %v3849
      %v3851 = vld [vmem:[#allocation2 + $0x60] sm:$0xf]
      %v3852 = vsel %vm3792, %v3732, %v3851
      %3853 = vst [vmem:[#allocation2 + $0x60] sm:$0xf] %v3852
      %3854 = vst [vmem:[#allocation2 + $0x64] sm:$0xf] %v3741
      %v3855 = vld [vmem:[#allocation2 + $0x68] sm:$0x1]
      %v3856 = vsel %vm3798, %v3742, %v3855
      %3857 = vst [vmem:[#allocation2 + $0x68] sm:$0x1] %v3856
      %v3858 = vld [vmem:[#allocation2 + $0x6c] sm:$0xf]
      %v3859 = vsel %vm3792, %v3749, %v3858
      %3860 = vst [vmem:[#allocation2 + $0x6c] sm:$0xf] %v3859
      %3861 = vst [vmem:[#allocation2 + $0x70] sm:$0xf] %v3758
      %v3862 = vld [vmem:[#allocation2 + $0x74] sm:$0x1]
      %v3863 = vsel %vm3798, %v3759, %v3862
      %3864 = vst [vmem:[#allocation2 + $0x74] sm:$0x1] %v3863
      %v3865 = vld [vmem:[#allocation2] sm:$0x1]
      %v3866 = vsel %vm3798, 0, %v3865
      %3867 = vst [vmem:[#allocation2] sm:$0x1] %v3866
      %v3868 = vld [vmem:[#allocation2 + $0xc] sm:$0x1]
      %v3869 = vsel %vm3798, 0, %v3868
      %3870 = vst [vmem:[#allocation2 + $0xc] sm:$0x1] %v3869
      %v3871 = vld [vmem:[#allocation2 + $0x18] sm:$0x1]
      %v3872 = vsel %vm3798, 0, %v3871
      %3873 = vst [vmem:[#allocation2 + $0x18] sm:$0x1] %v3872
      %v3874 = vld [vmem:[#allocation2 + $0x24] sm:$0x1]
      %v3875 = vsel %vm3798, 0, %v3874
      %3876 = vst [vmem:[#allocation2 + $0x24] sm:$0x1] %v3875
      %v3877 = vld [vmem:[#allocation2 + $0x30] sm:$0x1]
      %v3878 = vsel %vm3798, 0, %v3877
      %3879 = vst [vmem:[#allocation2 + $0x30] sm:$0x1] %v3878
      %v3880 = vld [vmem:[#allocation2 + $0x3c] sm:$0x1]
      %v3881 = vsel %vm3798, 0, %v3880
      %3882 = vst [vmem:[#allocation2 + $0x3c] sm:$0x1] %v3881
      %v3883 = vld [vmem:[#allocation2 + $0x48] sm:$0x1]
      %v3884 = vsel %vm3798, 0, %v3883
      %3885 = vst [vmem:[#allocation2 + $0x48] sm:$0x1] %v3884
      %v3886 = vld [vmem:[#allocation2 + $0x54] sm:$0x1]
      %v3887 = vsel %vm3798, 0, %v3886
      %3888 = vst [vmem:[#allocation2 + $0x54] sm:$0x1] %v3887
      %v3889 = vld [vmem:[#allocation2 + $0x60] sm:$0x1]
      %v3890 = vsel %vm3798, 0, %v3889
      %3891 = vst [vmem:[#allocation2 + $0x60] sm:$0x1] %v3890
      %v3892 = vld [vmem:[#allocation2 + $0x6c] sm:$0x1]
      %v3893 = vsel %vm3798, 0, %v3892
      %3894 = vst [vmem:[#allocation2 + $0x6c] sm:$0x1] %v3893
      %vm3895 = vmand %vm3797, %vm3791
      %v3896 = vld [vmem:[#allocation2 + $0x8] sm:$0x1]
      %v3897 = vsel %vm3895, 0, %v3896
      %3898 = vst [vmem:[#allocation2 + $0x8] sm:$0x1] %v3897
      %v3899 = vld [vmem:[#allocation2 + $0x14] sm:$0x1]
      %v3900 = vsel %vm3895, 0, %v3899
      %3901 = vst [vmem:[#allocation2 + $0x14] sm:$0x1] %v3900
      %v3902 = vld [vmem:[#allocation2 + $0x20] sm:$0x1]
      %v3903 = vsel %vm3895, 0, %v3902
      %3904 = vst [vmem:[#allocation2 + $0x20] sm:$0x1] %v3903
      %v3905 = vld [vmem:[#allocation2 + $0x2c] sm:$0x1]
      %v3906 = vsel %vm3895, 0, %v3905
      %3907 = vst [vmem:[#allocation2 + $0x2c] sm:$0x1] %v3906
      %v3908 = vld [vmem:[#allocation2 + $0x38] sm:$0x1]
      %v3909 = vsel %vm3895, 0, %v3908
      %3910 = vst [vmem:[#allocation2 + $0x38] sm:$0x1] %v3909
      %v3911 = vld [vmem:[#allocation2 + $0x44] sm:$0x1]
      %v3912 = vsel %vm3895, 0, %v3911
      %3913 = vst [vmem:[#allocation2 + $0x44] sm:$0x1] %v3912
      %v3914 = vld [vmem:[#allocation2 + $0x50] sm:$0x1]
      %v3915 = vsel %vm3895, 0, %v3914
      %3916 = vst [vmem:[#allocation2 + $0x50] sm:$0x1] %v3915
      %v3917 = vld [vmem:[#allocation2 + $0x5c] sm:$0x1]
      %v3918 = vsel %vm3895, 0, %v3917
      %3919 = vst [vmem:[#allocation2 + $0x5c] sm:$0x1] %v3918
      %v3920 = vld [vmem:[#allocation2 + $0x68] sm:$0x1]
      %v3921 = vsel %vm3895, 0, %v3920
      %3922 = vst [vmem:[#allocation2 + $0x68] sm:$0x1] %v3921
      %v3923 = vld [vmem:[#allocation2 + $0x74] sm:$0x1]
      %v3924 = vsel %vm3895, 0, %v3923
      %3925 = vst [vmem:[#allocation2 + $0x74] sm:$0x1] %v3924
      %p3926 = scmp.eq.s32.totalorder %s21, 0
      // Predicated region
      $region41: #{basic_block_forward.1} parent=39 // pred_check
        %p3927 = pneg %p3926
      $region42: #{basic_block_forward.1} parent=39 // pred_check_branch
        %3929 = sbr.rel (%p3927) target = $region44
      $region43: #{basic_block_forward.1} parent=39 // pred_region
        %3930 = vst [vmem:[#allocation2] sm:$0xf] 0
        %3931 = vst [vmem:[#allocation2 + $0x4] sm:$0xf] 0
        %3932 = vst [vmem:[#allocation2 + $0x8] sm:$0x1] 0
      $region44: #{basic_block_forward.1} parent=39 // pred_fallthru
        _
      %p3933 = scmp.eq.s32.totalorder %s21, 1
      // Predicated region
      $region45: #{basic_block_forward.1} parent=39 // pred_check
        %p3934 = pneg %p3933
      $region46: #{basic_block_forward.1} parent=39 // pred_check_branch
        %3936 = sbr.rel (%p3934) target = $region48
      $region47: #{basic_block_forward.1} parent=39 // pred_region
        %s3937 = scalar_lea.vmem [#allocation2], 108
        %3938 = vst [vmem:[%s3937] sm:$0xf] 0
        %3939 = vst [vmem:[%s3937 + $0x4] sm:$0xf] 0
        %3940 = vst [vmem:[%s3937 + $0x8] sm:$0x1] 0
      $region48: #{basic_block_forward.1} parent=39 // pred_fallthru
        _
      %v3941 = vld [vmem:[#allocation2] sm:$0xf]
      %v3942 = vld [vmem:[#allocation2 + $0x4] sm:$0xf]
      %v3943 = vld [vmem:[#allocation2 + $0x8] sm:$0x1]
      %v3944 = vld [vmem:[#allocation2 + $0xc] sm:$0xf]
      %v3945 = vld [vmem:[#allocation2 + $0x10] sm:$0xf]
      %v3946 = vld [vmem:[#allocation2 + $0x14] sm:$0x1]
      %v3947 = vld [vmem:[#allocation2 + $0x18] sm:$0xf]
      %v3948 = vld [vmem:[#allocation2 + $0x1c] sm:$0xf]
      %v3949 = vld [vmem:[#allocation2 + $0x20] sm:$0x1]
      %v3950 = vld [vmem:[#allocation2 + $0x24] sm:$0xf]
      %v3951 = vld [vmem:[#allocation2 + $0x28] sm:$0xf]
      %v3952 = vld [vmem:[#allocation2 + $0x2c] sm:$0x1]
      %v3953 = vld [vmem:[#allocation2 + $0x30] sm:$0xf]
      %v3954 = vld [vmem:[#allocation2 + $0x34] sm:$0xf]
      %v3955 = vld [vmem:[#allocation2 + $0x38] sm:$0x1]
      %v3956 = vld [vmem:[#allocation2 + $0x3c] sm:$0xf]
      %v3957 = vld [vmem:[#allocation2 + $0x40] sm:$0xf]
      %v3958 = vld [vmem:[#allocation2 + $0x44] sm:$0x1]
      %v3959 = vld [vmem:[#allocation2 + $0x48] sm:$0xf]
      %v3960 = vld [vmem:[#allocation2 + $0x4c] sm:$0xf]
      %v3961 = vld [vmem:[#allocation2 + $0x50] sm:$0x1]
      %v3962 = vld [vmem:[#allocation2 + $0x54] sm:$0xf]
      %v3963 = vld [vmem:[#allocation2 + $0x58] sm:$0xf]
      %v3964 = vld [vmem:[#allocation2 + $0x5c] sm:$0x1]
      %v3965 = vld [vmem:[%s3] sm:$0xf]
      %v3966 = vld [vmem:[%s3 + $0x4] sm:$0xf]
      %v3967 = vld [vmem:[%s3 + $0x8] sm:$0xf]
      %v3968 = vld [vmem:[%s3 + $0xc] sm:$0xf]
      %v3969 = vld [vmem:[%s3 + $0x10] sm:$0xf]
      %v3970 = vld [vmem:[%s3 + $0x14] sm:$0xf]
      %v3971 = vld [vmem:[%s3 + $0x18] sm:$0xf]
      %v3972 = vld [vmem:[%s3 + $0x1c] sm:$0xf]
      %v3973 = vld [vmem:[%s3 + $0x20] sm:$0xf]
      %v3974 = vld [vmem:[%s3 + $0x24] sm:$0xf]
      %v3975 = vld [vmem:[%s3 + $0x28] sm:$0xf]
      %v3976 = vld [vmem:[%s3 + $0x2c] sm:$0xf]
      %v3977 = vld [vmem:[%s3 + $0x30] sm:$0xf]
      %v3978 = vld [vmem:[%s3 + $0x34] sm:$0xf]
      %v3979 = vld [vmem:[%s3 + $0x38] sm:$0xf]
      %v3980 = vld [vmem:[%s3 + $0x3c] sm:$0xf]
      %v3982 = vshrl.u32 %v3941, 16
      %v3984 = vrot.slane %v3982, 4
      %v3985 = vshll.u32 %v3941, 16
      %v3987 = vrot.slane %v3985, 5
      %v3988 = vor.u32 %v3984, %v3987
      %v3989 = vrot.slane %v3988, 4
      %v3991 = vshll.u32 %v3942, 16
      %v3993 = vrot.slane %v3991, 5
      %v3994 = vsel %vm303, %v3989, %v3993
      %v3995 = vshrl.u32 %v3942, 16
      %v3997 = vrot.slane %v3995, 4
      %v3998 = vor.u32 %v3997, %v3993
      %v3999 = vrot.slane %v3998, 4
      %v4001 = vshll.u32 %v3943, 16
      %v4003 = vrot.slane %v4001, 5
      %v4004 = vsel %vm303, %v3999, %v4003
      %v4006 = vshrl.u32 %v3944, 16
      %v4008 = vrot.slane %v4006, 4
      %v4009 = vshll.u32 %v3944, 16
      %v4011 = vrot.slane %v4009, 5
      %v4012 = vor.u32 %v4008, %v4011
      %v4013 = vrot.slane %v4012, 4
      %v4015 = vshll.u32 %v3945, 16
      %v4017 = vrot.slane %v4015, 5
      %v4018 = vsel %vm303, %v4013, %v4017
      %v4019 = vshrl.u32 %v3945, 16
      %v4021 = vrot.slane %v4019, 4
      %v4022 = vor.u32 %v4021, %v4017
      %v4023 = vrot.slane %v4022, 4
      %v4025 = vshll.u32 %v3946, 16
      %v4027 = vrot.slane %v4025, 5
      %v4028 = vsel %vm303, %v4023, %v4027
      %v4030 = vshrl.u32 %v3947, 16
      %v4032 = vrot.slane %v4030, 4
      %v4033 = vshll.u32 %v3947, 16
      %v4035 = vrot.slane %v4033, 5
      %v4036 = vor.u32 %v4032, %v4035
      %v4037 = vrot.slane %v4036, 4
      %v4039 = vshll.u32 %v3948, 16
      %v4041 = vrot.slane %v4039, 5
      %v4042 = vsel %vm303, %v4037, %v4041
      %v4043 = vshrl.u32 %v3948, 16
      %v4045 = vrot.slane %v4043, 4
      %v4046 = vor.u32 %v4045, %v4041
      %v4047 = vrot.slane %v4046, 4
      %v4049 = vshll.u32 %v3949, 16
      %v4051 = vrot.slane %v4049, 5
      %v4052 = vsel %vm303, %v4047, %v4051
      %v4054 = vshrl.u32 %v3950, 16
      %v4056 = vrot.slane %v4054, 4
      %v4057 = vshll.u32 %v3950, 16
      %v4059 = vrot.slane %v4057, 5
      %v4060 = vor.u32 %v4056, %v4059
      %v4061 = vrot.slane %v4060, 4
      %v4063 = vshll.u32 %v3951, 16
      %v4065 = vrot.slane %v4063, 5
      %v4066 = vsel %vm303, %v4061, %v4065
      %v4067 = vshrl.u32 %v3951, 16
      %v4069 = vrot.slane %v4067, 4
      %v4070 = vor.u32 %v4069, %v4065
      %v4071 = vrot.slane %v4070, 4
      %v4073 = vshll.u32 %v3952, 16
      %v4075 = vrot.slane %v4073, 5
      %v4076 = vsel %vm303, %v4071, %v4075
      %v4078 = vshrl.u32 %v3953, 16
      %v4080 = vrot.slane %v4078, 4
      %v4081 = vshll.u32 %v3953, 16
      %v4083 = vrot.slane %v4081, 5
      %v4084 = vor.u32 %v4080, %v4083
      %v4085 = vrot.slane %v4084, 4
      %v4087 = vshll.u32 %v3954, 16
      %v4089 = vrot.slane %v4087, 5
      %v4090 = vsel %vm303, %v4085, %v4089
      %v4091 = vshrl.u32 %v3954, 16
      %v4093 = vrot.slane %v4091, 4
      %v4094 = vor.u32 %v4093, %v4089
      %v4095 = vrot.slane %v4094, 4
      %v4097 = vshll.u32 %v3955, 16
      %v4099 = vrot.slane %v4097, 5
      %v4100 = vsel %vm303, %v4095, %v4099
      %v4102 = vshrl.u32 %v3956, 16
      %v4104 = vrot.slane %v4102, 4
      %v4105 = vshll.u32 %v3956, 16
      %v4107 = vrot.slane %v4105, 5
      %v4108 = vor.u32 %v4104, %v4107
      %v4109 = vrot.slane %v4108, 4
      %v4111 = vshll.u32 %v3957, 16
      %v4113 = vrot.slane %v4111, 5
      %v4114 = vsel %vm303, %v4109, %v4113
      %v4115 = vshrl.u32 %v3957, 16
      %v4117 = vrot.slane %v4115, 4
      %v4118 = vor.u32 %v4117, %v4113
      %v4119 = vrot.slane %v4118, 4
      %v4121 = vshll.u32 %v3958, 16
      %v4123 = vrot.slane %v4121, 5
      %v4124 = vsel %vm303, %v4119, %v4123
      %v4126 = vshrl.u32 %v3959, 16
      %v4128 = vrot.slane %v4126, 4
      %v4129 = vshll.u32 %v3959, 16
      %v4131 = vrot.slane %v4129, 5
      %v4132 = vor.u32 %v4128, %v4131
      %v4133 = vrot.slane %v4132, 4
      %v4135 = vshll.u32 %v3960, 16
      %v4137 = vrot.slane %v4135, 5
      %v4138 = vsel %vm303, %v4133, %v4137
      %v4139 = vshrl.u32 %v3960, 16
      %v4141 = vrot.slane %v4139, 4
      %v4142 = vor.u32 %v4141, %v4137
      %v4143 = vrot.slane %v4142, 4
      %v4145 = vshll.u32 %v3961, 16
      %v4147 = vrot.slane %v4145, 5
      %v4148 = vsel %vm303, %v4143, %v4147
      %v4150 = vshrl.u32 %v3962, 16
      %v4152 = vrot.slane %v4150, 4
      %v4153 = vshll.u32 %v3962, 16
      %v4155 = vrot.slane %v4153, 5
      %v4156 = vor.u32 %v4152, %v4155
      %v4157 = vrot.slane %v4156, 4
      %v4159 = vshll.u32 %v3963, 16
      %v4161 = vrot.slane %v4159, 5
      %v4162 = vsel %vm303, %v4157, %v4161
      %v4163 = vshrl.u32 %v3963, 16
      %v4165 = vrot.slane %v4163, 4
      %v4166 = vor.u32 %v4165, %v4161
      %v4167 = vrot.slane %v4166, 4
      %v4169 = vshll.u32 %v3964, 16
      %v4171 = vrot.slane %v4169, 5
      %v4172 = vsel %vm303, %v4167, %v4171
      %s4173 = scalar_lea.vmem %s3, 64
      %v4174 = vld [vmem:[%s4173] sm:$0xf]
      %v4175 = vld [vmem:[%s4173 + $0x4] sm:$0xf]
      %v4176 = vld [vmem:[%s4173 + $0x8] sm:$0xf]
      %v4177 = vld [vmem:[%s4173 + $0xc] sm:$0xf]
      %v4178 = vld [vmem:[%s4173 + $0x10] sm:$0xf]
      %v4179 = vld [vmem:[%s4173 + $0x14] sm:$0xf]
      %v4180 = vld [vmem:[%s4173 + $0x18] sm:$0xf]
      %v4181 = vld [vmem:[%s4173 + $0x1c] sm:$0xf]
      %v4182 = vld [vmem:[%s4173 + $0x20] sm:$0xf]
      %v4183 = vld [vmem:[%s4173 + $0x24] sm:$0xf]
      %v4184 = vld [vmem:[%s4173 + $0x28] sm:$0xf]
      %v4185 = vld [vmem:[%s4173 + $0x2c] sm:$0xf]
      %v4186 = vld [vmem:[%s4173 + $0x30] sm:$0xf]
      %v4187 = vld [vmem:[%s4173 + $0x34] sm:$0xf]
      %v4188 = vld [vmem:[%s4173 + $0x38] sm:$0xf]
      %v4189 = vld [vmem:[%s4173 + $0x3c] sm:$0xf]
      %v4190 = vunpack.c.l.b16 %v3994
      %v4191 = vunpack.c.l.b16 %v4004
      %v4192 = vunpack.c.l.b16 %v4018
      %v4193 = vunpack.c.l.b16 %v4028
      %v4194 = vunpack.c.l.b16 %v4042
      %v4195 = vunpack.c.l.b16 %v4052
      %v4196 = vunpack.c.l.b16 %v4066
      %v4197 = vunpack.c.l.b16 %v4076
      %v4198 = vunpack.c.l.b16 %v4090
      %v4199 = vunpack.c.l.b16 %v4100
      %v4200 = vunpack.c.l.b16 %v4114
      %v4201 = vunpack.c.l.b16 %v4124
      %v4202 = vunpack.c.l.b16 %v4138
      %v4203 = vunpack.c.l.b16 %v4148
      %v4204 = vunpack.c.l.b16 %v4162
      %v4205 = vunpack.c.l.b16 %v4172
      %v4206 = vpack.c.b16 %v4191, %v4190
      %v4207 = vpack.c.b16 %v4193, %v4192
      %v4208 = vpack.c.b16 %v4195, %v4194
      %v4209 = vpack.c.b16 %v4197, %v4196
      %v4210 = vpack.c.b16 %v4199, %v4198
      %v4211 = vpack.c.b16 %v4201, %v4200
      %v4212 = vpack.c.b16 %v4203, %v4202
      %v4213 = vpack.c.b16 %v4205, %v4204
      %v4238 = vunpack.c.l.b16 %v4174
      %v4239 = vunpack.c.l.b16 %v4175
      %v4240 = vunpack.c.l.b16 %v4176
      %v4241 = vunpack.c.l.b16 %v4177
      %v4242 = vunpack.c.l.b16 %v4178
      %v4243 = vunpack.c.l.b16 %v4179
      %v4244 = vunpack.c.l.b16 %v4180
      %v4245 = vunpack.c.l.b16 %v4181
      %v4246 = vunpack.c.l.b16 %v4182
      %v4247 = vunpack.c.l.b16 %v4183
      %v4248 = vunpack.c.l.b16 %v4184
      %v4249 = vunpack.c.l.b16 %v4185
      %v4250 = vunpack.c.l.b16 %v4186
      %v4251 = vunpack.c.l.b16 %v4187
      %v4252 = vunpack.c.l.b16 %v4188
      %v4253 = vunpack.c.l.b16 %v4189
      %v4254 = vpack.c.b16 %v4239, %v4238
      %v4255 = vpack.c.b16 %v4241, %v4240
      %v4256 = vpack.c.b16 %v4243, %v4242
      %v4257 = vpack.c.b16 %v4245, %v4244
      %v4258 = vpack.c.b16 %v4247, %v4246
      %v4259 = vpack.c.b16 %v4249, %v4248
      %v4260 = vpack.c.b16 %v4251, %v4250
      %v4261 = vpack.c.b16 %v4253, %v4252
      %4270 = vmatprep.subr.bf16.mxu0 0
      %4271 = vmatpush1.bf16.msra.mxu0 %v4254
      %4272 = vmatprep.subr.bf16.mxu0 0
      %4273 = vmatpush1.bf16.msra.mxu0 %v4255
      %4274 = vmatprep.subr.bf16.mxu0 0
      %4275 = vmatpush1.bf16.msra.mxu0 %v4256
      %4276 = vmatprep.subr.bf16.mxu0 0
      %4277 = vmatpush1.bf16.msra.mxu0 %v4257
      %4278 = vmatprep.subr.bf16.mxu0 0
      %4279 = vmatpush1.bf16.msra.mxu0 %v4258
      %4280 = vmatprep.subr.bf16.mxu0 0
      %4281 = vmatpush1.bf16.msra.mxu0 %v4259
      %4282 = vmatprep.subr.bf16.mxu0 0
      %4283 = vmatpush1.bf16.msra.mxu0 %v4260
      %4284 = vmatprep.subr.bf16.mxu0 0
      %4285 = vmatpush1.bf16.msra.mxu0 %v4261
      %4286 = vmatprep.subr.bf16.mxu0 0
      %4287 = vmatpush1.bf16.msra.mxu0 0
      %4288 = vmatprep.subr.bf16.mxu0 0
      %4289 = vmatpush1.bf16.msra.mxu0 0
      %4290 = vmatprep.subr.bf16.mxu0 0
      %4291 = vmatpush1.bf16.msra.mxu0 0
      %4292 = vmatprep.subr.bf16.mxu0 0
      %4293 = vmatpush1.bf16.msra.mxu0 0
      %4294 = vmatprep.subr.bf16.mxu0 0
      %4295 = vmatpush1.bf16.msra.mxu0 0
      %4296 = vmatprep.subr.bf16.mxu0 0
      %4297 = vmatpush1.bf16.msra.mxu0 0
      %4298 = vmatprep.subr.bf16.mxu0 0
      %4299 = vmatpush1.bf16.msra.mxu0 0
      %4300 = vmatprep.subr.bf16.mxu0 0
      %4301 = vmatpush1.bf16.msra.mxu0 0
      %4302 = vmatprep.mubr.bf16.mxu0 0
      %4303 = vmatmul.mubr.bf16.gmra.mrb[0].mxu0 %v4206
      %v4304 = vpop.f32.mrb[0].mxu0
      %v4305 = vadd.f32 0.0, %v4304
      %v4306 = vpop.f32.mrb[0].mxu0
      %v4307 = vpop.f32.mrb[0].mxu0
      %v4308 = vadd.f32 0.0, %v4307
      %v4309 = vpop.f32.mrb[0].mxu0
      %4310 = vmatprep.mubr.bf16.mxu0 0
      %4311 = vmatmul.mubr.bf16.gmra.mrb[0].mxu0 %v4207
      %v4312 = vpop.f32.mrb[0].mxu0
      %v4313 = vadd.f32 0.0, %v4312
      %v4314 = vpop.f32.mrb[0].mxu0
      %v4315 = vpop.f32.mrb[0].mxu0
      %v4316 = vadd.f32 0.0, %v4315
      %v4317 = vpop.f32.mrb[0].mxu0
      %4318 = vmatprep.mubr.bf16.mxu0 0
      %4319 = vmatmul.mubr.bf16.gmra.mrb[0].mxu0 %v4208
      %v4320 = vpop.f32.mrb[0].mxu0
      %v4321 = vadd.f32 0.0, %v4320
      %v4322 = vpop.f32.mrb[0].mxu0
      %v4323 = vpop.f32.mrb[0].mxu0
      %v4324 = vadd.f32 0.0, %v4323
      %v4325 = vpop.f32.mrb[0].mxu0
      %4326 = vmatprep.mubr.bf16.mxu0 0
      %4327 = vmatmul.mubr.bf16.gmra.mrb[0].mxu0 %v4209
      %v4328 = vpop.f32.mrb[0].mxu0
      %v4329 = vadd.f32 0.0, %v4328
      %v4330 = vpop.f32.mrb[0].mxu0
      %v4331 = vpop.f32.mrb[0].mxu0
      %v4332 = vadd.f32 0.0, %v4331
      %v4333 = vpop.f32.mrb[0].mxu0
      %4334 = vmatprep.mubr.bf16.mxu0 0
      %4335 = vmatmul.mubr.bf16.gmra.mrb[0].mxu0 %v4210
      %v4336 = vpop.f32.mrb[0].mxu0
      %v4337 = vadd.f32 0.0, %v4336
      %v4338 = vpop.f32.mrb[0].mxu0
      %v4339 = vpop.f32.mrb[0].mxu0
      %v4340 = vadd.f32 0.0, %v4339
      %v4341 = vpop.f32.mrb[0].mxu0
      %4342 = vmatprep.mubr.bf16.mxu0 0
      %4343 = vmatmul.mubr.bf16.gmra.mrb[0].mxu0 %v4211
      %v4344 = vpop.f32.mrb[0].mxu0
      %v4345 = vadd.f32 0.0, %v4344
      %v4346 = vpop.f32.mrb[0].mxu0
      %v4347 = vpop.f32.mrb[0].mxu0
      %v4348 = vadd.f32 0.0, %v4347
      %v4349 = vpop.f32.mrb[0].mxu0
      %4350 = vmatprep.mubr.bf16.mxu0 0
      %4351 = vmatmul.mubr.bf16.gmra.mrb[0].mxu0 %v4212
      %v4352 = vpop.f32.mrb[0].mxu0
      %v4353 = vadd.f32 0.0, %v4352
      %v4354 = vpop.f32.mrb[0].mxu0
      %v4355 = vpop.f32.mrb[0].mxu0
      %v4356 = vadd.f32 0.0, %v4355
      %v4357 = vpop.f32.mrb[0].mxu0
      %4358 = vmatprep.mubr.bf16.mxu0 0
      %4359 = vmatmul.mubr.bf16.gmra.mrb[0].mxu0 %v4213
      %v4360 = vpop.f32.mrb[0].mxu0
      %v4361 = vadd.f32 0.0, %v4360
      %v4362 = vpop.f32.mrb[0].mxu0
      %v4363 = vpop.f32.mrb[0].mxu0
      %v4364 = vadd.f32 0.0, %v4363
      %v4365 = vpop.f32.mrb[0].mxu0
      %4366 = vdwg.mxu0
      %v4383 = vunpack.c.l.b16 %v3941
      %v4384 = vunpack.c.l.b16 %v3942
      %v4385 = vunpack.c.l.b16 %v3944
      %v4386 = vunpack.c.l.b16 %v3945
      %v4387 = vunpack.c.l.b16 %v3947
      %v4388 = vunpack.c.l.b16 %v3948
      %v4389 = vunpack.c.l.b16 %v3950
      %v4390 = vunpack.c.l.b16 %v3951
      %v4391 = vunpack.c.l.b16 %v3953
      %v4392 = vunpack.c.l.b16 %v3954
      %v4393 = vunpack.c.l.b16 %v3956
      %v4394 = vunpack.c.l.b16 %v3957
      %v4395 = vunpack.c.l.b16 %v3959
      %v4396 = vunpack.c.l.b16 %v3960
      %v4397 = vunpack.c.l.b16 %v3962
      %v4398 = vunpack.c.l.b16 %v3963
      %v4399 = vpack.c.b16 %v4384, %v4383
      %v4400 = vpack.c.b16 %v4386, %v4385
      %v4401 = vpack.c.b16 %v4388, %v4387
      %v4402 = vpack.c.b16 %v4390, %v4389
      %v4403 = vpack.c.b16 %v4392, %v4391
      %v4404 = vpack.c.b16 %v4394, %v4393
      %v4405 = vpack.c.b16 %v4396, %v4395
      %v4406 = vpack.c.b16 %v4398, %v4397
      %v4431 = vunpack.c.l.b16 %v3965
      %v4432 = vunpack.c.l.b16 %v3966
      %v4433 = vunpack.c.l.b16 %v3967
      %v4434 = vunpack.c.l.b16 %v3968
      %v4435 = vunpack.c.l.b16 %v3969
      %v4436 = vunpack.c.l.b16 %v3970
      %v4437 = vunpack.c.l.b16 %v3971
      %v4438 = vunpack.c.l.b16 %v3972
      %v4439 = vunpack.c.l.b16 %v3973
      %v4440 = vunpack.c.l.b16 %v3974
      %v4441 = vunpack.c.l.b16 %v3975
      %v4442 = vunpack.c.l.b16 %v3976
      %v4443 = vunpack.c.l.b16 %v3977
      %v4444 = vunpack.c.l.b16 %v3978
      %v4445 = vunpack.c.l.b16 %v3979
      %v4446 = vunpack.c.l.b16 %v3980
      %v4447 = vpack.c.b16 %v4432, %v4431
      %v4448 = vpack.c.b16 %v4434, %v4433
      %v4449 = vpack.c.b16 %v4436, %v4435
      %v4450 = vpack.c.b16 %v4438, %v4437
      %v4451 = vpack.c.b16 %v4440, %v4439
      %v4452 = vpack.c.b16 %v4442, %v4441
      %v4453 = vpack.c.b16 %v4444, %v4443
      %v4454 = vpack.c.b16 %v4446, %v4445
      %4463 = vmatprep.subr.bf16.mxu0 0
      %4464 = vmatpush1.bf16.msra.mxu0 %v4447
      %4465 = vmatprep.subr.bf16.mxu0 0
      %4466 = vmatpush1.bf16.msra.mxu0 %v4448
      %4467 = vmatprep.subr.bf16.mxu0 0
      %4468 = vmatpush1.bf16.msra.mxu0 %v4449
      %4469 = vmatprep.subr.bf16.mxu0 0
      %4470 = vmatpush1.bf16.msra.mxu0 %v4450
      %4471 = vmatprep.subr.bf16.mxu0 0
      %4472 = vmatpush1.bf16.msra.mxu0 %v4451
      %4473 = vmatprep.subr.bf16.mxu0 0
      %4474 = vmatpush1.bf16.msra.mxu0 %v4452
      %4475 = vmatprep.subr.bf16.mxu0 0
      %4476 = vmatpush1.bf16.msra.mxu0 %v4453
      %4477 = vmatprep.subr.bf16.mxu0 0
      %4478 = vmatpush1.bf16.msra.mxu0 %v4454
      %4479 = vmatprep.subr.bf16.mxu0 0
      %4480 = vmatpush1.bf16.msra.mxu0 0
      %4481 = vmatprep.subr.bf16.mxu0 0
      %4482 = vmatpush1.bf16.msra.mxu0 0
      %4483 = vmatprep.subr.bf16.mxu0 0
      %4484 = vmatpush1.bf16.msra.mxu0 0
      %4485 = vmatprep.subr.bf16.mxu0 0
      %4486 = vmatpush1.bf16.msra.mxu0 0
      %4487 = vmatprep.subr.bf16.mxu0 0
      %4488 = vmatpush1.bf16.msra.mxu0 0
      %4489 = vmatprep.subr.bf16.mxu0 0
      %4490 = vmatpush1.bf16.msra.mxu0 0
      %4491 = vmatprep.subr.bf16.mxu0 0
      %4492 = vmatpush1.bf16.msra.mxu0 0
      %4493 = vmatprep.subr.bf16.mxu0 0
      %4494 = vmatpush1.bf16.msra.mxu0 0
      %4495 = vmatprep.mubr.bf16.mxu0 0
      %4496 = vmatmul.mubr.bf16.gmra.mrb[0].mxu0 %v4399
      %v4497 = vpop.f32.mrb[0].mxu0
      %v4498 = vadd.f32 %v4305, %v4497
      %v4499 = vpop.f32.mrb[0].mxu0
      %v4500 = vpop.f32.mrb[0].mxu0
      %v4501 = vadd.f32 %v4308, %v4500
      %v4502 = vpop.f32.mrb[0].mxu0
      %4503 = vmatprep.mubr.bf16.mxu0 0
      %4504 = vmatmul.mubr.bf16.gmra.mrb[0].mxu0 %v4400
      %v4505 = vpop.f32.mrb[0].mxu0
      %v4506 = vadd.f32 %v4313, %v4505
      %v4507 = vpop.f32.mrb[0].mxu0
      %v4508 = vpop.f32.mrb[0].mxu0
      %v4509 = vadd.f32 %v4316, %v4508
      %v4510 = vpop.f32.mrb[0].mxu0
      %4511 = vmatprep.mubr.bf16.mxu0 0
      %4512 = vmatmul.mubr.bf16.gmra.mrb[0].mxu0 %v4401
      %v4513 = vpop.f32.mrb[0].mxu0
      %v4514 = vadd.f32 %v4321, %v4513
      %v4515 = vpop.f32.mrb[0].mxu0
      %v4516 = vpop.f32.mrb[0].mxu0
      %v4517 = vadd.f32 %v4324, %v4516
      %v4518 = vpop.f32.mrb[0].mxu0
      %4519 = vmatprep.mubr.bf16.mxu0 0
      %4520 = vmatmul.mubr.bf16.gmra.mrb[0].mxu0 %v4402
      %v4521 = vpop.f32.mrb[0].mxu0
      %v4522 = vadd.f32 %v4329, %v4521
      %v4523 = vpop.f32.mrb[0].mxu0
      %v4524 = vpop.f32.mrb[0].mxu0
      %v4525 = vadd.f32 %v4332, %v4524
      %v4526 = vpop.f32.mrb[0].mxu0
      %4527 = vmatprep.mubr.bf16.mxu0 0
      %4528 = vmatmul.mubr.bf16.gmra.mrb[0].mxu0 %v4403
      %v4529 = vpop.f32.mrb[0].mxu0
      %v4530 = vadd.f32 %v4337, %v4529
      %v4531 = vpop.f32.mrb[0].mxu0
      %v4532 = vpop.f32.mrb[0].mxu0
      %v4533 = vadd.f32 %v4340, %v4532
      %v4534 = vpop.f32.mrb[0].mxu0
      %4535 = vmatprep.mubr.bf16.mxu0 0
      %4536 = vmatmul.mubr.bf16.gmra.mrb[0].mxu0 %v4404
      %v4537 = vpop.f32.mrb[0].mxu0
      %v4538 = vadd.f32 %v4345, %v4537
      %v4539 = vpop.f32.mrb[0].mxu0
      %v4540 = vpop.f32.mrb[0].mxu0
      %v4541 = vadd.f32 %v4348, %v4540
      %v4542 = vpop.f32.mrb[0].mxu0
      %4543 = vmatprep.mubr.bf16.mxu0 0
      %4544 = vmatmul.mubr.bf16.gmra.mrb[0].mxu0 %v4405
      %v4545 = vpop.f32.mrb[0].mxu0
      %v4546 = vadd.f32 %v4353, %v4545
      %v4547 = vpop.f32.mrb[0].mxu0
      %v4548 = vpop.f32.mrb[0].mxu0
      %v4549 = vadd.f32 %v4356, %v4548
      %v4550 = vpop.f32.mrb[0].mxu0
      %4551 = vmatprep.mubr.bf16.mxu0 0
      %4552 = vmatmul.mubr.bf16.gmra.mrb[0].mxu0 %v4406
      %v4553 = vpop.f32.mrb[0].mxu0
      %v4554 = vadd.f32 %v4361, %v4553
      %v4555 = vpop.f32.mrb[0].mxu0
      %v4556 = vpop.f32.mrb[0].mxu0
      %v4557 = vadd.f32 %v4364, %v4556
      %v4558 = vpop.f32.mrb[0].mxu0
      %4559 = vdwg.mxu0
      %v4568 = vrot.slane %v3941, 5
      %v4569 = vrot.slane %v4568, 4
      %v4570 = vrot.slane %v3942, 5
      %v4571 = vsel %vm995, %v4569, %v4570
      %v4572 = vrot.slane %v4570, 4
      %v4573 = vrot.slane %v3943, 5
      %v4574 = vsel %vm995, %v4572, %v4573
      %v4575 = vrot.slane %v3944, 5
      %v4576 = vrot.slane %v4575, 4
      %v4577 = vrot.slane %v3945, 5
      %v4578 = vsel %vm995, %v4576, %v4577
      %v4579 = vrot.slane %v4577, 4
      %v4580 = vrot.slane %v3946, 5
      %v4581 = vsel %vm995, %v4579, %v4580
      %v4582 = vrot.slane %v3947, 5
      %v4583 = vrot.slane %v4582, 4
      %v4584 = vrot.slane %v3948, 5
      %v4585 = vsel %vm995, %v4583, %v4584
      %v4586 = vrot.slane %v4584, 4
      %v4587 = vrot.slane %v3949, 5
      %v4588 = vsel %vm995, %v4586, %v4587
      %v4589 = vrot.slane %v3950, 5
      %v4590 = vrot.slane %v4589, 4
      %v4591 = vrot.slane %v3951, 5
      %v4592 = vsel %vm995, %v4590, %v4591
      %v4593 = vrot.slane %v4591, 4
      %v4594 = vrot.slane %v3952, 5
      %v4595 = vsel %vm995, %v4593, %v4594
      %v4596 = vrot.slane %v3953, 5
      %v4597 = vrot.slane %v4596, 4
      %v4598 = vrot.slane %v3954, 5
      %v4599 = vsel %vm995, %v4597, %v4598
      %v4600 = vrot.slane %v4598, 4
      %v4601 = vrot.slane %v3955, 5
      %v4602 = vsel %vm995, %v4600, %v4601
      %v4603 = vrot.slane %v3956, 5
      %v4604 = vrot.slane %v4603, 4
      %v4605 = vrot.slane %v3957, 5
      %v4606 = vsel %vm995, %v4604, %v4605
      %v4607 = vrot.slane %v4605, 4
      %v4608 = vrot.slane %v3958, 5
      %v4609 = vsel %vm995, %v4607, %v4608
      %v4610 = vrot.slane %v3959, 5
      %v4611 = vrot.slane %v4610, 4
      %v4612 = vrot.slane %v3960, 5
      %v4613 = vsel %vm995, %v4611, %v4612
      %v4614 = vrot.slane %v4612, 4
      %v4615 = vrot.slane %v3961, 5
      %v4616 = vsel %vm995, %v4614, %v4615
      %v4617 = vrot.slane %v3962, 5
      %v4618 = vrot.slane %v4617, 4
      %v4619 = vrot.slane %v3963, 5
      %v4620 = vsel %vm995, %v4618, %v4619
      %v4621 = vrot.slane %v4619, 4
      %v4622 = vrot.slane %v3964, 5
      %v4623 = vsel %vm995, %v4621, %v4622
      %s4624 = scalar_lea.vmem %s3, 128
      %v4625 = vld [vmem:[%s4624] sm:$0xf]
      %v4626 = vld [vmem:[%s4624 + $0x4] sm:$0xf]
      %v4627 = vld [vmem:[%s4624 + $0x8] sm:$0xf]
      %v4628 = vld [vmem:[%s4624 + $0xc] sm:$0xf]
      %v4629 = vld [vmem:[%s4624 + $0x10] sm:$0xf]
      %v4630 = vld [vmem:[%s4624 + $0x14] sm:$0xf]
      %v4631 = vld [vmem:[%s4624 + $0x18] sm:$0xf]
      %v4632 = vld [vmem:[%s4624 + $0x1c] sm:$0xf]
      %v4633 = vld [vmem:[%s4624 + $0x20] sm:$0xf]
      %v4634 = vld [vmem:[%s4624 + $0x24] sm:$0xf]
      %v4635 = vld [vmem:[%s4624 + $0x28] sm:$0xf]
      %v4636 = vld [vmem:[%s4624 + $0x2c] sm:$0xf]
      %v4637 = vld [vmem:[%s4624 + $0x30] sm:$0xf]
      %v4638 = vld [vmem:[%s4624 + $0x34] sm:$0xf]
      %v4639 = vld [vmem:[%s4624 + $0x38] sm:$0xf]
      %v4640 = vld [vmem:[%s4624 + $0x3c] sm:$0xf]
      %v4641 = vunpack.c.l.b16 %v4571
      %v4642 = vunpack.c.l.b16 %v4574
      %v4643 = vunpack.c.l.b16 %v4578
      %v4644 = vunpack.c.l.b16 %v4581
      %v4645 = vunpack.c.l.b16 %v4585
      %v4646 = vunpack.c.l.b16 %v4588
      %v4647 = vunpack.c.l.b16 %v4592
      %v4648 = vunpack.c.l.b16 %v4595
      %v4649 = vunpack.c.l.b16 %v4599
      %v4650 = vunpack.c.l.b16 %v4602
      %v4651 = vunpack.c.l.b16 %v4606
      %v4652 = vunpack.c.l.b16 %v4609
      %v4653 = vunpack.c.l.b16 %v4613
      %v4654 = vunpack.c.l.b16 %v4616
      %v4655 = vunpack.c.l.b16 %v4620
      %v4656 = vunpack.c.l.b16 %v4623
      %v4657 = vpack.c.b16 %v4642, %v4641
      %v4658 = vpack.c.b16 %v4644, %v4643
      %v4659 = vpack.c.b16 %v4646, %v4645
      %v4660 = vpack.c.b16 %v4648, %v4647
      %v4661 = vpack.c.b16 %v4650, %v4649
      %v4662 = vpack.c.b16 %v4652, %v4651
      %v4663 = vpack.c.b16 %v4654, %v4653
      %v4664 = vpack.c.b16 %v4656, %v4655
      %v4689 = vunpack.c.l.b16 %v4625
      %v4690 = vunpack.c.l.b16 %v4626
      %v4691 = vunpack.c.l.b16 %v4627
      %v4692 = vunpack.c.l.b16 %v4628
      %v4693 = vunpack.c.l.b16 %v4629
      %v4694 = vunpack.c.l.b16 %v4630
      %v4695 = vunpack.c.l.b16 %v4631
      %v4696 = vunpack.c.l.b16 %v4632
      %v4697 = vunpack.c.l.b16 %v4633
      %v4698 = vunpack.c.l.b16 %v4634
      %v4699 = vunpack.c.l.b16 %v4635
      %v4700 = vunpack.c.l.b16 %v4636
      %v4701 = vunpack.c.l.b16 %v4637
      %v4702 = vunpack.c.l.b16 %v4638
      %v4703 = vunpack.c.l.b16 %v4639
      %v4704 = vunpack.c.l.b16 %v4640
      %v4705 = vpack.c.b16 %v4690, %v4689
      %v4706 = vpack.c.b16 %v4692, %v4691
      %v4707 = vpack.c.b16 %v4694, %v4693
      %v4708 = vpack.c.b16 %v4696, %v4695
      %v4709 = vpack.c.b16 %v4698, %v4697
      %v4710 = vpack.c.b16 %v4700, %v4699
      %v4711 = vpack.c.b16 %v4702, %v4701
      %v4712 = vpack.c.b16 %v4704, %v4703
      %4721 = vmatprep.subr.bf16.mxu0 0
      %4722 = vmatpush1.bf16.msra.mxu0 %v4705
      %4723 = vmatprep.subr.bf16.mxu0 0
      %4724 = vmatpush1.bf16.msra.mxu0 %v4706
      %4725 = vmatprep.subr.bf16.mxu0 0
      %4726 = vmatpush1.bf16.msra.mxu0 %v4707
      %4727 = vmatprep.subr.bf16.mxu0 0
      %4728 = vmatpush1.bf16.msra.mxu0 %v4708
      %4729 = vmatprep.subr.bf16.mxu0 0
      %4730 = vmatpush1.bf16.msra.mxu0 %v4709
      %4731 = vmatprep.subr.bf16.mxu0 0
      %4732 = vmatpush1.bf16.msra.mxu0 %v4710
      %4733 = vmatprep.subr.bf16.mxu0 0
      %4734 = vmatpush1.bf16.msra.mxu0 %v4711
      %4735 = vmatprep.subr.bf16.mxu0 0
      %4736 = vmatpush1.bf16.msra.mxu0 %v4712
      %4737 = vmatprep.subr.bf16.mxu0 0
      %4738 = vmatpush1.bf16.msra.mxu0 0
      %4739 = vmatprep.subr.bf16.mxu0 0
      %4740 = vmatpush1.bf16.msra.mxu0 0
      %4741 = vmatprep.subr.bf16.mxu0 0
      %4742 = vmatpush1.bf16.msra.mxu0 0
      %4743 = vmatprep.subr.bf16.mxu0 0
      %4744 = vmatpush1.bf16.msra.mxu0 0
      %4745 = vmatprep.subr.bf16.mxu0 0
      %4746 = vmatpush1.bf16.msra.mxu0 0
      %4747 = vmatprep.subr.bf16.mxu0 0
      %4748 = vmatpush1.bf16.msra.mxu0 0
      %4749 = vmatprep.subr.bf16.mxu0 0
      %4750 = vmatpush1.bf16.msra.mxu0 0
      %4751 = vmatprep.subr.bf16.mxu0 0
      %4752 = vmatpush1.bf16.msra.mxu0 0
      %4753 = vmatprep.mubr.bf16.mxu0 0
      %4754 = vmatmul.mubr.bf16.gmra.mrb[0].mxu0 %v4657
      %v4755 = vpop.f32.mrb[0].mxu0
      %v4756 = vadd.f32 0.0, %v4755
      %v4757 = vpop.f32.mrb[0].mxu0
      %v4758 = vpop.f32.mrb[0].mxu0
      %v4759 = vadd.f32 0.0, %v4758
      %v4760 = vpop.f32.mrb[0].mxu0
      %4761 = vmatprep.mubr.bf16.mxu0 0
      %4762 = vmatmul.mubr.bf16.gmra.mrb[0].mxu0 %v4658
      %v4763 = vpop.f32.mrb[0].mxu0
      %v4764 = vadd.f32 0.0, %v4763
      %v4765 = vpop.f32.mrb[0].mxu0
      %v4766 = vpop.f32.mrb[0].mxu0
      %v4767 = vadd.f32 0.0, %v4766
      %v4768 = vpop.f32.mrb[0].mxu0
      %4769 = vmatprep.mubr.bf16.mxu0 0
      %4770 = vmatmul.mubr.bf16.gmra.mrb[0].mxu0 %v4659
      %v4771 = vpop.f32.mrb[0].mxu0
      %v4772 = vadd.f32 0.0, %v4771
      %v4773 = vpop.f32.mrb[0].mxu0
      %v4774 = vpop.f32.mrb[0].mxu0
      %v4775 = vadd.f32 0.0, %v4774
      %v4776 = vpop.f32.mrb[0].mxu0
      %4777 = vmatprep.mubr.bf16.mxu0 0
      %4778 = vmatmul.mubr.bf16.gmra.mrb[0].mxu0 %v4660
      %v4779 = vpop.f32.mrb[0].mxu0
      %v4780 = vadd.f32 0.0, %v4779
      %v4781 = vpop.f32.mrb[0].mxu0
      %v4782 = vpop.f32.mrb[0].mxu0
      %v4783 = vadd.f32 0.0, %v4782
      %v4784 = vpop.f32.mrb[0].mxu0
      %4785 = vmatprep.mubr.bf16.mxu0 0
      %4786 = vmatmul.mubr.bf16.gmra.mrb[0].mxu0 %v4661
      %v4787 = vpop.f32.mrb[0].mxu0
      %v4788 = vadd.f32 0.0, %v4787
      %v4789 = vpop.f32.mrb[0].mxu0
      %v4790 = vpop.f32.mrb[0].mxu0
      %v4791 = vadd.f32 0.0, %v4790
      %v4792 = vpop.f32.mrb[0].mxu0
      %4793 = vmatprep.mubr.bf16.mxu0 0
      %4794 = vmatmul.mubr.bf16.gmra.mrb[0].mxu0 %v4662
      %v4795 = vpop.f32.mrb[0].mxu0
      %v4796 = vadd.f32 0.0, %v4795
      %v4797 = vpop.f32.mrb[0].mxu0
      %v4798 = vpop.f32.mrb[0].mxu0
      %v4799 = vadd.f32 0.0, %v4798
      %v4800 = vpop.f32.mrb[0].mxu0
      %4801 = vmatprep.mubr.bf16.mxu0 0
      %4802 = vmatmul.mubr.bf16.gmra.mrb[0].mxu0 %v4663
      %v4803 = vpop.f32.mrb[0].mxu0
      %v4804 = vadd.f32 0.0, %v4803
      %v4805 = vpop.f32.mrb[0].mxu0
      %v4806 = vpop.f32.mrb[0].mxu0
      %v4807 = vadd.f32 0.0, %v4806
      %v4808 = vpop.f32.mrb[0].mxu0
      %4809 = vmatprep.mubr.bf16.mxu0 0
      %4810 = vmatmul.mubr.bf16.gmra.mrb[0].mxu0 %v4664
      %v4811 = vpop.f32.mrb[0].mxu0
      %v4812 = vadd.f32 0.0, %v4811
      %v4813 = vpop.f32.mrb[0].mxu0
      %v4814 = vpop.f32.mrb[0].mxu0
      %v4815 = vadd.f32 0.0, %v4814
      %v4816 = vpop.f32.mrb[0].mxu0
      %4817 = vdwg.mxu0
      %v4818 = vadd.f32 %v4498, %v4756
      %v4819 = vadd.f32 %v4501, %v4759
      %v4820 = vadd.f32 %v4506, %v4764
      %v4821 = vadd.f32 %v4509, %v4767
      %v4822 = vadd.f32 %v4514, %v4772
      %v4823 = vadd.f32 %v4517, %v4775
      %v4824 = vadd.f32 %v4522, %v4780
      %v4825 = vadd.f32 %v4525, %v4783
      %v4826 = vadd.f32 %v4530, %v4788
      %v4827 = vadd.f32 %v4533, %v4791
      %v4828 = vadd.f32 %v4538, %v4796
      %v4829 = vadd.f32 %v4541, %v4799
      %v4830 = vadd.f32 %v4546, %v4804
      %v4831 = vadd.f32 %v4549, %v4807
      %v4832 = vadd.f32 %v4554, %v4812
      %v4833 = vadd.f32 %v4557, %v4815
      %s4834 = scalar_lea.vmem [#allocation2], 12
      %v4835 = vld [vmem:[%s4834] sm:$0xf]
      %v4836 = vld [vmem:[%s4834 + $0x4] sm:$0xf]
      %v4837 = vld [vmem:[%s4834 + $0x8] sm:$0x1]
      %v4838 = vld [vmem:[%s4834 + $0xc] sm:$0xf]
      %v4839 = vld [vmem:[%s4834 + $0x10] sm:$0xf]
      %v4840 = vld [vmem:[%s4834 + $0x14] sm:$0x1]
      %v4841 = vld [vmem:[%s4834 + $0x18] sm:$0xf]
      %v4842 = vld [vmem:[%s4834 + $0x1c] sm:$0xf]
      %v4843 = vld [vmem:[%s4834 + $0x20] sm:$0x1]
      %v4844 = vld [vmem:[%s4834 + $0x24] sm:$0xf]
      %v4845 = vld [vmem:[%s4834 + $0x28] sm:$0xf]
      %v4846 = vld [vmem:[%s4834 + $0x2c] sm:$0x1]
      %v4847 = vld [vmem:[%s4834 + $0x30] sm:$0xf]
      %v4848 = vld [vmem:[%s4834 + $0x34] sm:$0xf]
      %v4849 = vld [vmem:[%s4834 + $0x38] sm:$0x1]
      %v4850 = vld [vmem:[%s4834 + $0x3c] sm:$0xf]
      %v4851 = vld [vmem:[%s4834 + $0x40] sm:$0xf]
      %v4852 = vld [vmem:[%s4834 + $0x44] sm:$0x1]
      %v4853 = vld [vmem:[%s4834 + $0x48] sm:$0xf]
      %v4854 = vld [vmem:[%s4834 + $0x4c] sm:$0xf]
      %v4855 = vld [vmem:[%s4834 + $0x50] sm:$0x1]
      %v4856 = vld [vmem:[%s4834 + $0x54] sm:$0xf]
      %v4857 = vld [vmem:[%s4834 + $0x58] sm:$0xf]
      %v4858 = vld [vmem:[%s4834 + $0x5c] sm:$0x1]
      %s4859 = scalar_lea.vmem %s3, 192
      %v4860 = vld [vmem:[%s4859] sm:$0xf]
      %v4861 = vld [vmem:[%s4859 + $0x4] sm:$0xf]
      %v4862 = vld [vmem:[%s4859 + $0x8] sm:$0xf]
      %v4863 = vld [vmem:[%s4859 + $0xc] sm:$0xf]
      %v4864 = vld [vmem:[%s4859 + $0x10] sm:$0xf]
      %v4865 = vld [vmem:[%s4859 + $0x14] sm:$0xf]
      %v4866 = vld [vmem:[%s4859 + $0x18] sm:$0xf]
      %v4867 = vld [vmem:[%s4859 + $0x1c] sm:$0xf]
      %v4868 = vld [vmem:[%s4859 + $0x20] sm:$0xf]
      %v4869 = vld [vmem:[%s4859 + $0x24] sm:$0xf]
      %v4870 = vld [vmem:[%s4859 + $0x28] sm:$0xf]
      %v4871 = vld [vmem:[%s4859 + $0x2c] sm:$0xf]
      %v4872 = vld [vmem:[%s4859 + $0x30] sm:$0xf]
      %v4873 = vld [vmem:[%s4859 + $0x34] sm:$0xf]
      %v4874 = vld [vmem:[%s4859 + $0x38] sm:$0xf]
      %v4875 = vld [vmem:[%s4859 + $0x3c] sm:$0xf]
      %v4892 = vunpack.c.l.b16 %v4835
      %v4893 = vunpack.c.l.b16 %v4836
      %v4894 = vunpack.c.l.b16 %v4838
      %v4895 = vunpack.c.l.b16 %v4839
      %v4896 = vunpack.c.l.b16 %v4841
      %v4897 = vunpack.c.l.b16 %v4842
      %v4898 = vunpack.c.l.b16 %v4844
      %v4899 = vunpack.c.l.b16 %v4845
      %v4900 = vunpack.c.l.b16 %v4847
      %v4901 = vunpack.c.l.b16 %v4848
      %v4902 = vunpack.c.l.b16 %v4850
      %v4903 = vunpack.c.l.b16 %v4851
      %v4904 = vunpack.c.l.b16 %v4853
      %v4905 = vunpack.c.l.b16 %v4854
      %v4906 = vunpack.c.l.b16 %v4856
      %v4907 = vunpack.c.l.b16 %v4857
      %v4908 = vpack.c.b16 %v4893, %v4892
      %v4909 = vpack.c.b16 %v4895, %v4894
      %v4910 = vpack.c.b16 %v4897, %v4896
      %v4911 = vpack.c.b16 %v4899, %v4898
      %v4912 = vpack.c.b16 %v4901, %v4900
      %v4913 = vpack.c.b16 %v4903, %v4902
      %v4914 = vpack.c.b16 %v4905, %v4904
      %v4915 = vpack.c.b16 %v4907, %v4906
      %v4940 = vunpack.c.l.b16 %v4860
      %v4941 = vunpack.c.l.b16 %v4861
      %v4942 = vunpack.c.l.b16 %v4862
      %v4943 = vunpack.c.l.b16 %v4863
      %v4944 = vunpack.c.l.b16 %v4864
      %v4945 = vunpack.c.l.b16 %v4865
      %v4946 = vunpack.c.l.b16 %v4866
      %v4947 = vunpack.c.l.b16 %v4867
      %v4948 = vunpack.c.l.b16 %v4868
      %v4949 = vunpack.c.l.b16 %v4869
      %v4950 = vunpack.c.l.b16 %v4870
      %v4951 = vunpack.c.l.b16 %v4871
      %v4952 = vunpack.c.l.b16 %v4872
      %v4953 = vunpack.c.l.b16 %v4873
      %v4954 = vunpack.c.l.b16 %v4874
      %v4955 = vunpack.c.l.b16 %v4875
      %v4956 = vpack.c.b16 %v4941, %v4940
      %v4957 = vpack.c.b16 %v4943, %v4942
      %v4958 = vpack.c.b16 %v4945, %v4944
      %v4959 = vpack.c.b16 %v4947, %v4946
      %v4960 = vpack.c.b16 %v4949, %v4948
      %v4961 = vpack.c.b16 %v4951, %v4950
      %v4962 = vpack.c.b16 %v4953, %v4952
      %v4963 = vpack.c.b16 %v4955, %v4954
      %4972 = vmatprep.subr.bf16.mxu0 0
      %4973 = vmatpush1.bf16.msra.mxu0 %v4956
      %4974 = vmatprep.subr.bf16.mxu0 0
      %4975 = vmatpush1.bf16.msra.mxu0 %v4957
      %4976 = vmatprep.subr.bf16.mxu0 0
      %4977 = vmatpush1.bf16.msra.mxu0 %v4958
      %4978 = vmatprep.subr.bf16.mxu0 0
      %4979 = vmatpush1.bf16.msra.mxu0 %v4959
      %4980 = vmatprep.subr.bf16.mxu0 0
      %4981 = vmatpush1.bf16.msra.mxu0 %v4960
      %4982 = vmatprep.subr.bf16.mxu0 0
      %4983 = vmatpush1.bf16.msra.mxu0 %v4961
      %4984 = vmatprep.subr.bf16.mxu0 0
      %4985 = vmatpush1.bf16.msra.mxu0 %v4962
      %4986 = vmatprep.subr.bf16.mxu0 0
      %4987 = vmatpush1.bf16.msra.mxu0 %v4963
      %4988 = vmatprep.subr.bf16.mxu0 0
      %4989 = vmatpush1.bf16.msra.mxu0 0
      %4990 = vmatprep.subr.bf16.mxu0 0
      %4991 = vmatpush1.bf16.msra.mxu0 0
      %4992 = vmatprep.subr.bf16.mxu0 0
      %4993 = vmatpush1.bf16.msra.mxu0 0
      %4994 = vmatprep.subr.bf16.mxu0 0
      %4995 = vmatpush1.bf16.msra.mxu0 0
      %4996 = vmatprep.subr.bf16.mxu0 0
      %4997 = vmatpush1.bf16.msra.mxu0 0
      %4998 = vmatprep.subr.bf16.mxu0 0
      %4999 = vmatpush1.bf16.msra.mxu0 0
      %5000 = vmatprep.subr.bf16.mxu0 0
      %5001 = vmatpush1.bf16.msra.mxu0 0
      %5002 = vmatprep.subr.bf16.mxu0 0
      %5003 = vmatpush1.bf16.msra.mxu0 0
      %5004 = vmatprep.mubr.bf16.mxu0 0
      %5005 = vmatmul.mubr.bf16.gmra.mrb[0].mxu0 %v4908
      %v5006 = vpop.f32.mrb[0].mxu0
      %v5007 = vadd.f32 0.0, %v5006
      %v5008 = vpop.f32.mrb[0].mxu0
      %v5009 = vpop.f32.mrb[0].mxu0
      %v5010 = vadd.f32 0.0, %v5009
      %v5011 = vpop.f32.mrb[0].mxu0
      %5012 = vmatprep.mubr.bf16.mxu0 0
      %5013 = vmatmul.mubr.bf16.gmra.mrb[0].mxu0 %v4909
      %v5014 = vpop.f32.mrb[0].mxu0
      %v5015 = vadd.f32 0.0, %v5014
      %v5016 = vpop.f32.mrb[0].mxu0
      %v5017 = vpop.f32.mrb[0].mxu0
      %v5018 = vadd.f32 0.0, %v5017
      %v5019 = vpop.f32.mrb[0].mxu0
      %5020 = vmatprep.mubr.bf16.mxu0 0
      %5021 = vmatmul.mubr.bf16.gmra.mrb[0].mxu0 %v4910
      %v5022 = vpop.f32.mrb[0].mxu0
      %v5023 = vadd.f32 0.0, %v5022
      %v5024 = vpop.f32.mrb[0].mxu0
      %v5025 = vpop.f32.mrb[0].mxu0
      %v5026 = vadd.f32 0.0, %v5025
      %v5027 = vpop.f32.mrb[0].mxu0
      %5028 = vmatprep.mubr.bf16.mxu0 0
      %5029 = vmatmul.mubr.bf16.gmra.mrb[0].mxu0 %v4911
      %v5030 = vpop.f32.mrb[0].mxu0
      %v5031 = vadd.f32 0.0, %v5030
      %v5032 = vpop.f32.mrb[0].mxu0
      %v5033 = vpop.f32.mrb[0].mxu0
      %v5034 = vadd.f32 0.0, %v5033
      %v5035 = vpop.f32.mrb[0].mxu0
      %5036 = vmatprep.mubr.bf16.mxu0 0
      %5037 = vmatmul.mubr.bf16.gmra.mrb[0].mxu0 %v4912
      %v5038 = vpop.f32.mrb[0].mxu0
      %v5039 = vadd.f32 0.0, %v5038
      %v5040 = vpop.f32.mrb[0].mxu0
      %v5041 = vpop.f32.mrb[0].mxu0
      %v5042 = vadd.f32 0.0, %v5041
      %v5043 = vpop.f32.mrb[0].mxu0
      %5044 = vmatprep.mubr.bf16.mxu0 0
      %5045 = vmatmul.mubr.bf16.gmra.mrb[0].mxu0 %v4913
      %v5046 = vpop.f32.mrb[0].mxu0
      %v5047 = vadd.f32 0.0, %v5046
      %v5048 = vpop.f32.mrb[0].mxu0
      %v5049 = vpop.f32.mrb[0].mxu0
      %v5050 = vadd.f32 0.0, %v5049
      %v5051 = vpop.f32.mrb[0].mxu0
      %5052 = vmatprep.mubr.bf16.mxu0 0
      %5053 = vmatmul.mubr.bf16.gmra.mrb[0].mxu0 %v4914
      %v5054 = vpop.f32.mrb[0].mxu0
      %v5055 = vadd.f32 0.0, %v5054
      %v5056 = vpop.f32.mrb[0].mxu0
      %v5057 = vpop.f32.mrb[0].mxu0
      %v5058 = vadd.f32 0.0, %v5057
      %v5059 = vpop.f32.mrb[0].mxu0
      %5060 = vmatprep.mubr.bf16.mxu0 0
      %5061 = vmatmul.mubr.bf16.gmra.mrb[0].mxu0 %v4915
      %v5062 = vpop.f32.mrb[0].mxu0
      %v5063 = vadd.f32 0.0, %v5062
      %v5064 = vpop.f32.mrb[0].mxu0
      %v5065 = vpop.f32.mrb[0].mxu0
      %v5066 = vadd.f32 0.0, %v5065
      %v5067 = vpop.f32.mrb[0].mxu0
      %5068 = vdwg.mxu0
      %v5069 = vadd.f32 %v4818, %v5007
      %v5070 = vadd.f32 %v4819, %v5010
      %v5071 = vadd.f32 %v4820, %v5015
      %v5072 = vadd.f32 %v4821, %v5018
      %v5073 = vadd.f32 %v4822, %v5023
      %v5074 = vadd.f32 %v4823, %v5026
      %v5075 = vadd.f32 %v4824, %v5031
      %v5076 = vadd.f32 %v4825, %v5034
      %v5077 = vadd.f32 %v4826, %v5039
      %v5078 = vadd.f32 %v4827, %v5042
      %v5079 = vadd.f32 %v4828, %v5047
      %v5080 = vadd.f32 %v4829, %v5050
      %v5081 = vadd.f32 %v4830, %v5055
      %v5082 = vadd.f32 %v4831, %v5058
      %v5083 = vadd.f32 %v4832, %v5063
      %v5084 = vadd.f32 %v4833, %v5066
      %v5086 = vshrl.u32 %v4835, 16
      %v5088 = vrot.slane %v5086, 4
      %v5089 = vshll.u32 %v4835, 16
      %v5091 = vrot.slane %v5089, 5
      %v5092 = vor.u32 %v5088, %v5091
      %v5093 = vrot.slane %v5092, 4
      %v5095 = vshll.u32 %v4836, 16
      %v5097 = vrot.slane %v5095, 5
      %v5098 = vsel %vm303, %v5093, %v5097
      %v5099 = vshrl.u32 %v4836, 16
      %v5101 = vrot.slane %v5099, 4
      %v5102 = vor.u32 %v5101, %v5097
      %v5103 = vrot.slane %v5102, 4
      %v5105 = vshll.u32 %v4837, 16
      %v5107 = vrot.slane %v5105, 5
      %v5108 = vsel %vm303, %v5103, %v5107
      %v5110 = vshrl.u32 %v4838, 16
      %v5112 = vrot.slane %v5110, 4
      %v5113 = vshll.u32 %v4838, 16
      %v5115 = vrot.slane %v5113, 5
      %v5116 = vor.u32 %v5112, %v5115
      %v5117 = vrot.slane %v5116, 4
      %v5119 = vshll.u32 %v4839, 16
      %v5121 = vrot.slane %v5119, 5
      %v5122 = vsel %vm303, %v5117, %v5121
      %v5123 = vshrl.u32 %v4839, 16
      %v5125 = vrot.slane %v5123, 4
      %v5126 = vor.u32 %v5125, %v5121
      %v5127 = vrot.slane %v5126, 4
      %v5129 = vshll.u32 %v4840, 16
      %v5131 = vrot.slane %v5129, 5
      %v5132 = vsel %vm303, %v5127, %v5131
      %v5134 = vshrl.u32 %v4841, 16
      %v5136 = vrot.slane %v5134, 4
      %v5137 = vshll.u32 %v4841, 16
      %v5139 = vrot.slane %v5137, 5
      %v5140 = vor.u32 %v5136, %v5139
      %v5141 = vrot.slane %v5140, 4
      %v5143 = vshll.u32 %v4842, 16
      %v5145 = vrot.slane %v5143, 5
      %v5146 = vsel %vm303, %v5141, %v5145
      %v5147 = vshrl.u32 %v4842, 16
      %v5149 = vrot.slane %v5147, 4
      %v5150 = vor.u32 %v5149, %v5145
      %v5151 = vrot.slane %v5150, 4
      %v5153 = vshll.u32 %v4843, 16
      %v5155 = vrot.slane %v5153, 5
      %v5156 = vsel %vm303, %v5151, %v5155
      %v5158 = vshrl.u32 %v4844, 16
      %v5160 = vrot.slane %v5158, 4
      %v5161 = vshll.u32 %v4844, 16
      %v5163 = vrot.slane %v5161, 5
      %v5164 = vor.u32 %v5160, %v5163
      %v5165 = vrot.slane %v5164, 4
      %v5167 = vshll.u32 %v4845, 16
      %v5169 = vrot.slane %v5167, 5
      %v5170 = vsel %vm303, %v5165, %v5169
      %v5171 = vshrl.u32 %v4845, 16
      %v5173 = vrot.slane %v5171, 4
      %v5174 = vor.u32 %v5173, %v5169
      %v5175 = vrot.slane %v5174, 4
      %v5177 = vshll.u32 %v4846, 16
      %v5179 = vrot.slane %v5177, 5
      %v5180 = vsel %vm303, %v5175, %v5179
      %v5182 = vshrl.u32 %v4847, 16
      %v5184 = vrot.slane %v5182, 4
      %v5185 = vshll.u32 %v4847, 16
      %v5187 = vrot.slane %v5185, 5
      %v5188 = vor.u32 %v5184, %v5187
      %v5189 = vrot.slane %v5188, 4
      %v5191 = vshll.u32 %v4848, 16
      %v5193 = vrot.slane %v5191, 5
      %v5194 = vsel %vm303, %v5189, %v5193
      %v5195 = vshrl.u32 %v4848, 16
      %v5197 = vrot.slane %v5195, 4
      %v5198 = vor.u32 %v5197, %v5193
      %v5199 = vrot.slane %v5198, 4
      %v5201 = vshll.u32 %v4849, 16
      %v5203 = vrot.slane %v5201, 5
      %v5204 = vsel %vm303, %v5199, %v5203
      %v5206 = vshrl.u32 %v4850, 16
      %v5208 = vrot.slane %v5206, 4
      %v5209 = vshll.u32 %v4850, 16
      %v5211 = vrot.slane %v5209, 5
      %v5212 = vor.u32 %v5208, %v5211
      %v5213 = vrot.slane %v5212, 4
      %v5215 = vshll.u32 %v4851, 16
      %v5217 = vrot.slane %v5215, 5
      %v5218 = vsel %vm303, %v5213, %v5217
      %v5219 = vshrl.u32 %v4851, 16
      %v5221 = vrot.slane %v5219, 4
      %v5222 = vor.u32 %v5221, %v5217
      %v5223 = vrot.slane %v5222, 4
      %v5225 = vshll.u32 %v4852, 16
      %v5227 = vrot.slane %v5225, 5
      %v5228 = vsel %vm303, %v5223, %v5227
      %v5230 = vshrl.u32 %v4853, 16
      %v5232 = vrot.slane %v5230, 4
      %v5233 = vshll.u32 %v4853, 16
      %v5235 = vrot.slane %v5233, 5
      %v5236 = vor.u32 %v5232, %v5235
      %v5237 = vrot.slane %v5236, 4
      %v5239 = vshll.u32 %v4854, 16
      %v5241 = vrot.slane %v5239, 5
      %v5242 = vsel %vm303, %v5237, %v5241
      %v5243 = vshrl.u32 %v4854, 16
      %v5245 = vrot.slane %v5243, 4
      %v5246 = vor.u32 %v5245, %v5241
      %v5247 = vrot.slane %v5246, 4
      %v5249 = vshll.u32 %v4855, 16
      %v5251 = vrot.slane %v5249, 5
      %v5252 = vsel %vm303, %v5247, %v5251
      %v5254 = vshrl.u32 %v4856, 16
      %v5256 = vrot.slane %v5254, 4
      %v5257 = vshll.u32 %v4856, 16
      %v5259 = vrot.slane %v5257, 5
      %v5260 = vor.u32 %v5256, %v5259
      %v5261 = vrot.slane %v5260, 4
      %v5263 = vshll.u32 %v4857, 16
      %v5265 = vrot.slane %v5263, 5
      %v5266 = vsel %vm303, %v5261, %v5265
      %v5267 = vshrl.u32 %v4857, 16
      %v5269 = vrot.slane %v5267, 4
      %v5270 = vor.u32 %v5269, %v5265
      %v5271 = vrot.slane %v5270, 4
      %v5273 = vshll.u32 %v4858, 16
      %v5275 = vrot.slane %v5273, 5
      %v5276 = vsel %vm303, %v5271, %v5275
      %s5277 = scalar_lea.vmem %s3, 256
      %v5278 = vld [vmem:[%s5277] sm:$0xf]
      %v5279 = vld [vmem:[%s5277 + $0x4] sm:$0xf]
      %v5280 = vld [vmem:[%s5277 + $0x8] sm:$0xf]
      %v5281 = vld [vmem:[%s5277 + $0xc] sm:$0xf]
      %v5282 = vld [vmem:[%s5277 + $0x10] sm:$0xf]
      %v5283 = vld [vmem:[%s5277 + $0x14] sm:$0xf]
      %v5284 = vld [vmem:[%s5277 + $0x18] sm:$0xf]
      %v5285 = vld [vmem:[%s5277 + $0x1c] sm:$0xf]
      %v5286 = vld [vmem:[%s5277 + $0x20] sm:$0xf]
      %v5287 = vld [vmem:[%s5277 + $0x24] sm:$0xf]
      %v5288 = vld [vmem:[%s5277 + $0x28] sm:$0xf]
      %v5289 = vld [vmem:[%s5277 + $0x2c] sm:$0xf]
      %v5290 = vld [vmem:[%s5277 + $0x30] sm:$0xf]
      %v5291 = vld [vmem:[%s5277 + $0x34] sm:$0xf]
      %v5292 = vld [vmem:[%s5277 + $0x38] sm:$0xf]
      %v5293 = vld [vmem:[%s5277 + $0x3c] sm:$0xf]
      %v5294 = vunpack.c.l.b16 %v5098
      %v5295 = vunpack.c.l.b16 %v5108
      %v5296 = vunpack.c.l.b16 %v5122
      %v5297 = vunpack.c.l.b16 %v5132
      %v5298 = vunpack.c.l.b16 %v5146
      %v5299 = vunpack.c.l.b16 %v5156
      %v5300 = vunpack.c.l.b16 %v5170
      %v5301 = vunpack.c.l.b16 %v5180
      %v5302 = vunpack.c.l.b16 %v5194
      %v5303 = vunpack.c.l.b16 %v5204
      %v5304 = vunpack.c.l.b16 %v5218
      %v5305 = vunpack.c.l.b16 %v5228
      %v5306 = vunpack.c.l.b16 %v5242
      %v5307 = vunpack.c.l.b16 %v5252
      %v5308 = vunpack.c.l.b16 %v5266
      %v5309 = vunpack.c.l.b16 %v5276
      %v5310 = vpack.c.b16 %v5295, %v5294
      %v5311 = vpack.c.b16 %v5297, %v5296
      %v5312 = vpack.c.b16 %v5299, %v5298
      %v5313 = vpack.c.b16 %v5301, %v5300
      %v5314 = vpack.c.b16 %v5303, %v5302
      %v5315 = vpack.c.b16 %v5305, %v5304
      %v5316 = vpack.c.b16 %v5307, %v5306
      %v5317 = vpack.c.b16 %v5309, %v5308
      %v5342 = vunpack.c.l.b16 %v5278
      %v5343 = vunpack.c.l.b16 %v5279
      %v5344 = vunpack.c.l.b16 %v5280
      %v5345 = vunpack.c.l.b16 %v5281
      %v5346 = vunpack.c.l.b16 %v5282
      %v5347 = vunpack.c.l.b16 %v5283
      %v5348 = vunpack.c.l.b16 %v5284
      %v5349 = vunpack.c.l.b16 %v5285
      %v5350 = vunpack.c.l.b16 %v5286
      %v5351 = vunpack.c.l.b16 %v5287
      %v5352 = vunpack.c.l.b16 %v5288
      %v5353 = vunpack.c.l.b16 %v5289
      %v5354 = vunpack.c.l.b16 %v5290
      %v5355 = vunpack.c.l.b16 %v5291
      %v5356 = vunpack.c.l.b16 %v5292
      %v5357 = vunpack.c.l.b16 %v5293
      %v5358 = vpack.c.b16 %v5343, %v5342
      %v5359 = vpack.c.b16 %v5345, %v5344
      %v5360 = vpack.c.b16 %v5347, %v5346
      %v5361 = vpack.c.b16 %v5349, %v5348
      %v5362 = vpack.c.b16 %v5351, %v5350
      %v5363 = vpack.c.b16 %v5353, %v5352
      %v5364 = vpack.c.b16 %v5355, %v5354
      %v5365 = vpack.c.b16 %v5357, %v5356
      %5374 = vmatprep.subr.bf16.mxu0 0
      %5375 = vmatpush1.bf16.msra.mxu0 %v5358
      %5376 = vmatprep.subr.bf16.mxu0 0
      %5377 = vmatpush1.bf16.msra.mxu0 %v5359
      %5378 = vmatprep.subr.bf16.mxu0 0
      %5379 = vmatpush1.bf16.msra.mxu0 %v5360
      %5380 = vmatprep.subr.bf16.mxu0 0
      %5381 = vmatpush1.bf16.msra.mxu0 %v5361
      %5382 = vmatprep.subr.bf16.mxu0 0
      %5383 = vmatpush1.bf16.msra.mxu0 %v5362
      %5384 = vmatprep.subr.bf16.mxu0 0
      %5385 = vmatpush1.bf16.msra.mxu0 %v5363
      %5386 = vmatprep.subr.bf16.mxu0 0
      %5387 = vmatpush1.bf16.msra.mxu0 %v5364
      %5388 = vmatprep.subr.bf16.mxu0 0
      %5389 = vmatpush1.bf16.msra.mxu0 %v5365
      %5390 = vmatprep.subr.bf16.mxu0 0
      %5391 = vmatpush1.bf16.msra.mxu0 0
      %5392 = vmatprep.subr.bf16.mxu0 0
      %5393 = vmatpush1.bf16.msra.mxu0 0
      %5394 = vmatprep.subr.bf16.mxu0 0
      %5395 = vmatpush1.bf16.msra.mxu0 0
      %5396 = vmatprep.subr.bf16.mxu0 0
      %5397 = vmatpush1.bf16.msra.mxu0 0
      %5398 = vmatprep.subr.bf16.mxu0 0
      %5399 = vmatpush1.bf16.msra.mxu0 0
      %5400 = vmatprep.subr.bf16.mxu0 0
      %5401 = vmatpush1.bf16.msra.mxu0 0
      %5402 = vmatprep.subr.bf16.mxu0 0
      %5403 = vmatpush1.bf16.msra.mxu0 0
      %5404 = vmatprep.subr.bf16.mxu0 0
      %5405 = vmatpush1.bf16.msra.mxu0 0
      %5406 = vmatprep.mubr.bf16.mxu0 0
      %5407 = vmatmul.mubr.bf16.gmra.mrb[0].mxu0 %v5310
      %v5408 = vpop.f32.mrb[0].mxu0
      %v5409 = vadd.f32 0.0, %v5408
      %v5410 = vpop.f32.mrb[0].mxu0
      %v5411 = vpop.f32.mrb[0].mxu0
      %v5412 = vadd.f32 0.0, %v5411
      %v5413 = vpop.f32.mrb[0].mxu0
      %5414 = vmatprep.mubr.bf16.mxu0 0
      %5415 = vmatmul.mubr.bf16.gmra.mrb[0].mxu0 %v5311
      %v5416 = vpop.f32.mrb[0].mxu0
      %v5417 = vadd.f32 0.0, %v5416
      %v5418 = vpop.f32.mrb[0].mxu0
      %v5419 = vpop.f32.mrb[0].mxu0
      %v5420 = vadd.f32 0.0, %v5419
      %v5421 = vpop.f32.mrb[0].mxu0
      %5422 = vmatprep.mubr.bf16.mxu0 0
      %5423 = vmatmul.mubr.bf16.gmra.mrb[0].mxu0 %v5312
      %v5424 = vpop.f32.mrb[0].mxu0
      %v5425 = vadd.f32 0.0, %v5424
      %v5426 = vpop.f32.mrb[0].mxu0
      %v5427 = vpop.f32.mrb[0].mxu0
      %v5428 = vadd.f32 0.0, %v5427
      %v5429 = vpop.f32.mrb[0].mxu0
      %5430 = vmatprep.mubr.bf16.mxu0 0
      %5431 = vmatmul.mubr.bf16.gmra.mrb[0].mxu0 %v5313
      %v5432 = vpop.f32.mrb[0].mxu0
      %v5433 = vadd.f32 0.0, %v5432
      %v5434 = vpop.f32.mrb[0].mxu0
      %v5435 = vpop.f32.mrb[0].mxu0
      %v5436 = vadd.f32 0.0, %v5435
      %v5437 = vpop.f32.mrb[0].mxu0
      %5438 = vmatprep.mubr.bf16.mxu0 0
      %5439 = vmatmul.mubr.bf16.gmra.mrb[0].mxu0 %v5314
      %v5440 = vpop.f32.mrb[0].mxu0
      %v5441 = vadd.f32 0.0, %v5440
      %v5442 = vpop.f32.mrb[0].mxu0
      %v5443 = vpop.f32.mrb[0].mxu0
      %v5444 = vadd.f32 0.0, %v5443
      %v5445 = vpop.f32.mrb[0].mxu0
      %5446 = vmatprep.mubr.bf16.mxu0 0
      %5447 = vmatmul.mubr.bf16.gmra.mrb[0].mxu0 %v5315
      %v5448 = vpop.f32.mrb[0].mxu0
      %v5449 = vadd.f32 0.0, %v5448
      %v5450 = vpop.f32.mrb[0].mxu0
      %v5451 = vpop.f32.mrb[0].mxu0
      %v5452 = vadd.f32 0.0, %v5451
      %v5453 = vpop.f32.mrb[0].mxu0
      %5454 = vmatprep.mubr.bf16.mxu0 0
      %5455 = vmatmul.mubr.bf16.gmra.mrb[0].mxu0 %v5316
      %v5456 = vpop.f32.mrb[0].mxu0
      %v5457 = vadd.f32 0.0, %v5456
      %v5458 = vpop.f32.mrb[0].mxu0
      %v5459 = vpop.f32.mrb[0].mxu0
      %v5460 = vadd.f32 0.0, %v5459
      %v5461 = vpop.f32.mrb[0].mxu0
      %5462 = vmatprep.mubr.bf16.mxu0 0
      %5463 = vmatmul.mubr.bf16.gmra.mrb[0].mxu0 %v5317
      %v5464 = vpop.f32.mrb[0].mxu0
      %v5465 = vadd.f32 0.0, %v5464
      %v5466 = vpop.f32.mrb[0].mxu0
      %v5467 = vpop.f32.mrb[0].mxu0
      %v5468 = vadd.f32 0.0, %v5467
      %v5469 = vpop.f32.mrb[0].mxu0
      %5470 = vdwg.mxu0
      %v5471 = vadd.f32 %v5069, %v5409
      %v5472 = vadd.f32 %v5070, %v5412
      %v5473 = vadd.f32 %v5071, %v5417
      %v5474 = vadd.f32 %v5072, %v5420
      %v5475 = vadd.f32 %v5073, %v5425
      %v5476 = vadd.f32 %v5074, %v5428
      %v5477 = vadd.f32 %v5075, %v5433
      %v5478 = vadd.f32 %v5076, %v5436
      %v5479 = vadd.f32 %v5077, %v5441
      %v5480 = vadd.f32 %v5078, %v5444
      %v5481 = vadd.f32 %v5079, %v5449
      %v5482 = vadd.f32 %v5080, %v5452
      %v5483 = vadd.f32 %v5081, %v5457
      %v5484 = vadd.f32 %v5082, %v5460
      %v5485 = vadd.f32 %v5083, %v5465
      %v5486 = vadd.f32 %v5084, %v5468
      %v5495 = vrot.slane %v4835, 5
      %v5496 = vrot.slane %v5495, 4
      %v5497 = vrot.slane %v4836, 5
      %v5498 = vsel %vm995, %v5496, %v5497
      %v5499 = vrot.slane %v5497, 4
      %v5500 = vrot.slane %v4837, 5
      %v5501 = vsel %vm995, %v5499, %v5500
      %v5502 = vrot.slane %v4838, 5
      %v5503 = vrot.slane %v5502, 4
      %v5504 = vrot.slane %v4839, 5
      %v5505 = vsel %vm995, %v5503, %v5504
      %v5506 = vrot.slane %v5504, 4
      %v5507 = vrot.slane %v4840, 5
      %v5508 = vsel %vm995, %v5506, %v5507
      %v5509 = vrot.slane %v4841, 5
      %v5510 = vrot.slane %v5509, 4
      %v5511 = vrot.slane %v4842, 5
      %v5512 = vsel %vm995, %v5510, %v5511
      %v5513 = vrot.slane %v5511, 4
      %v5514 = vrot.slane %v4843, 5
      %v5515 = vsel %vm995, %v5513, %v5514
      %v5516 = vrot.slane %v4844, 5
      %v5517 = vrot.slane %v5516, 4
      %v5518 = vrot.slane %v4845, 5
      %v5519 = vsel %vm995, %v5517, %v5518
      %v5520 = vrot.slane %v5518, 4
      %v5521 = vrot.slane %v4846, 5
      %v5522 = vsel %vm995, %v5520, %v5521
      %v5523 = vrot.slane %v4847, 5
      %v5524 = vrot.slane %v5523, 4
      %v5525 = vrot.slane %v4848, 5
      %v5526 = vsel %vm995, %v5524, %v5525
      %v5527 = vrot.slane %v5525, 4
      %v5528 = vrot.slane %v4849, 5
      %v5529 = vsel %vm995, %v5527, %v5528
      %v5530 = vrot.slane %v4850, 5
      %v5531 = vrot.slane %v5530, 4
      %v5532 = vrot.slane %v4851, 5
      %v5533 = vsel %vm995, %v5531, %v5532
      %v5534 = vrot.slane %v5532, 4
      %v5535 = vrot.slane %v4852, 5
      %v5536 = vsel %vm995, %v5534, %v5535
      %v5537 = vrot.slane %v4853, 5
      %v5538 = vrot.slane %v5537, 4
      %v5539 = vrot.slane %v4854, 5
      %v5540 = vsel %vm995, %v5538, %v5539
      %v5541 = vrot.slane %v5539, 4
      %v5542 = vrot.slane %v4855, 5
      %v5543 = vsel %vm995, %v5541, %v5542
      %v5544 = vrot.slane %v4856, 5
      %v5545 = vrot.slane %v5544, 4
      %v5546 = vrot.slane %v4857, 5
      %v5547 = vsel %vm995, %v5545, %v5546
      %v5548 = vrot.slane %v5546, 4
      %v5549 = vrot.slane %v4858, 5
      %v5550 = vsel %vm995, %v5548, %v5549
      %s5551 = scalar_lea.vmem %s3, 320
      %v5552 = vld [vmem:[%s5551] sm:$0xf]
      %v5553 = vld [vmem:[%s5551 + $0x4] sm:$0xf]
      %v5554 = vld [vmem:[%s5551 + $0x8] sm:$0xf]
      %v5555 = vld [vmem:[%s5551 + $0xc] sm:$0xf]
      %v5556 = vld [vmem:[%s5551 + $0x10] sm:$0xf]
      %v5557 = vld [vmem:[%s5551 + $0x14] sm:$0xf]
      %v5558 = vld [vmem:[%s5551 + $0x18] sm:$0xf]
      %v5559 = vld [vmem:[%s5551 + $0x1c] sm:$0xf]
      %v5560 = vld [vmem:[%s5551 + $0x20] sm:$0xf]
      %v5561 = vld [vmem:[%s5551 + $0x24] sm:$0xf]
      %v5562 = vld [vmem:[%s5551 + $0x28] sm:$0xf]
      %v5563 = vld [vmem:[%s5551 + $0x2c] sm:$0xf]
      %v5564 = vld [vmem:[%s5551 + $0x30] sm:$0xf]
      %v5565 = vld [vmem:[%s5551 + $0x34] sm:$0xf]
      %v5566 = vld [vmem:[%s5551 + $0x38] sm:$0xf]
      %v5567 = vld [vmem:[%s5551 + $0x3c] sm:$0xf]
      %v5568 = vunpack.c.l.b16 %v5498
      %v5569 = vunpack.c.l.b16 %v5501
      %v5570 = vunpack.c.l.b16 %v5505
      %v5571 = vunpack.c.l.b16 %v5508
      %v5572 = vunpack.c.l.b16 %v5512
      %v5573 = vunpack.c.l.b16 %v5515
      %v5574 = vunpack.c.l.b16 %v5519
      %v5575 = vunpack.c.l.b16 %v5522
      %v5576 = vunpack.c.l.b16 %v5526
      %v5577 = vunpack.c.l.b16 %v5529
      %v5578 = vunpack.c.l.b16 %v5533
      %v5579 = vunpack.c.l.b16 %v5536
      %v5580 = vunpack.c.l.b16 %v5540
      %v5581 = vunpack.c.l.b16 %v5543
      %v5582 = vunpack.c.l.b16 %v5547
      %v5583 = vunpack.c.l.b16 %v5550
      %v5584 = vpack.c.b16 %v5569, %v5568
      %v5585 = vpack.c.b16 %v5571, %v5570
      %v5586 = vpack.c.b16 %v5573, %v5572
      %v5587 = vpack.c.b16 %v5575, %v5574
      %v5588 = vpack.c.b16 %v5577, %v5576
      %v5589 = vpack.c.b16 %v5579, %v5578
      %v5590 = vpack.c.b16 %v5581, %v5580
      %v5591 = vpack.c.b16 %v5583, %v5582
      %v5616 = vunpack.c.l.b16 %v5552
      %v5617 = vunpack.c.l.b16 %v5553
      %v5618 = vunpack.c.l.b16 %v5554
      %v5619 = vunpack.c.l.b16 %v5555
      %v5620 = vunpack.c.l.b16 %v5556
      %v5621 = vunpack.c.l.b16 %v5557
      %v5622 = vunpack.c.l.b16 %v5558
      %v5623 = vunpack.c.l.b16 %v5559
      %v5624 = vunpack.c.l.b16 %v5560
      %v5625 = vunpack.c.l.b16 %v5561
      %v5626 = vunpack.c.l.b16 %v5562
      %v5627 = vunpack.c.l.b16 %v5563
      %v5628 = vunpack.c.l.b16 %v5564
      %v5629 = vunpack.c.l.b16 %v5565
      %v5630 = vunpack.c.l.b16 %v5566
      %v5631 = vunpack.c.l.b16 %v5567
      %v5632 = vpack.c.b16 %v5617, %v5616
      %v5633 = vpack.c.b16 %v5619, %v5618
      %v5634 = vpack.c.b16 %v5621, %v5620
      %v5635 = vpack.c.b16 %v5623, %v5622
      %v5636 = vpack.c.b16 %v5625, %v5624
      %v5637 = vpack.c.b16 %v5627, %v5626
      %v5638 = vpack.c.b16 %v5629, %v5628
      %v5639 = vpack.c.b16 %v5631, %v5630
      %5648 = vmatprep.subr.bf16.mxu0 0
      %5649 = vmatpush1.bf16.msra.mxu0 %v5632
      %5650 = vmatprep.subr.bf16.mxu0 0
      %5651 = vmatpush1.bf16.msra.mxu0 %v5633
      %5652 = vmatprep.subr.bf16.mxu0 0
      %5653 = vmatpush1.bf16.msra.mxu0 %v5634
      %5654 = vmatprep.subr.bf16.mxu0 0
      %5655 = vmatpush1.bf16.msra.mxu0 %v5635
      %5656 = vmatprep.subr.bf16.mxu0 0
      %5657 = vmatpush1.bf16.msra.mxu0 %v5636
      %5658 = vmatprep.subr.bf16.mxu0 0
      %5659 = vmatpush1.bf16.msra.mxu0 %v5637
      %5660 = vmatprep.subr.bf16.mxu0 0
      %5661 = vmatpush1.bf16.msra.mxu0 %v5638
      %5662 = vmatprep.subr.bf16.mxu0 0
      %5663 = vmatpush1.bf16.msra.mxu0 %v5639
      %5664 = vmatprep.subr.bf16.mxu0 0
      %5665 = vmatpush1.bf16.msra.mxu0 0
      %5666 = vmatprep.subr.bf16.mxu0 0
      %5667 = vmatpush1.bf16.msra.mxu0 0
      %5668 = vmatprep.subr.bf16.mxu0 0
      %5669 = vmatpush1.bf16.msra.mxu0 0
      %5670 = vmatprep.subr.bf16.mxu0 0
      %5671 = vmatpush1.bf16.msra.mxu0 0
      %5672 = vmatprep.subr.bf16.mxu0 0
      %5673 = vmatpush1.bf16.msra.mxu0 0
      %5674 = vmatprep.subr.bf16.mxu0 0
      %5675 = vmatpush1.bf16.msra.mxu0 0
      %5676 = vmatprep.subr.bf16.mxu0 0
      %5677 = vmatpush1.bf16.msra.mxu0 0
      %5678 = vmatprep.subr.bf16.mxu0 0
      %5679 = vmatpush1.bf16.msra.mxu0 0
      %5680 = vmatprep.mubr.bf16.mxu0 0
      %5681 = vmatmul.mubr.bf16.gmra.mrb[0].mxu0 %v5584
      %v5682 = vpop.f32.mrb[0].mxu0
      %v5683 = vadd.f32 0.0, %v5682
      %v5684 = vpop.f32.mrb[0].mxu0
      %v5685 = vpop.f32.mrb[0].mxu0
      %v5686 = vadd.f32 0.0, %v5685
      %v5687 = vpop.f32.mrb[0].mxu0
      %5688 = vmatprep.mubr.bf16.mxu0 0
      %5689 = vmatmul.mubr.bf16.gmra.mrb[0].mxu0 %v5585
      %v5690 = vpop.f32.mrb[0].mxu0
      %v5691 = vadd.f32 0.0, %v5690
      %v5692 = vpop.f32.mrb[0].mxu0
      %v5693 = vpop.f32.mrb[0].mxu0
      %v5694 = vadd.f32 0.0, %v5693
      %v5695 = vpop.f32.mrb[0].mxu0
      %5696 = vmatprep.mubr.bf16.mxu0 0
      %5697 = vmatmul.mubr.bf16.gmra.mrb[0].mxu0 %v5586
      %v5698 = vpop.f32.mrb[0].mxu0
      %v5699 = vadd.f32 0.0, %v5698
      %v5700 = vpop.f32.mrb[0].mxu0
      %v5701 = vpop.f32.mrb[0].mxu0
      %v5702 = vadd.f32 0.0, %v5701
      %v5703 = vpop.f32.mrb[0].mxu0
      %5704 = vmatprep.mubr.bf16.mxu0 0
      %5705 = vmatmul.mubr.bf16.gmra.mrb[0].mxu0 %v5587
      %v5706 = vpop.f32.mrb[0].mxu0
      %v5707 = vadd.f32 0.0, %v5706
      %v5708 = vpop.f32.mrb[0].mxu0
      %v5709 = vpop.f32.mrb[0].mxu0
      %v5710 = vadd.f32 0.0, %v5709
      %v5711 = vpop.f32.mrb[0].mxu0
      %5712 = vmatprep.mubr.bf16.mxu0 0
      %5713 = vmatmul.mubr.bf16.gmra.mrb[0].mxu0 %v5588
      %v5714 = vpop.f32.mrb[0].mxu0
      %v5715 = vadd.f32 0.0, %v5714
      %v5716 = vpop.f32.mrb[0].mxu0
      %v5717 = vpop.f32.mrb[0].mxu0
      %v5718 = vadd.f32 0.0, %v5717
      %v5719 = vpop.f32.mrb[0].mxu0
      %5720 = vmatprep.mubr.bf16.mxu0 0
      %5721 = vmatmul.mubr.bf16.gmra.mrb[0].mxu0 %v5589
      %v5722 = vpop.f32.mrb[0].mxu0
      %v5723 = vadd.f32 0.0, %v5722
      %v5724 = vpop.f32.mrb[0].mxu0
      %v5725 = vpop.f32.mrb[0].mxu0
      %v5726 = vadd.f32 0.0, %v5725
      %v5727 = vpop.f32.mrb[0].mxu0
      %5728 = vmatprep.mubr.bf16.mxu0 0
      %5729 = vmatmul.mubr.bf16.gmra.mrb[0].mxu0 %v5590
      %v5730 = vpop.f32.mrb[0].mxu0
      %v5731 = vadd.f32 0.0, %v5730
      %v5732 = vpop.f32.mrb[0].mxu0
      %v5733 = vpop.f32.mrb[0].mxu0
      %v5734 = vadd.f32 0.0, %v5733
      %v5735 = vpop.f32.mrb[0].mxu0
      %5736 = vmatprep.mubr.bf16.mxu0 0
      %5737 = vmatmul.mubr.bf16.gmra.mrb[0].mxu0 %v5591
      %v5738 = vpop.f32.mrb[0].mxu0
      %v5739 = vadd.f32 0.0, %v5738
      %v5740 = vpop.f32.mrb[0].mxu0
      %v5741 = vpop.f32.mrb[0].mxu0
      %v5742 = vadd.f32 0.0, %v5741
      %v5743 = vpop.f32.mrb[0].mxu0
      %5744 = vdwg.mxu0
      %v5745 = vadd.f32 %v5471, %v5683
      %v5746 = vadd.f32 %v5472, %v5686
      %v5747 = vadd.f32 %v5473, %v5691
      %v5748 = vadd.f32 %v5474, %v5694
      %v5749 = vadd.f32 %v5475, %v5699
      %v5750 = vadd.f32 %v5476, %v5702
      %v5751 = vadd.f32 %v5477, %v5707
      %v5752 = vadd.f32 %v5478, %v5710
      %v5753 = vadd.f32 %v5479, %v5715
      %v5754 = vadd.f32 %v5480, %v5718
      %v5755 = vadd.f32 %v5481, %v5723
      %v5756 = vadd.f32 %v5482, %v5726
      %v5757 = vadd.f32 %v5483, %v5731
      %v5758 = vadd.f32 %v5484, %v5734
      %v5759 = vadd.f32 %v5485, %v5739
      %v5760 = vadd.f32 %v5486, %v5742
      %s5761 = scalar_lea.vmem [#allocation2], 24
      %v5762 = vld [vmem:[%s5761] sm:$0xf]
      %v5763 = vld [vmem:[%s5761 + $0x4] sm:$0xf]
      %v5764 = vld [vmem:[%s5761 + $0x8] sm:$0x1]
      %v5765 = vld [vmem:[%s5761 + $0xc] sm:$0xf]
      %v5766 = vld [vmem:[%s5761 + $0x10] sm:$0xf]
      %v5767 = vld [vmem:[%s5761 + $0x14] sm:$0x1]
      %v5768 = vld [vmem:[%s5761 + $0x18] sm:$0xf]
      %v5769 = vld [vmem:[%s5761 + $0x1c] sm:$0xf]
      %v5770 = vld [vmem:[%s5761 + $0x20] sm:$0x1]
      %v5771 = vld [vmem:[%s5761 + $0x24] sm:$0xf]
      %v5772 = vld [vmem:[%s5761 + $0x28] sm:$0xf]
      %v5773 = vld [vmem:[%s5761 + $0x2c] sm:$0x1]
      %v5774 = vld [vmem:[%s5761 + $0x30] sm:$0xf]
      %v5775 = vld [vmem:[%s5761 + $0x34] sm:$0xf]
      %v5776 = vld [vmem:[%s5761 + $0x38] sm:$0x1]
      %v5777 = vld [vmem:[%s5761 + $0x3c] sm:$0xf]
      %v5778 = vld [vmem:[%s5761 + $0x40] sm:$0xf]
      %v5779 = vld [vmem:[%s5761 + $0x44] sm:$0x1]
      %v5780 = vld [vmem:[%s5761 + $0x48] sm:$0xf]
      %v5781 = vld [vmem:[%s5761 + $0x4c] sm:$0xf]
      %v5782 = vld [vmem:[%s5761 + $0x50] sm:$0x1]
      %v5783 = vld [vmem:[%s5761 + $0x54] sm:$0xf]
      %v5784 = vld [vmem:[%s5761 + $0x58] sm:$0xf]
      %v5785 = vld [vmem:[%s5761 + $0x5c] sm:$0x1]
      %s5786 = scalar_lea.vmem %s3, 384
      %v5787 = vld [vmem:[%s5786] sm:$0xf]
      %v5788 = vld [vmem:[%s5786 + $0x4] sm:$0xf]
      %v5789 = vld [vmem:[%s5786 + $0x8] sm:$0xf]
      %v5790 = vld [vmem:[%s5786 + $0xc] sm:$0xf]
      %v5791 = vld [vmem:[%s5786 + $0x10] sm:$0xf]
      %v5792 = vld [vmem:[%s5786 + $0x14] sm:$0xf]
      %v5793 = vld [vmem:[%s5786 + $0x18] sm:$0xf]
      %v5794 = vld [vmem:[%s5786 + $0x1c] sm:$0xf]
      %v5795 = vld [vmem:[%s5786 + $0x20] sm:$0xf]
      %v5796 = vld [vmem:[%s5786 + $0x24] sm:$0xf]
      %v5797 = vld [vmem:[%s5786 + $0x28] sm:$0xf]
      %v5798 = vld [vmem:[%s5786 + $0x2c] sm:$0xf]
      %v5799 = vld [vmem:[%s5786 + $0x30] sm:$0xf]
      %v5800 = vld [vmem:[%s5786 + $0x34] sm:$0xf]
      %v5801 = vld [vmem:[%s5786 + $0x38] sm:$0xf]
      %v5802 = vld [vmem:[%s5786 + $0x3c] sm:$0xf]
      %v5819 = vunpack.c.l.b16 %v5762
      %v5820 = vunpack.c.l.b16 %v5763
      %v5821 = vunpack.c.l.b16 %v5765
      %v5822 = vunpack.c.l.b16 %v5766
      %v5823 = vunpack.c.l.b16 %v5768
      %v5824 = vunpack.c.l.b16 %v5769
      %v5825 = vunpack.c.l.b16 %v5771
      %v5826 = vunpack.c.l.b16 %v5772
      %v5827 = vunpack.c.l.b16 %v5774
      %v5828 = vunpack.c.l.b16 %v5775
      %v5829 = vunpack.c.l.b16 %v5777
      %v5830 = vunpack.c.l.b16 %v5778
      %v5831 = vunpack.c.l.b16 %v5780
      %v5832 = vunpack.c.l.b16 %v5781
      %v5833 = vunpack.c.l.b16 %v5783
      %v5834 = vunpack.c.l.b16 %v5784
      %v5835 = vpack.c.b16 %v5820, %v5819
      %v5836 = vpack.c.b16 %v5822, %v5821
      %v5837 = vpack.c.b16 %v5824, %v5823
      %v5838 = vpack.c.b16 %v5826, %v5825
      %v5839 = vpack.c.b16 %v5828, %v5827
      %v5840 = vpack.c.b16 %v5830, %v5829
      %v5841 = vpack.c.b16 %v5832, %v5831
      %v5842 = vpack.c.b16 %v5834, %v5833
      %v5867 = vunpack.c.l.b16 %v5787
      %v5868 = vunpack.c.l.b16 %v5788
      %v5869 = vunpack.c.l.b16 %v5789
      %v5870 = vunpack.c.l.b16 %v5790
      %v5871 = vunpack.c.l.b16 %v5791
      %v5872 = vunpack.c.l.b16 %v5792
      %v5873 = vunpack.c.l.b16 %v5793
      %v5874 = vunpack.c.l.b16 %v5794
      %v5875 = vunpack.c.l.b16 %v5795
      %v5876 = vunpack.c.l.b16 %v5796
      %v5877 = vunpack.c.l.b16 %v5797
      %v5878 = vunpack.c.l.b16 %v5798
      %v5879 = vunpack.c.l.b16 %v5799
      %v5880 = vunpack.c.l.b16 %v5800
      %v5881 = vunpack.c.l.b16 %v5801
      %v5882 = vunpack.c.l.b16 %v5802
      %v5883 = vpack.c.b16 %v5868, %v5867
      %v5884 = vpack.c.b16 %v5870, %v5869
      %v5885 = vpack.c.b16 %v5872, %v5871
      %v5886 = vpack.c.b16 %v5874, %v5873
      %v5887 = vpack.c.b16 %v5876, %v5875
      %v5888 = vpack.c.b16 %v5878, %v5877
      %v5889 = vpack.c.b16 %v5880, %v5879
      %v5890 = vpack.c.b16 %v5882, %v5881
      %5899 = vmatprep.subr.bf16.mxu0 0
      %5900 = vmatpush1.bf16.msra.mxu0 %v5883
      %5901 = vmatprep.subr.bf16.mxu0 0
      %5902 = vmatpush1.bf16.msra.mxu0 %v5884
      %5903 = vmatprep.subr.bf16.mxu0 0
      %5904 = vmatpush1.bf16.msra.mxu0 %v5885
      %5905 = vmatprep.subr.bf16.mxu0 0
      %5906 = vmatpush1.bf16.msra.mxu0 %v5886
      %5907 = vmatprep.subr.bf16.mxu0 0
      %5908 = vmatpush1.bf16.msra.mxu0 %v5887
      %5909 = vmatprep.subr.bf16.mxu0 0
      %5910 = vmatpush1.bf16.msra.mxu0 %v5888
      %5911 = vmatprep.subr.bf16.mxu0 0
      %5912 = vmatpush1.bf16.msra.mxu0 %v5889
      %5913 = vmatprep.subr.bf16.mxu0 0
      %5914 = vmatpush1.bf16.msra.mxu0 %v5890
      %5915 = vmatprep.subr.bf16.mxu0 0
      %5916 = vmatpush1.bf16.msra.mxu0 0
      %5917 = vmatprep.subr.bf16.mxu0 0
      %5918 = vmatpush1.bf16.msra.mxu0 0
      %5919 = vmatprep.subr.bf16.mxu0 0
      %5920 = vmatpush1.bf16.msra.mxu0 0
      %5921 = vmatprep.subr.bf16.mxu0 0
      %5922 = vmatpush1.bf16.msra.mxu0 0
      %5923 = vmatprep.subr.bf16.mxu0 0
      %5924 = vmatpush1.bf16.msra.mxu0 0
      %5925 = vmatprep.subr.bf16.mxu0 0
      %5926 = vmatpush1.bf16.msra.mxu0 0
      %5927 = vmatprep.subr.bf16.mxu0 0
      %5928 = vmatpush1.bf16.msra.mxu0 0
      %5929 = vmatprep.subr.bf16.mxu0 0
      %5930 = vmatpush1.bf16.msra.mxu0 0
      %5931 = vmatprep.mubr.bf16.mxu0 0
      %5932 = vmatmul.mubr.bf16.gmra.mrb[0].mxu0 %v5835
      %v5933 = vpop.f32.mrb[0].mxu0
      %v5934 = vadd.f32 0.0, %v5933
      %v5935 = vpop.f32.mrb[0].mxu0
      %v5936 = vpop.f32.mrb[0].mxu0
      %v5937 = vadd.f32 0.0, %v5936
      %v5938 = vpop.f32.mrb[0].mxu0
      %5939 = vmatprep.mubr.bf16.mxu0 0
      %5940 = vmatmul.mubr.bf16.gmra.mrb[0].mxu0 %v5836
      %v5941 = vpop.f32.mrb[0].mxu0
      %v5942 = vadd.f32 0.0, %v5941
      %v5943 = vpop.f32.mrb[0].mxu0
      %v5944 = vpop.f32.mrb[0].mxu0
      %v5945 = vadd.f32 0.0, %v5944
      %v5946 = vpop.f32.mrb[0].mxu0
      %5947 = vmatprep.mubr.bf16.mxu0 0
      %5948 = vmatmul.mubr.bf16.gmra.mrb[0].mxu0 %v5837
      %v5949 = vpop.f32.mrb[0].mxu0
      %v5950 = vadd.f32 0.0, %v5949
      %v5951 = vpop.f32.mrb[0].mxu0
      %v5952 = vpop.f32.mrb[0].mxu0
      %v5953 = vadd.f32 0.0, %v5952
      %v5954 = vpop.f32.mrb[0].mxu0
      %5955 = vmatprep.mubr.bf16.mxu0 0
      %5956 = vmatmul.mubr.bf16.gmra.mrb[0].mxu0 %v5838
      %v5957 = vpop.f32.mrb[0].mxu0
      %v5958 = vadd.f32 0.0, %v5957
      %v5959 = vpop.f32.mrb[0].mxu0
      %v5960 = vpop.f32.mrb[0].mxu0
      %v5961 = vadd.f32 0.0, %v5960
      %v5962 = vpop.f32.mrb[0].mxu0
      %5963 = vmatprep.mubr.bf16.mxu0 0
      %5964 = vmatmul.mubr.bf16.gmra.mrb[0].mxu0 %v5839
      %v5965 = vpop.f32.mrb[0].mxu0
      %v5966 = vadd.f32 0.0, %v5965
      %v5967 = vpop.f32.mrb[0].mxu0
      %v5968 = vpop.f32.mrb[0].mxu0
      %v5969 = vadd.f32 0.0, %v5968
      %v5970 = vpop.f32.mrb[0].mxu0
      %5971 = vmatprep.mubr.bf16.mxu0 0
      %5972 = vmatmul.mubr.bf16.gmra.mrb[0].mxu0 %v5840
      %v5973 = vpop.f32.mrb[0].mxu0
      %v5974 = vadd.f32 0.0, %v5973
      %v5975 = vpop.f32.mrb[0].mxu0
      %v5976 = vpop.f32.mrb[0].mxu0
      %v5977 = vadd.f32 0.0, %v5976
      %v5978 = vpop.f32.mrb[0].mxu0
      %5979 = vmatprep.mubr.bf16.mxu0 0
      %5980 = vmatmul.mubr.bf16.gmra.mrb[0].mxu0 %v5841
      %v5981 = vpop.f32.mrb[0].mxu0
      %v5982 = vadd.f32 0.0, %v5981
      %v5983 = vpop.f32.mrb[0].mxu0
      %v5984 = vpop.f32.mrb[0].mxu0
      %v5985 = vadd.f32 0.0, %v5984
      %v5986 = vpop.f32.mrb[0].mxu0
      %5987 = vmatprep.mubr.bf16.mxu0 0
      %5988 = vmatmul.mubr.bf16.gmra.mrb[0].mxu0 %v5842
      %v5989 = vpop.f32.mrb[0].mxu0
      %v5990 = vadd.f32 0.0, %v5989
      %v5991 = vpop.f32.mrb[0].mxu0
      %v5992 = vpop.f32.mrb[0].mxu0
      %v5993 = vadd.f32 0.0, %v5992
      %v5994 = vpop.f32.mrb[0].mxu0
      %5995 = vdwg.mxu0
      %v5996 = vadd.f32 %v5745, %v5934
      %v5997 = vadd.f32 %v5746, %v5937
      %v5998 = vadd.f32 %v5747, %v5942
      %v5999 = vadd.f32 %v5748, %v5945
      %v6000 = vadd.f32 %v5749, %v5950
      %v6001 = vadd.f32 %v5750, %v5953
      %v6002 = vadd.f32 %v5751, %v5958
      %v6003 = vadd.f32 %v5752, %v5961
      %v6004 = vadd.f32 %v5753, %v5966
      %v6005 = vadd.f32 %v5754, %v5969
      %v6006 = vadd.f32 %v5755, %v5974
      %v6007 = vadd.f32 %v5756, %v5977
      %v6008 = vadd.f32 %v5757, %v5982
      %v6009 = vadd.f32 %v5758, %v5985
      %v6010 = vadd.f32 %v5759, %v5990
      %v6011 = vadd.f32 %v5760, %v5993
      %v6013 = vshrl.u32 %v5762, 16
      %v6015 = vrot.slane %v6013, 4
      %v6016 = vshll.u32 %v5762, 16
      %v6018 = vrot.slane %v6016, 5
      %v6019 = vor.u32 %v6015, %v6018
      %v6020 = vrot.slane %v6019, 4
      %v6022 = vshll.u32 %v5763, 16
      %v6024 = vrot.slane %v6022, 5
      %v6025 = vsel %vm303, %v6020, %v6024
      %v6026 = vshrl.u32 %v5763, 16
      %v6028 = vrot.slane %v6026, 4
      %v6029 = vor.u32 %v6028, %v6024
      %v6030 = vrot.slane %v6029, 4
      %v6032 = vshll.u32 %v5764, 16
      %v6034 = vrot.slane %v6032, 5
      %v6035 = vsel %vm303, %v6030, %v6034
      %v6037 = vshrl.u32 %v5765, 16
      %v6039 = vrot.slane %v6037, 4
      %v6040 = vshll.u32 %v5765, 16
      %v6042 = vrot.slane %v6040, 5
      %v6043 = vor.u32 %v6039, %v6042
      %v6044 = vrot.slane %v6043, 4
      %v6046 = vshll.u32 %v5766, 16
      %v6048 = vrot.slane %v6046, 5
      %v6049 = vsel %vm303, %v6044, %v6048
      %v6050 = vshrl.u32 %v5766, 16
      %v6052 = vrot.slane %v6050, 4
      %v6053 = vor.u32 %v6052, %v6048
      %v6054 = vrot.slane %v6053, 4
      %v6056 = vshll.u32 %v5767, 16
      %v6058 = vrot.slane %v6056, 5
      %v6059 = vsel %vm303, %v6054, %v6058
      %v6061 = vshrl.u32 %v5768, 16
      %v6063 = vrot.slane %v6061, 4
      %v6064 = vshll.u32 %v5768, 16
      %v6066 = vrot.slane %v6064, 5
      %v6067 = vor.u32 %v6063, %v6066
      %v6068 = vrot.slane %v6067, 4
      %v6070 = vshll.u32 %v5769, 16
      %v6072 = vrot.slane %v6070, 5
      %v6073 = vsel %vm303, %v6068, %v6072
      %v6074 = vshrl.u32 %v5769, 16
      %v6076 = vrot.slane %v6074, 4
      %v6077 = vor.u32 %v6076, %v6072
      %v6078 = vrot.slane %v6077, 4
      %v6080 = vshll.u32 %v5770, 16
      %v6082 = vrot.slane %v6080, 5
      %v6083 = vsel %vm303, %v6078, %v6082
      %v6085 = vshrl.u32 %v5771, 16
      %v6087 = vrot.slane %v6085, 4
      %v6088 = vshll.u32 %v5771, 16
      %v6090 = vrot.slane %v6088, 5
      %v6091 = vor.u32 %v6087, %v6090
      %v6092 = vrot.slane %v6091, 4
      %v6094 = vshll.u32 %v5772, 16
      %v6096 = vrot.slane %v6094, 5
      %v6097 = vsel %vm303, %v6092, %v6096
      %v6098 = vshrl.u32 %v5772, 16
      %v6100 = vrot.slane %v6098, 4
      %v6101 = vor.u32 %v6100, %v6096
      %v6102 = vrot.slane %v6101, 4
      %v6104 = vshll.u32 %v5773, 16
      %v6106 = vrot.slane %v6104, 5
      %v6107 = vsel %vm303, %v6102, %v6106
      %v6109 = vshrl.u32 %v5774, 16
      %v6111 = vrot.slane %v6109, 4
      %v6112 = vshll.u32 %v5774, 16
      %v6114 = vrot.slane %v6112, 5
      %v6115 = vor.u32 %v6111, %v6114
      %v6116 = vrot.slane %v6115, 4
      %v6118 = vshll.u32 %v5775, 16
      %v6120 = vrot.slane %v6118, 5
      %v6121 = vsel %vm303, %v6116, %v6120
      %v6122 = vshrl.u32 %v5775, 16
      %v6124 = vrot.slane %v6122, 4
      %v6125 = vor.u32 %v6124, %v6120
      %v6126 = vrot.slane %v6125, 4
      %v6128 = vshll.u32 %v5776, 16
      %v6130 = vrot.slane %v6128, 5
      %v6131 = vsel %vm303, %v6126, %v6130
      %v6133 = vshrl.u32 %v5777, 16
      %v6135 = vrot.slane %v6133, 4
      %v6136 = vshll.u32 %v5777, 16
      %v6138 = vrot.slane %v6136, 5
      %v6139 = vor.u32 %v6135, %v6138
      %v6140 = vrot.slane %v6139, 4
      %v6142 = vshll.u32 %v5778, 16
      %v6144 = vrot.slane %v6142, 5
      %v6145 = vsel %vm303, %v6140, %v6144
      %v6146 = vshrl.u32 %v5778, 16
      %v6148 = vrot.slane %v6146, 4
      %v6149 = vor.u32 %v6148, %v6144
      %v6150 = vrot.slane %v6149, 4
      %v6152 = vshll.u32 %v5779, 16
      %v6154 = vrot.slane %v6152, 5
      %v6155 = vsel %vm303, %v6150, %v6154
      %v6157 = vshrl.u32 %v5780, 16
      %v6159 = vrot.slane %v6157, 4
      %v6160 = vshll.u32 %v5780, 16
      %v6162 = vrot.slane %v6160, 5
      %v6163 = vor.u32 %v6159, %v6162
      %v6164 = vrot.slane %v6163, 4
      %v6166 = vshll.u32 %v5781, 16
      %v6168 = vrot.slane %v6166, 5
      %v6169 = vsel %vm303, %v6164, %v6168
      %v6170 = vshrl.u32 %v5781, 16
      %v6172 = vrot.slane %v6170, 4
      %v6173 = vor.u32 %v6172, %v6168
      %v6174 = vrot.slane %v6173, 4
      %v6176 = vshll.u32 %v5782, 16
      %v6178 = vrot.slane %v6176, 5
      %v6179 = vsel %vm303, %v6174, %v6178
      %v6181 = vshrl.u32 %v5783, 16
      %v6183 = vrot.slane %v6181, 4
      %v6184 = vshll.u32 %v5783, 16
      %v6186 = vrot.slane %v6184, 5
      %v6187 = vor.u32 %v6183, %v6186
      %v6188 = vrot.slane %v6187, 4
      %v6190 = vshll.u32 %v5784, 16
      %v6192 = vrot.slane %v6190, 5
      %v6193 = vsel %vm303, %v6188, %v6192
      %v6194 = vshrl.u32 %v5784, 16
      %v6196 = vrot.slane %v6194, 4
      %v6197 = vor.u32 %v6196, %v6192
      %v6198 = vrot.slane %v6197, 4
      %v6200 = vshll.u32 %v5785, 16
      %v6202 = vrot.slane %v6200, 5
      %v6203 = vsel %vm303, %v6198, %v6202
      %s6204 = scalar_lea.vmem %s3, 448
      %v6205 = vld [vmem:[%s6204] sm:$0xf]
      %v6206 = vld [vmem:[%s6204 + $0x4] sm:$0xf]
      %v6207 = vld [vmem:[%s6204 + $0x8] sm:$0xf]
      %v6208 = vld [vmem:[%s6204 + $0xc] sm:$0xf]
      %v6209 = vld [vmem:[%s6204 + $0x10] sm:$0xf]
      %v6210 = vld [vmem:[%s6204 + $0x14] sm:$0xf]
      %v6211 = vld [vmem:[%s6204 + $0x18] sm:$0xf]
      %v6212 = vld [vmem:[%s6204 + $0x1c] sm:$0xf]
      %v6213 = vld [vmem:[%s6204 + $0x20] sm:$0xf]
      %v6214 = vld [vmem:[%s6204 + $0x24] sm:$0xf]
      %v6215 = vld [vmem:[%s6204 + $0x28] sm:$0xf]
      %v6216 = vld [vmem:[%s6204 + $0x2c] sm:$0xf]
      %v6217 = vld [vmem:[%s6204 + $0x30] sm:$0xf]
      %v6218 = vld [vmem:[%s6204 + $0x34] sm:$0xf]
      %v6219 = vld [vmem:[%s6204 + $0x38] sm:$0xf]
      %v6220 = vld [vmem:[%s6204 + $0x3c] sm:$0xf]
      %v6221 = vunpack.c.l.b16 %v6025
      %v6222 = vunpack.c.l.b16 %v6035
      %v6223 = vunpack.c.l.b16 %v6049
      %v6224 = vunpack.c.l.b16 %v6059
      %v6225 = vunpack.c.l.b16 %v6073
      %v6226 = vunpack.c.l.b16 %v6083
      %v6227 = vunpack.c.l.b16 %v6097
      %v6228 = vunpack.c.l.b16 %v6107
      %v6229 = vunpack.c.l.b16 %v6121
      %v6230 = vunpack.c.l.b16 %v6131
      %v6231 = vunpack.c.l.b16 %v6145
      %v6232 = vunpack.c.l.b16 %v6155
      %v6233 = vunpack.c.l.b16 %v6169
      %v6234 = vunpack.c.l.b16 %v6179
      %v6235 = vunpack.c.l.b16 %v6193
      %v6236 = vunpack.c.l.b16 %v6203
      %v6237 = vpack.c.b16 %v6222, %v6221
      %v6238 = vpack.c.b16 %v6224, %v6223
      %v6239 = vpack.c.b16 %v6226, %v6225
      %v6240 = vpack.c.b16 %v6228, %v6227
      %v6241 = vpack.c.b16 %v6230, %v6229
      %v6242 = vpack.c.b16 %v6232, %v6231
      %v6243 = vpack.c.b16 %v6234, %v6233
      %v6244 = vpack.c.b16 %v6236, %v6235
      %v6269 = vunpack.c.l.b16 %v6205
      %v6270 = vunpack.c.l.b16 %v6206
      %v6271 = vunpack.c.l.b16 %v6207
      %v6272 = vunpack.c.l.b16 %v6208
      %v6273 = vunpack.c.l.b16 %v6209
      %v6274 = vunpack.c.l.b16 %v6210
      %v6275 = vunpack.c.l.b16 %v6211
      %v6276 = vunpack.c.l.b16 %v6212
      %v6277 = vunpack.c.l.b16 %v6213
      %v6278 = vunpack.c.l.b16 %v6214
      %v6279 = vunpack.c.l.b16 %v6215
      %v6280 = vunpack.c.l.b16 %v6216
      %v6281 = vunpack.c.l.b16 %v6217
      %v6282 = vunpack.c.l.b16 %v6218
      %v6283 = vunpack.c.l.b16 %v6219
      %v6284 = vunpack.c.l.b16 %v6220
      %v6285 = vpack.c.b16 %v6270, %v6269
      %v6286 = vpack.c.b16 %v6272, %v6271
      %v6287 = vpack.c.b16 %v6274, %v6273
      %v6288 = vpack.c.b16 %v6276, %v6275
      %v6289 = vpack.c.b16 %v6278, %v6277
      %v6290 = vpack.c.b16 %v6280, %v6279
      %v6291 = vpack.c.b16 %v6282, %v6281
      %v6292 = vpack.c.b16 %v6284, %v6283
      %6301 = vmatprep.subr.bf16.mxu0 0
      %6302 = vmatpush1.bf16.msra.mxu0 %v6285
      %6303 = vmatprep.subr.bf16.mxu0 0
      %6304 = vmatpush1.bf16.msra.mxu0 %v6286
      %6305 = vmatprep.subr.bf16.mxu0 0
      %6306 = vmatpush1.bf16.msra.mxu0 %v6287
      %6307 = vmatprep.subr.bf16.mxu0 0
      %6308 = vmatpush1.bf16.msra.mxu0 %v6288
      %6309 = vmatprep.subr.bf16.mxu0 0
      %6310 = vmatpush1.bf16.msra.mxu0 %v6289
      %6311 = vmatprep.subr.bf16.mxu0 0
      %6312 = vmatpush1.bf16.msra.mxu0 %v6290
      %6313 = vmatprep.subr.bf16.mxu0 0
      %6314 = vmatpush1.bf16.msra.mxu0 %v6291
      %6315 = vmatprep.subr.bf16.mxu0 0
      %6316 = vmatpush1.bf16.msra.mxu0 %v6292
      %6317 = vmatprep.subr.bf16.mxu0 0
      %6318 = vmatpush1.bf16.msra.mxu0 0
      %6319 = vmatprep.subr.bf16.mxu0 0
      %6320 = vmatpush1.bf16.msra.mxu0 0
      %6321 = vmatprep.subr.bf16.mxu0 0
      %6322 = vmatpush1.bf16.msra.mxu0 0
      %6323 = vmatprep.subr.bf16.mxu0 0
      %6324 = vmatpush1.bf16.msra.mxu0 0
      %6325 = vmatprep.subr.bf16.mxu0 0
      %6326 = vmatpush1.bf16.msra.mxu0 0
      %6327 = vmatprep.subr.bf16.mxu0 0
      %6328 = vmatpush1.bf16.msra.mxu0 0
      %6329 = vmatprep.subr.bf16.mxu0 0
      %6330 = vmatpush1.bf16.msra.mxu0 0
      %6331 = vmatprep.subr.bf16.mxu0 0
      %6332 = vmatpush1.bf16.msra.mxu0 0
      %6333 = vmatprep.mubr.bf16.mxu0 0
      %6334 = vmatmul.mubr.bf16.gmra.mrb[0].mxu0 %v6237
      %v6335 = vpop.f32.mrb[0].mxu0
      %v6336 = vadd.f32 0.0, %v6335
      %v6337 = vpop.f32.mrb[0].mxu0
      %v6338 = vpop.f32.mrb[0].mxu0
      %v6339 = vadd.f32 0.0, %v6338
      %v6340 = vpop.f32.mrb[0].mxu0
      %6341 = vmatprep.mubr.bf16.mxu0 0
      %6342 = vmatmul.mubr.bf16.gmra.mrb[0].mxu0 %v6238
      %v6343 = vpop.f32.mrb[0].mxu0
      %v6344 = vadd.f32 0.0, %v6343
      %v6345 = vpop.f32.mrb[0].mxu0
      %v6346 = vpop.f32.mrb[0].mxu0
      %v6347 = vadd.f32 0.0, %v6346
      %v6348 = vpop.f32.mrb[0].mxu0
      %6349 = vmatprep.mubr.bf16.mxu0 0
      %6350 = vmatmul.mubr.bf16.gmra.mrb[0].mxu0 %v6239
      %v6351 = vpop.f32.mrb[0].mxu0
      %v6352 = vadd.f32 0.0, %v6351
      %v6353 = vpop.f32.mrb[0].mxu0
      %v6354 = vpop.f32.mrb[0].mxu0
      %v6355 = vadd.f32 0.0, %v6354
      %v6356 = vpop.f32.mrb[0].mxu0
      %6357 = vmatprep.mubr.bf16.mxu0 0
      %6358 = vmatmul.mubr.bf16.gmra.mrb[0].mxu0 %v6240
      %v6359 = vpop.f32.mrb[0].mxu0
      %v6360 = vadd.f32 0.0, %v6359
      %v6361 = vpop.f32.mrb[0].mxu0
      %v6362 = vpop.f32.mrb[0].mxu0
      %v6363 = vadd.f32 0.0, %v6362
      %v6364 = vpop.f32.mrb[0].mxu0
      %6365 = vmatprep.mubr.bf16.mxu0 0
      %6366 = vmatmul.mubr.bf16.gmra.mrb[0].mxu0 %v6241
      %v6367 = vpop.f32.mrb[0].mxu0
      %v6368 = vadd.f32 0.0, %v6367
      %v6369 = vpop.f32.mrb[0].mxu0
      %v6370 = vpop.f32.mrb[0].mxu0
      %v6371 = vadd.f32 0.0, %v6370
      %v6372 = vpop.f32.mrb[0].mxu0
      %6373 = vmatprep.mubr.bf16.mxu0 0
      %6374 = vmatmul.mubr.bf16.gmra.mrb[0].mxu0 %v6242
      %v6375 = vpop.f32.mrb[0].mxu0
      %v6376 = vadd.f32 0.0, %v6375
      %v6377 = vpop.f32.mrb[0].mxu0
      %v6378 = vpop.f32.mrb[0].mxu0
      %v6379 = vadd.f32 0.0, %v6378
      %v6380 = vpop.f32.mrb[0].mxu0
      %6381 = vmatprep.mubr.bf16.mxu0 0
      %6382 = vmatmul.mubr.bf16.gmra.mrb[0].mxu0 %v6243
      %v6383 = vpop.f32.mrb[0].mxu0
      %v6384 = vadd.f32 0.0, %v6383
      %v6385 = vpop.f32.mrb[0].mxu0
      %v6386 = vpop.f32.mrb[0].mxu0
      %v6387 = vadd.f32 0.0, %v6386
      %v6388 = vpop.f32.mrb[0].mxu0
      %6389 = vmatprep.mubr.bf16.mxu0 0
      %6390 = vmatmul.mubr.bf16.gmra.mrb[0].mxu0 %v6244
      %v6391 = vpop.f32.mrb[0].mxu0
      %v6392 = vadd.f32 0.0, %v6391
      %v6393 = vpop.f32.mrb[0].mxu0
      %v6394 = vpop.f32.mrb[0].mxu0
      %v6395 = vadd.f32 0.0, %v6394
      %v6396 = vpop.f32.mrb[0].mxu0
      %6397 = vdwg.mxu0
      %v6398 = vadd.f32 %v5996, %v6336
      %v6399 = vadd.f32 %v5997, %v6339
      %v6400 = vadd.f32 %v5998, %v6344
      %v6401 = vadd.f32 %v5999, %v6347
      %v6402 = vadd.f32 %v6000, %v6352
      %v6403 = vadd.f32 %v6001, %v6355
      %v6404 = vadd.f32 %v6002, %v6360
      %v6405 = vadd.f32 %v6003, %v6363
      %v6406 = vadd.f32 %v6004, %v6368
      %v6407 = vadd.f32 %v6005, %v6371
      %v6408 = vadd.f32 %v6006, %v6376
      %v6409 = vadd.f32 %v6007, %v6379
      %v6410 = vadd.f32 %v6008, %v6384
      %v6411 = vadd.f32 %v6009, %v6387
      %v6412 = vadd.f32 %v6010, %v6392
      %v6413 = vadd.f32 %v6011, %v6395
      %v6422 = vrot.slane %v5762, 5
      %v6423 = vrot.slane %v6422, 4
      %v6424 = vrot.slane %v5763, 5
      %v6425 = vsel %vm995, %v6423, %v6424
      %v6426 = vrot.slane %v6424, 4
      %v6427 = vrot.slane %v5764, 5
      %v6428 = vsel %vm995, %v6426, %v6427
      %v6429 = vrot.slane %v5765, 5
      %v6430 = vrot.slane %v6429, 4
      %v6431 = vrot.slane %v5766, 5
      %v6432 = vsel %vm995, %v6430, %v6431
      %v6433 = vrot.slane %v6431, 4
      %v6434 = vrot.slane %v5767, 5
      %v6435 = vsel %vm995, %v6433, %v6434
      %v6436 = vrot.slane %v5768, 5
      %v6437 = vrot.slane %v6436, 4
      %v6438 = vrot.slane %v5769, 5
      %v6439 = vsel %vm995, %v6437, %v6438
      %v6440 = vrot.slane %v6438, 4
      %v6441 = vrot.slane %v5770, 5
      %v6442 = vsel %vm995, %v6440, %v6441
      %v6443 = vrot.slane %v5771, 5
      %v6444 = vrot.slane %v6443, 4
      %v6445 = vrot.slane %v5772, 5
      %v6446 = vsel %vm995, %v6444, %v6445
      %v6447 = vrot.slane %v6445, 4
      %v6448 = vrot.slane %v5773, 5
      %v6449 = vsel %vm995, %v6447, %v6448
      %v6450 = vrot.slane %v5774, 5
      %v6451 = vrot.slane %v6450, 4
      %v6452 = vrot.slane %v5775, 5
      %v6453 = vsel %vm995, %v6451, %v6452
      %v6454 = vrot.slane %v6452, 4
      %v6455 = vrot.slane %v5776, 5
      %v6456 = vsel %vm995, %v6454, %v6455
      %v6457 = vrot.slane %v5777, 5
      %v6458 = vrot.slane %v6457, 4
      %v6459 = vrot.slane %v5778, 5
      %v6460 = vsel %vm995, %v6458, %v6459
      %v6461 = vrot.slane %v6459, 4
      %v6462 = vrot.slane %v5779, 5
      %v6463 = vsel %vm995, %v6461, %v6462
      %v6464 = vrot.slane %v5780, 5
      %v6465 = vrot.slane %v6464, 4
      %v6466 = vrot.slane %v5781, 5
      %v6467 = vsel %vm995, %v6465, %v6466
      %v6468 = vrot.slane %v6466, 4
      %v6469 = vrot.slane %v5782, 5
      %v6470 = vsel %vm995, %v6468, %v6469
      %v6471 = vrot.slane %v5783, 5
      %v6472 = vrot.slane %v6471, 4
      %v6473 = vrot.slane %v5784, 5
      %v6474 = vsel %vm995, %v6472, %v6473
      %v6475 = vrot.slane %v6473, 4
      %v6476 = vrot.slane %v5785, 5
      %v6477 = vsel %vm995, %v6475, %v6476
      %s6478 = scalar_lea.vmem %s3, 512
      %v6479 = vld [vmem:[%s6478] sm:$0xf]
      %v6480 = vld [vmem:[%s6478 + $0x4] sm:$0xf]
      %v6481 = vld [vmem:[%s6478 + $0x8] sm:$0xf]
      %v6482 = vld [vmem:[%s6478 + $0xc] sm:$0xf]
      %v6483 = vld [vmem:[%s6478 + $0x10] sm:$0xf]
      %v6484 = vld [vmem:[%s6478 + $0x14] sm:$0xf]
      %v6485 = vld [vmem:[%s6478 + $0x18] sm:$0xf]
      %v6486 = vld [vmem:[%s6478 + $0x1c] sm:$0xf]
      %v6487 = vld [vmem:[%s6478 + $0x20] sm:$0xf]
      %v6488 = vld [vmem:[%s6478 + $0x24] sm:$0xf]
      %v6489 = vld [vmem:[%s6478 + $0x28] sm:$0xf]
      %v6490 = vld [vmem:[%s6478 + $0x2c] sm:$0xf]
      %v6491 = vld [vmem:[%s6478 + $0x30] sm:$0xf]
      %v6492 = vld [vmem:[%s6478 + $0x34] sm:$0xf]
      %v6493 = vld [vmem:[%s6478 + $0x38] sm:$0xf]
      %v6494 = vld [vmem:[%s6478 + $0x3c] sm:$0xf]
      %v6495 = vunpack.c.l.b16 %v6425
      %v6496 = vunpack.c.l.b16 %v6428
      %v6497 = vunpack.c.l.b16 %v6432
      %v6498 = vunpack.c.l.b16 %v6435
      %v6499 = vunpack.c.l.b16 %v6439
      %v6500 = vunpack.c.l.b16 %v6442
      %v6501 = vunpack.c.l.b16 %v6446
      %v6502 = vunpack.c.l.b16 %v6449
      %v6503 = vunpack.c.l.b16 %v6453
      %v6504 = vunpack.c.l.b16 %v6456
      %v6505 = vunpack.c.l.b16 %v6460
      %v6506 = vunpack.c.l.b16 %v6463
      %v6507 = vunpack.c.l.b16 %v6467
      %v6508 = vunpack.c.l.b16 %v6470
      %v6509 = vunpack.c.l.b16 %v6474
      %v6510 = vunpack.c.l.b16 %v6477
      %v6511 = vpack.c.b16 %v6496, %v6495
      %v6512 = vpack.c.b16 %v6498, %v6497
      %v6513 = vpack.c.b16 %v6500, %v6499
      %v6514 = vpack.c.b16 %v6502, %v6501
      %v6515 = vpack.c.b16 %v6504, %v6503
      %v6516 = vpack.c.b16 %v6506, %v6505
      %v6517 = vpack.c.b16 %v6508, %v6507
      %v6518 = vpack.c.b16 %v6510, %v6509
      %v6543 = vunpack.c.l.b16 %v6479
      %v6544 = vunpack.c.l.b16 %v6480
      %v6545 = vunpack.c.l.b16 %v6481
      %v6546 = vunpack.c.l.b16 %v6482
      %v6547 = vunpack.c.l.b16 %v6483
      %v6548 = vunpack.c.l.b16 %v6484
      %v6549 = vunpack.c.l.b16 %v6485
      %v6550 = vunpack.c.l.b16 %v6486
      %v6551 = vunpack.c.l.b16 %v6487
      %v6552 = vunpack.c.l.b16 %v6488
      %v6553 = vunpack.c.l.b16 %v6489
      %v6554 = vunpack.c.l.b16 %v6490
      %v6555 = vunpack.c.l.b16 %v6491
      %v6556 = vunpack.c.l.b16 %v6492
      %v6557 = vunpack.c.l.b16 %v6493
      %v6558 = vunpack.c.l.b16 %v6494
      %v6559 = vpack.c.b16 %v6544, %v6543
      %v6560 = vpack.c.b16 %v6546, %v6545
      %v6561 = vpack.c.b16 %v6548, %v6547
      %v6562 = vpack.c.b16 %v6550, %v6549
      %v6563 = vpack.c.b16 %v6552, %v6551
      %v6564 = vpack.c.b16 %v6554, %v6553
      %v6565 = vpack.c.b16 %v6556, %v6555
      %v6566 = vpack.c.b16 %v6558, %v6557
      %6575 = vmatprep.subr.bf16.mxu0 0
      %6576 = vmatpush1.bf16.msra.mxu0 %v6559
      %6577 = vmatprep.subr.bf16.mxu0 0
      %6578 = vmatpush1.bf16.msra.mxu0 %v6560
      %6579 = vmatprep.subr.bf16.mxu0 0
      %6580 = vmatpush1.bf16.msra.mxu0 %v6561
      %6581 = vmatprep.subr.bf16.mxu0 0
      %6582 = vmatpush1.bf16.msra.mxu0 %v6562
      %6583 = vmatprep.subr.bf16.mxu0 0
      %6584 = vmatpush1.bf16.msra.mxu0 %v6563
      %6585 = vmatprep.subr.bf16.mxu0 0
      %6586 = vmatpush1.bf16.msra.mxu0 %v6564
      %6587 = vmatprep.subr.bf16.mxu0 0
      %6588 = vmatpush1.bf16.msra.mxu0 %v6565
      %6589 = vmatprep.subr.bf16.mxu0 0
      %6590 = vmatpush1.bf16.msra.mxu0 %v6566
      %6591 = vmatprep.subr.bf16.mxu0 0
      %6592 = vmatpush1.bf16.msra.mxu0 0
      %6593 = vmatprep.subr.bf16.mxu0 0
      %6594 = vmatpush1.bf16.msra.mxu0 0
      %6595 = vmatprep.subr.bf16.mxu0 0
      %6596 = vmatpush1.bf16.msra.mxu0 0
      %6597 = vmatprep.subr.bf16.mxu0 0
      %6598 = vmatpush1.bf16.msra.mxu0 0
      %6599 = vmatprep.subr.bf16.mxu0 0
      %6600 = vmatpush1.bf16.msra.mxu0 0
      %6601 = vmatprep.subr.bf16.mxu0 0
      %6602 = vmatpush1.bf16.msra.mxu0 0
      %6603 = vmatprep.subr.bf16.mxu0 0
      %6604 = vmatpush1.bf16.msra.mxu0 0
      %6605 = vmatprep.subr.bf16.mxu0 0
      %6606 = vmatpush1.bf16.msra.mxu0 0
      %6607 = vmatprep.mubr.bf16.mxu0 0
      %6608 = vmatmul.mubr.bf16.gmra.mrb[0].mxu0 %v6511
      %v6609 = vpop.f32.mrb[0].mxu0
      %v6610 = vadd.f32 0.0, %v6609
      %v6611 = vpop.f32.mrb[0].mxu0
      %v6612 = vpop.f32.mrb[0].mxu0
      %v6613 = vadd.f32 0.0, %v6612
      %v6614 = vpop.f32.mrb[0].mxu0
      %6615 = vmatprep.mubr.bf16.mxu0 0
      %6616 = vmatmul.mubr.bf16.gmra.mrb[0].mxu0 %v6512
      %v6617 = vpop.f32.mrb[0].mxu0
      %v6618 = vadd.f32 0.0, %v6617
      %v6619 = vpop.f32.mrb[0].mxu0
      %v6620 = vpop.f32.mrb[0].mxu0
      %v6621 = vadd.f32 0.0, %v6620
      %v6622 = vpop.f32.mrb[0].mxu0
      %6623 = vmatprep.mubr.bf16.mxu0 0
      %6624 = vmatmul.mubr.bf16.gmra.mrb[0].mxu0 %v6513
      %v6625 = vpop.f32.mrb[0].mxu0
      %v6626 = vadd.f32 0.0, %v6625
      %v6627 = vpop.f32.mrb[0].mxu0
      %v6628 = vpop.f32.mrb[0].mxu0
      %v6629 = vadd.f32 0.0, %v6628
      %v6630 = vpop.f32.mrb[0].mxu0
      %6631 = vmatprep.mubr.bf16.mxu0 0
      %6632 = vmatmul.mubr.bf16.gmra.mrb[0].mxu0 %v6514
      %v6633 = vpop.f32.mrb[0].mxu0
      %v6634 = vadd.f32 0.0, %v6633
      %v6635 = vpop.f32.mrb[0].mxu0
      %v6636 = vpop.f32.mrb[0].mxu0
      %v6637 = vadd.f32 0.0, %v6636
      %v6638 = vpop.f32.mrb[0].mxu0
      %6639 = vmatprep.mubr.bf16.mxu0 0
      %6640 = vmatmul.mubr.bf16.gmra.mrb[0].mxu0 %v6515
      %v6641 = vpop.f32.mrb[0].mxu0
      %v6642 = vadd.f32 0.0, %v6641
      %v6643 = vpop.f32.mrb[0].mxu0
      %v6644 = vpop.f32.mrb[0].mxu0
      %v6645 = vadd.f32 0.0, %v6644
      %v6646 = vpop.f32.mrb[0].mxu0
      %6647 = vmatprep.mubr.bf16.mxu0 0
      %6648 = vmatmul.mubr.bf16.gmra.mrb[0].mxu0 %v6516
      %v6649 = vpop.f32.mrb[0].mxu0
      %v6650 = vadd.f32 0.0, %v6649
      %v6651 = vpop.f32.mrb[0].mxu0
      %v6652 = vpop.f32.mrb[0].mxu0
      %v6653 = vadd.f32 0.0, %v6652
      %v6654 = vpop.f32.mrb[0].mxu0
      %6655 = vmatprep.mubr.bf16.mxu0 0
      %6656 = vmatmul.mubr.bf16.gmra.mrb[0].mxu0 %v6517
      %v6657 = vpop.f32.mrb[0].mxu0
      %v6658 = vadd.f32 0.0, %v6657
      %v6659 = vpop.f32.mrb[0].mxu0
      %v6660 = vpop.f32.mrb[0].mxu0
      %v6661 = vadd.f32 0.0, %v6660
      %v6662 = vpop.f32.mrb[0].mxu0
      %6663 = vmatprep.mubr.bf16.mxu0 0
      %6664 = vmatmul.mubr.bf16.gmra.mrb[0].mxu0 %v6518
      %v6665 = vpop.f32.mrb[0].mxu0
      %v6666 = vadd.f32 0.0, %v6665
      %v6667 = vpop.f32.mrb[0].mxu0
      %v6668 = vpop.f32.mrb[0].mxu0
      %v6669 = vadd.f32 0.0, %v6668
      %v6670 = vpop.f32.mrb[0].mxu0
      %6671 = vdwg.mxu0
      %v6672 = vadd.f32 %v6398, %v6610
      %v6673 = vadd.f32 %v6399, %v6613
      %v6674 = vadd.f32 %v6400, %v6618
      %v6675 = vadd.f32 %v6401, %v6621
      %v6676 = vadd.f32 %v6402, %v6626
      %v6677 = vadd.f32 %v6403, %v6629
      %v6678 = vadd.f32 %v6404, %v6634
      %v6679 = vadd.f32 %v6405, %v6637
      %v6680 = vadd.f32 %v6406, %v6642
      %v6681 = vadd.f32 %v6407, %v6645
      %v6682 = vadd.f32 %v6408, %v6650
      %v6683 = vadd.f32 %v6409, %v6653
      %v6684 = vadd.f32 %v6410, %v6658
      %v6685 = vadd.f32 %v6411, %v6661
      %v6686 = vadd.f32 %v6412, %v6666
      %v6687 = vadd.f32 %v6413, %v6669
      %v6688 = vld [vmem:[%s4] sm:$0x1]
      %v6690 = vlaneseq
      %v6691 = vshrl.u32 %v6690, 7
      %v6692 = vsub.s32 0, %v6691
      %v6693 = vrot.slane %v6688, %v6692
      %v6695 = vadd.f32 %v6672, %v6693
      %v6696 = vadd.f32 %v6673, %v6693
      %v6697 = vadd.f32 %v6674, %v6693
      %v6698 = vadd.f32 %v6675, %v6693
      %v6699 = vadd.f32 %v6676, %v6693
      %v6700 = vadd.f32 %v6677, %v6693
      %v6701 = vadd.f32 %v6678, %v6693
      %v6702 = vadd.f32 %v6679, %v6693
      %v6703 = vadd.f32 %v6680, %v6693
      %v6704 = vadd.f32 %v6681, %v6693
      %v6705 = vadd.f32 %v6682, %v6693
      %v6706 = vadd.f32 %v6683, %v6693
      %v6707 = vadd.f32 %v6684, %v6693
      %v6708 = vadd.f32 %v6685, %v6693
      %v6709 = vadd.f32 %v6686, %v6693
      %v6710 = vadd.f32 %v6687, %v6693
      %v6711 = vld [vmem:[%s2395] sm:$0xf]
      %v6712 = vld [vmem:[%s2395 + $0x4] sm:$0xf]
      %v6713 = vld [vmem:[%s2395 + $0x8] sm:$0x1]
      %v6714 = vld [vmem:[%s2395 + $0xc] sm:$0xf]
      %v6715 = vld [vmem:[%s2395 + $0x10] sm:$0xf]
      %v6716 = vld [vmem:[%s2395 + $0x14] sm:$0x1]
      %v6717 = vld [vmem:[%s2395 + $0x18] sm:$0xf]
      %v6718 = vld [vmem:[%s2395 + $0x1c] sm:$0xf]
      %v6719 = vld [vmem:[%s2395 + $0x20] sm:$0x1]
      %v6720 = vld [vmem:[%s2395 + $0x24] sm:$0xf]
      %v6721 = vld [vmem:[%s2395 + $0x28] sm:$0xf]
      %v6722 = vld [vmem:[%s2395 + $0x2c] sm:$0x1]
      %v6723 = vld [vmem:[%s2395 + $0x30] sm:$0xf]
      %v6724 = vld [vmem:[%s2395 + $0x34] sm:$0xf]
      %v6725 = vld [vmem:[%s2395 + $0x38] sm:$0x1]
      %v6726 = vld [vmem:[%s2395 + $0x3c] sm:$0xf]
      %v6727 = vld [vmem:[%s2395 + $0x40] sm:$0xf]
      %v6728 = vld [vmem:[%s2395 + $0x44] sm:$0x1]
      %v6729 = vld [vmem:[%s2395 + $0x48] sm:$0xf]
      %v6730 = vld [vmem:[%s2395 + $0x4c] sm:$0xf]
      %v6731 = vld [vmem:[%s2395 + $0x50] sm:$0x1]
      %v6732 = vld [vmem:[%s2395 + $0x54] sm:$0xf]
      %v6733 = vld [vmem:[%s2395 + $0x58] sm:$0xf]
      %v6734 = vld [vmem:[%s2395 + $0x5c] sm:$0x1]
      %v6735 = vunpack.c.l.bf16 %v6711
      %v6736 = vunpack.c.l.bf16 %v6712
      %v6737 = vunpack.c.l.bf16 %v6713
      %v6738 = vunpack.c.l.bf16 %v6714
      %v6739 = vunpack.c.l.bf16 %v6715
      %v6740 = vunpack.c.l.bf16 %v6716
      %v6741 = vunpack.c.l.bf16 %v6717
      %v6742 = vunpack.c.l.bf16 %v6718
      %v6743 = vunpack.c.l.bf16 %v6719
      %v6744 = vunpack.c.l.bf16 %v6720
      %v6745 = vunpack.c.l.bf16 %v6721
      %v6746 = vunpack.c.l.bf16 %v6722
      %v6747 = vunpack.c.l.bf16 %v6723
      %v6748 = vunpack.c.l.bf16 %v6724
      %v6749 = vunpack.c.l.bf16 %v6725
      %v6750 = vunpack.c.l.bf16 %v6726
      %v6751 = vunpack.c.l.bf16 %v6727
      %v6752 = vunpack.c.l.bf16 %v6728
      %v6753 = vunpack.c.l.bf16 %v6729
      %v6754 = vunpack.c.l.bf16 %v6730
      %v6755 = vunpack.c.l.bf16 %v6731
      %v6756 = vunpack.c.l.bf16 %v6732
      %v6757 = vunpack.c.l.bf16 %v6733
      %v6758 = vunpack.c.l.bf16 %v6734
      %vm6783 = vcmask 1046528
      %v6784 = vrot.slane %v6735, 1
      %v6785 = vrot.slane %v6736, 1
      %v6786 = vsel %vm6783, %v6784, %v6785
      %v6787 = vrot.slane %v6737, 1
      %v6788 = vsel %vm6783, %v6785, %v6787
      %v6789 = vrot.slane %v6738, 1
      %v6790 = vrot.slane %v6739, 1
      %v6791 = vsel %vm6783, %v6789, %v6790
      %v6792 = vrot.slane %v6740, 1
      %v6793 = vsel %vm6783, %v6790, %v6792
      %v6794 = vrot.slane %v6741, 1
      %v6795 = vrot.slane %v6742, 1
      %v6796 = vsel %vm6783, %v6794, %v6795
      %v6797 = vrot.slane %v6743, 1
      %v6798 = vsel %vm6783, %v6795, %v6797
      %v6799 = vrot.slane %v6744, 1
      %v6800 = vrot.slane %v6745, 1
      %v6801 = vsel %vm6783, %v6799, %v6800
      %v6802 = vrot.slane %v6746, 1
      %v6803 = vsel %vm6783, %v6800, %v6802
      %v6804 = vrot.slane %v6747, 1
      %v6805 = vrot.slane %v6748, 1
      %v6806 = vsel %vm6783, %v6804, %v6805
      %v6807 = vrot.slane %v6749, 1
      %v6808 = vsel %vm6783, %v6805, %v6807
      %v6809 = vrot.slane %v6750, 1
      %v6810 = vrot.slane %v6751, 1
      %v6811 = vsel %vm6783, %v6809, %v6810
      %v6812 = vrot.slane %v6752, 1
      %v6813 = vsel %vm6783, %v6810, %v6812
      %v6814 = vrot.slane %v6753, 1
      %v6815 = vrot.slane %v6754, 1
      %v6816 = vsel %vm6783, %v6814, %v6815
      %v6817 = vrot.slane %v6755, 1
      %v6818 = vsel %vm6783, %v6815, %v6817
      %v6819 = vrot.slane %v6756, 1
      %v6820 = vrot.slane %v6757, 1
      %v6821 = vsel %vm6783, %v6819, %v6820
      %v6822 = vrot.slane %v6758, 1
      %v6823 = vsel %vm6783, %v6820, %v6822
      %v6840 = vadd.f32 %v6695, %v6786
      %v6841 = vadd.f32 %v6696, %v6788
      %v6842 = vadd.f32 %v6697, %v6791
      %v6843 = vadd.f32 %v6698, %v6793
      %v6844 = vadd.f32 %v6699, %v6796
      %v6845 = vadd.f32 %v6700, %v6798
      %v6846 = vadd.f32 %v6701, %v6801
      %v6847 = vadd.f32 %v6702, %v6803
      %v6848 = vadd.f32 %v6703, %v6806
      %v6849 = vadd.f32 %v6704, %v6808
      %v6850 = vadd.f32 %v6705, %v6811
      %v6851 = vadd.f32 %v6706, %v6813
      %v6852 = vadd.f32 %v6707, %v6816
      %v6853 = vadd.f32 %v6708, %v6818
      %v6854 = vadd.f32 %v6709, %v6821
      %v6855 = vadd.f32 %v6710, %v6823
      %v6856 = vmax.f32 %v6840, 0.0
      %v6857 = vmax.f32 %v6841, 0.0
      %v6858 = vmax.f32 %v6842, 0.0
      %v6859 = vmax.f32 %v6843, 0.0
      %v6860 = vmax.f32 %v6844, 0.0
      %v6861 = vmax.f32 %v6845, 0.0
      %v6862 = vmax.f32 %v6846, 0.0
      %v6863 = vmax.f32 %v6847, 0.0
      %v6864 = vmax.f32 %v6848, 0.0
      %v6865 = vmax.f32 %v6849, 0.0
      %v6866 = vmax.f32 %v6850, 0.0
      %v6867 = vmax.f32 %v6851, 0.0
      %v6868 = vmax.f32 %v6852, 0.0
      %v6869 = vmax.f32 %v6853, 0.0
      %v6870 = vmax.f32 %v6854, 0.0
      %v6871 = vmax.f32 %v6855, 0.0
      %v6872 = vpack.c.bf16 %v6857, %v6856
      %v6873 = vpack.c.bf16 %v6859, %v6858
      %v6874 = vpack.c.bf16 %v6861, %v6860
      %v6875 = vpack.c.bf16 %v6863, %v6862
      %v6876 = vpack.c.bf16 %v6865, %v6864
      %v6877 = vpack.c.bf16 %v6867, %v6866
      %v6878 = vpack.c.bf16 %v6869, %v6868
      %v6879 = vpack.c.bf16 %v6871, %v6870
      %v6888 = vunpack.c.l.b16 %v6872
      %v6889 = vunpack.c.h.b16 %v6872
      %v6890 = vunpack.c.l.b16 %v6873
      %v6891 = vunpack.c.h.b16 %v6873
      %v6892 = vunpack.c.l.b16 %v6874
      %v6893 = vunpack.c.h.b16 %v6874
      %v6894 = vunpack.c.l.b16 %v6875
      %v6895 = vunpack.c.h.b16 %v6875
      %v6896 = vunpack.c.l.b16 %v6876
      %v6897 = vunpack.c.h.b16 %v6876
      %v6898 = vunpack.c.l.b16 %v6877
      %v6899 = vunpack.c.h.b16 %v6877
      %v6900 = vunpack.c.l.b16 %v6878
      %v6901 = vunpack.c.h.b16 %v6878
      %v6902 = vunpack.c.l.b16 %v6879
      %v6903 = vunpack.c.h.b16 %v6879
      %v6904 = vpack.c.b16 %v6888, %v6888
      %v6905 = vpack.c.b16 %v6889, %v6889
      %v6906 = vpack.c.b16 %v6890, %v6890
      %v6907 = vpack.c.b16 %v6891, %v6891
      %v6908 = vpack.c.b16 %v6892, %v6892
      %v6909 = vpack.c.b16 %v6893, %v6893
      %v6910 = vpack.c.b16 %v6894, %v6894
      %v6911 = vpack.c.b16 %v6895, %v6895
      %v6912 = vpack.c.b16 %v6896, %v6896
      %v6913 = vpack.c.b16 %v6897, %v6897
      %v6914 = vpack.c.b16 %v6898, %v6898
      %v6915 = vpack.c.b16 %v6899, %v6899
      %v6916 = vpack.c.b16 %v6900, %v6900
      %v6917 = vpack.c.b16 %v6901, %v6901
      %v6918 = vpack.c.b16 %v6902, %v6902
      %v6919 = vpack.c.b16 %v6903, %v6903
      %6936 = vst [vmem:[%s248] sm:$0xf] %v6904
      %6937 = vst [vmem:[%s248 + $0x4] sm:$0xf] %v6905
      %6938 = vst [vmem:[%s248 + $0x8] sm:$0xf] %v6906
      %6939 = vst [vmem:[%s248 + $0xc] sm:$0xf] %v6907
      %6940 = vst [vmem:[%s248 + $0x10] sm:$0xf] %v6908
      %6941 = vst [vmem:[%s248 + $0x14] sm:$0xf] %v6909
      %6942 = vst [vmem:[%s248 + $0x18] sm:$0xf] %v6910
      %6943 = vst [vmem:[%s248 + $0x1c] sm:$0xf] %v6911
      %6944 = vst [vmem:[%s248 + $0x20] sm:$0xf] %v6912
      %6945 = vst [vmem:[%s248 + $0x24] sm:$0xf] %v6913
      %6946 = vst [vmem:[%s248 + $0x28] sm:$0xf] %v6914
      %6947 = vst [vmem:[%s248 + $0x2c] sm:$0xf] %v6915
      %6948 = vst [vmem:[%s248 + $0x30] sm:$0xf] %v6916
      %6949 = vst [vmem:[%s248 + $0x34] sm:$0xf] %v6917
      %6950 = vst [vmem:[%s248 + $0x38] sm:$0xf] %v6918
      %6951 = vst [vmem:[%s248 + $0x3c] sm:$0xf] %v6919
      %s6952 = smul.u32 8, %s21
      %p6953 = scmp.lt.s32.totalorder %s20, 1
      %s6954 = scalar_select %p6953, %s20, 1
      %p6955 = scmp.lt.s32.totalorder %s6952, 15
      %s6956 = scalar_select %p6955, %s6952, 15
      %s6957 = smul.addr %s6956, 2
      %s6958 = smul.addr %s6954, 32
      %s6959 = sadd.s32 %s6957, %s6958
      %s6960 = smul.addr %s6959, 4
      %s6961 = scalar_lea.vmem %s5, %s6960
      // Predicated region
      $region49: #{basic_block_forward.1} parent=39 // pred_check
        %p6962 = pneg %p158
      $region50: #{basic_block_forward.1} parent=39 // pred_check_branch
        %6964 = sbr.rel (%p6962) target = $region52
      $region51: #{basic_block_forward.1} parent=39 // pred_region
        %s6965 = smul.u32 8, %s21
      $region52: #{basic_block_forward.1} parent=39 // pred_fallthru
        _
    $region40: #{basic_block_forward.1} parent=5 // pred_fallthru
      _
    %p6966 = scmp.le.s32.totalorder 2, %s11
    // Predicated region
    $region53: #{basic_block_forward.1} parent=5 // pred_check
      %p6967 = pneg %p6966
    $region54: #{basic_block_forward.1} parent=5 // pred_check_branch
      %6969 = sbr.rel (%p6967) target = $region56
    $region55: #{basic_block_forward.1} parent=5 // pred_region
      %s6970 = ssub.s32 %s11, 2
      // Predicated region
      $region57: #{basic_block_forward.1} parent=55 // pred_check
        %p6971 = pneg %p164
      $region58: #{basic_block_forward.1} parent=55 // pred_check_branch
        %6973 = sbr.rel (%p6971) target = $region60
      $region59: #{basic_block_forward.1} parent=55 // pred_region
        %s6974 = smul.u32 8, %s23
        %p6975 = scmp.lt.s32.totalorder %s22, 1
        %s6976 = scalar_select %p6975, %s22, 1
        %p6977 = scmp.lt.s32.totalorder %s6974, 15
        %s6978 = scalar_select %p6977, %s6974, 15
        %s6979 = smul.addr %s6978, 2
        %s6980 = smul.addr %s6976, 32
        %s6981 = sadd.s32 %s6979, %s6980
        %s6982 = smul.addr %s6981, 4
        %s6983 = scalar_lea.vmem %s5, %s6982
      $region60: #{basic_block_forward.1} parent=55 // pred_fallthru
        _
    $region56: #{basic_block_forward.1} parent=5 // pred_fallthru
      _
  $region6: #{basic_block_forward.1} parent=0 // loop_footer
    %s15 = sadd.s32 1, %s11
  $region7: #{basic_block_forward.1} parent=0 // loop_footer_branch
    %10 = sbr.rel target = $region3
  $region8: #{basic_block_forward.1} parent=0 // loop_exit
    _

</llo_original>
